<compile_context>
chip_gen: v5e
topology: v5e:2x2
jax: 0.10.0
libtpu: 0.0.40
codegen_flags: <defaults>
</compile_context>

<pallas_src>
import jax
import jax.numpy as jnp
import numpy as np
from jax.experimental import pallas as pl
from jax.experimental.pallas import tpu as pltpu


CLIP_DIM = 768          # CLIP ViT-L/14 output feature dim (fixed by the module)
FEAT_DIM = 128          # `feat_dim` of the contrastive head
NUM_CLASSES = 16        # `num_classes` of the fc classifier
LOGITS_PAD = 128        # fc output padded to a full lane tile (sliced in wrapper)
HEAD = "mlp"            # 'mlp' head: Linear(768,768) -> ReLU -> Linear(768,feat_dim)


def _papi_kernel(x_ref, wenc_ref, wcat_ref, bcat_ref, wh2_ref, bh2_ref,
                 logits_ref, featc_ref, acc_ref):
    """grid = (batch_blocks, k_blocks).  Encoder matmul is accumulated over the
    K axis; fc + mlp head + normalize run once on the last K step."""
    k = pl.program_id(1)

    @pl.when(k == 0)
    def _():
        acc_ref[...] = jnp.zeros_like(acc_ref)

    # --- encoder stub: feat += x_tile @ w_enc_tile  (bf16 x bf16 -> f32 acc) ---
    acc_ref[...] += jnp.dot(x_ref[...], wenc_ref[...],
                            preferred_element_type=jnp.float32)

    @pl.when(k == pl.num_programs(1) - 1)
    def _():
        feat = acc_ref[...]                                       # [TB, 768] f32

        # --- fused fc + head-layer-1: one lane-dense [768, 896] matmul ---
        z = jnp.dot(feat, wcat_ref[...].astype(jnp.float32),
                    preferred_element_type=jnp.float32) + bcat_ref[...]
        logits_ref[...] = z[:, :LOGITS_PAD]                       # padded logits

        # --- head layer 2: ReLU -> Linear(768, feat_dim) ---
        h = jnp.maximum(z[:, LOGITS_PAD:], 0.0)
        feat_c = jnp.dot(h, wh2_ref[...].astype(jnp.float32),
                         preferred_element_type=jnp.float32) + bh2_ref[...]

        # --- F.normalize(feat_c, dim=1): x / max(||x||_2, 1e-12) ---
        sumsq = jnp.sum(feat_c * feat_c, axis=1, keepdims=True)
        inv = jax.lax.rsqrt(jnp.maximum(sumsq, 1e-24))            # EUP rsqrt
        featc_ref[...] = feat_c * inv


def papi_forward(x_nchw, params, *, tk=512):
    """PaPiNet.forward. x_nchw: [B, C, H, W] float32.

    Returns (logits [B, num_classes], normalized feat_c [B, feat_dim]).
    """
    B = x_nchw.shape[0]
    x_flat = x_nchw.reshape(B, -1).astype(jnp.bfloat16)           # bf16 activations
    d_in = x_flat.shape[1]
    assert d_in % tk == 0, "flattened input dim must be a multiple of tk"

    w_enc, w_fc, b_fc, w_h1, b_h1, w_h2, b_h2 = params

    # bf16 storage for the HBM-bandwidth-dominating weight matrices.
    w_enc_b = w_enc.astype(jnp.bfloat16)                          # [d_in, 768]
    w_h2_b = w_h2.astype(jnp.bfloat16)                            # [768, 128]

    # Pack fc (padded 16 -> 128 lanes) with head layer 1 into one lane-dense matmul.
    w_fc_pad = jnp.zeros((CLIP_DIM, LOGITS_PAD), jnp.float32).at[:, :NUM_CLASSES].set(w_fc)
    b_fc_pad = jnp.zeros((1, LOGITS_PAD), jnp.float32).at[:, :NUM_CLASSES].set(b_fc)
    w_cat = jnp.concatenate([w_fc_pad, w_h1], axis=1).astype(jnp.bfloat16)  # [768, 896]
    b_cat = jnp.concatenate([b_fc_pad, b_h1], axis=1).astype(jnp.float32)   # [1, 896]
    b_h2f = b_h2.astype(jnp.float32)
    cat_dim = LOGITS_PAD + CLIP_DIM

    # Batch blocks of 8 sublanes when possible (parallel axis -> megacore on v7x).
    tb = 8 if (B > 8 and B % 8 == 0) else B
    grid = (B // tb, d_in // tk)

    flops = int(2 * B * (d_in * CLIP_DIM + CLIP_DIM * cat_dim + CLIP_DIM * FEAT_DIM))
    bytes_accessed = int(
        x_flat.size * 2
        + (B // tb) * (w_enc_b.size + w_cat.size + w_h2_b.size) * 2
        + (b_cat.size + b_h2f.size) * 4
        + B * (LOGITS_PAD + FEAT_DIM) * 4)

    grid_spec = pltpu.PrefetchScalarGridSpec(
        num_scalar_prefetch=0,
        grid=grid,
        in_specs=[
            pl.BlockSpec((tb, tk), lambda b, k: (b, k)),              # x
            pl.BlockSpec((tk, CLIP_DIM), lambda b, k: (k, 0)),        # w_enc
            pl.BlockSpec((CLIP_DIM, cat_dim), lambda b, k: (0, 0)),   # w_cat
            pl.BlockSpec((1, cat_dim), lambda b, k: (0, 0)),          # b_cat
            pl.BlockSpec((CLIP_DIM, FEAT_DIM), lambda b, k: (0, 0)),  # w_h2
            pl.BlockSpec((1, FEAT_DIM), lambda b, k: (0, 0)),         # b_h2
        ],
        out_specs=(
            pl.BlockSpec((tb, LOGITS_PAD), lambda b, k: (b, 0)),      # padded logits
            pl.BlockSpec((tb, FEAT_DIM), lambda b, k: (b, 0)),        # feat_c
        ),
        scratch_shapes=[pltpu.VMEM((tb, CLIP_DIM), jnp.float32)],     # f32 accumulator
    )

    logits_pad, feat_c = pl.pallas_call(
        _papi_kernel,
        out_shape=(jax.ShapeDtypeStruct((B, LOGITS_PAD), jnp.float32),
                   jax.ShapeDtypeStruct((B, FEAT_DIM), jnp.float32)),
        grid_spec=grid_spec,
        compiler_params=pltpu.CompilerParams(
            dimension_semantics=("parallel", "arbitrary"),
            vmem_limit_bytes=32 << 20),                               # valid on v5e/v6e/v7x
        cost_estimate=pl.CostEstimate(flops=flops, transcendentals=0,
                                      bytes_accessed=bytes_accessed),
    )(x_flat, w_enc_b, w_cat, b_cat, w_h2_b, b_h2f)

    return logits_pad[:, :NUM_CLASSES], feat_c


def make_params(key, in_dim):
    """Deterministic synthetic parameters (shapes implied by PaPiNet.__init__)."""
    ks = jax.random.split(key, 7)
    w_enc = jax.random.normal(ks[0], (in_dim, CLIP_DIM), jnp.float32) / np.sqrt(in_dim)
    # self.fc = Linear(768, num_classes)
    w_fc = jax.random.normal(ks[1], (CLIP_DIM, NUM_CLASSES), jnp.float32) / np.sqrt(CLIP_DIM)
    b_fc = jax.random.normal(ks[2], (1, NUM_CLASSES), jnp.float32) * 0.01
    # self.head = Sequential(Linear(768,768), ReLU, Linear(768, feat_dim))
    w_h1 = jax.random.normal(ks[3], (CLIP_DIM, CLIP_DIM), jnp.float32) / np.sqrt(CLIP_DIM)
    b_h1 = jax.random.normal(ks[4], (1, CLIP_DIM), jnp.float32) * 0.01
    w_h2 = jax.random.normal(ks[5], (CLIP_DIM, FEAT_DIM), jnp.float32) / np.sqrt(CLIP_DIM)
    b_h2 = jax.random.normal(ks[6], (1, FEAT_DIM), jnp.float32) * 0.01
    return (w_enc, w_fc, b_fc, w_h1, b_h1, w_h2, b_h2)


def papi_reference(x_nchw, params):
    """Pure-JAX f32 reference of the same computation (for correctness)."""
    w_enc, w_fc, b_fc, w_h1, b_h1, w_h2, b_h2 = params
    x_flat = x_nchw.reshape(x_nchw.shape[0], -1).astype(jnp.float32)
    feat = x_flat @ w_enc
    logits = feat @ w_fc + b_fc
    h = jnp.maximum(feat @ w_h1 + b_h1, 0.0)
    feat_c = h @ w_h2 + b_h2
    nrm = jnp.maximum(jnp.linalg.norm(feat_c, axis=1, keepdims=True), 1e-12)
    return logits, feat_c / nrm


if __name__ == "__main__":
    key = jax.random.PRNGKey(0)
    k_x, k_p = jax.random.split(key)

    # Small image batch consistent with an NCHW image encoder input.
    B, C, H, W = 8, 3, 32, 32
    x = jax.random.normal(k_x, (B, C, H, W), jnp.float32)
    params = make_params(k_p, C * H * W)

    logits, feat_c = papi_forward(x, params)
    jax.block_until_ready((logits, feat_c))

    # Reference uses the same bf16-quantized weight matrices (upcast to f32),
    # so the comparison isolates kernel arithmetic rather than storage precision.
    w_enc, w_fc, b_fc, w_h1, b_h1, w_h2, b_h2 = params
    q = lambda w: w.astype(jnp.bfloat16).astype(jnp.float32)
    params_q = (q(w_enc), q(w_fc), b_fc, q(w_h1), b_h1, q(w_h2), b_h2)
    ref_logits, ref_feat_c = papi_reference(x, params_q)

    assert logits.shape == (B, NUM_CLASSES) and feat_c.shape == (B, FEAT_DIM)
    np.testing.assert_allclose(np.asarray(logits), np.asarray(ref_logits),
                               rtol=2e-2, atol=2e-2)
    np.testing.assert_allclose(np.asarray(feat_c), np.asarray(ref_feat_c),
                               rtol=2e-2, atol=2e-2)

    print("KERNEL_OK")
</pallas_src>

<mosaic_0001>
module attributes {stable_mosaic.version = 11 : i64} {
  func.func @_papi_kernel(%arg0: i32, %arg1: i32, %arg2: memref<8x512xbf16, #tpu.memory_space<vmem>>, %arg3: memref<512x768xbf16, #tpu.memory_space<vmem>>, %arg4: memref<768x896xbf16, #tpu.memory_space<vmem>>, %arg5: memref<1x896xf32, #tpu.memory_space<vmem>>, %arg6: memref<768x128xbf16, #tpu.memory_space<vmem>>, %arg7: memref<1x128xf32, #tpu.memory_space<vmem>>, %arg8: memref<8x128xf32, #tpu.memory_space<vmem>>, %arg9: memref<8x128xf32, #tpu.memory_space<vmem>>, %arg10: memref<8x768xf32, #tpu.memory_space<vmem>>) attributes {dimension_semantics = [#tpu.dimension_semantics<parallel>, #tpu.dimension_semantics<arbitrary>], iteration_bounds = array<i64: 1, 6>, scalar_prefetch = 0 : i64, scratch_operands = 1 : i64, tpu.core_type = #tpu.core_type<tc>, window_params = [{transform_indices = @transform_0, window_bounds = array<i64: 8, 512>}, {transform_indices = @transform_1, window_bounds = array<i64: 512, 768>}, {pipeline_mode = #tpu.pipeline_mode<synchronous>, transform_indices = @transform_2, window_bounds = array<i64: 768, 896>}, {pipeline_mode = #tpu.pipeline_mode<synchronous>, transform_indices = @transform_3, window_bounds = array<i64: 1, 896>}, {pipeline_mode = #tpu.pipeline_mode<synchronous>, transform_indices = @transform_4, window_bounds = array<i64: 768, 128>}, {pipeline_mode = #tpu.pipeline_mode<synchronous>, transform_indices = @transform_5, window_bounds = array<i64: 1, 128>}, {transform_indices = @transform_6, window_bounds = array<i64: 8, 128>}, {transform_indices = @transform_7, window_bounds = array<i64: 8, 128>}]} {
    %c0_i32 = arith.constant 0 : i32
    %0 = arith.cmpi eq, %arg1, %c0_i32 : i32
    %1 = arith.extui %0 : i1 to i32
    %c0_i32_0 = arith.constant 0 : i32
    %2 = arith.cmpi ne, %1, %c0_i32_0 : i32
    scf.if %2 {
      %cst_9 = arith.constant 0.000000e+00 : f32
      %12 = vector.broadcast %cst_9 : f32 to vector<8x768xf32>
      %c0_10 = arith.constant 0 : index
      %c0_11 = arith.constant 0 : index
      %13 = vector.load %arg10[%c0_10, %c0_11] : memref<8x768xf32, #tpu.memory_space<vmem>>, vector<8x768xf32>
      tpu.vector_store %arg10[%c0_10, %c0_11], %12 {strides = array<i32>} : memref<8x768xf32, #tpu.memory_space<vmem>>, vector<8x768xf32>,
    } else {
    }
    %c0 = arith.constant 0 : index
    %c0_1 = arith.constant 0 : index
    %3 = vector.load %arg10[%c0, %c0_1] : memref<8x768xf32, #tpu.memory_space<vmem>>, vector<8x768xf32>
    %c0_2 = arith.constant 0 : index
    %c0_3 = arith.constant 0 : index
    %4 = vector.load %arg2[%c0_2, %c0_3] : memref<8x512xbf16, #tpu.memory_space<vmem>>, vector<8x512xbf16>
    %c0_4 = arith.constant 0 : index
    %c0_5 = arith.constant 0 : index
    %5 = vector.load %arg3[%c0_4, %c0_5] : memref<512x768xbf16, #tpu.memory_space<vmem>>, vector<512x768xbf16>
    %cst = arith.constant dense<0.000000e+00> : vector<8x768xf32>
    %6 = tpu.matmul %4, %5, %cst {dimension_numbers = #tpu.dot_dimension_numbers<[1], [0], [0], [1], [0, 0, 1, 1], [], []>} : vector<8x512xbf16>, vector<512x768xbf16>, vector<8x768xf32> -> vector<8x768xf32>
    %7 = arith.addf %3, %6 : vector<8x768xf32>
    %c0_6 = arith.constant 0 : index
    %c0_7 = arith.constant 0 : index
    %8 = vector.load %arg10[%c0_6, %c0_7] : memref<8x768xf32, #tpu.memory_space<vmem>>, vector<8x768xf32>
    tpu.vector_store %arg10[%c0_6, %c0_7], %7 {strides = array<i32>} : memref<8x768xf32, #tpu.memory_space<vmem>>, vector<8x768xf32>,
    %c5_i32 = arith.constant 5 : i32
    %9 = arith.cmpi eq, %arg1, %c5_i32 : i32
    %10 = arith.extui %9 : i1 to i32
    %c0_i32_8 = arith.constant 0 : i32
    %11 = arith.cmpi ne, %10, %c0_i32_8 : i32
    scf.if %11 {
      %c0_9 = arith.constant 0 : index
      %c0_10 = arith.constant 0 : index
      %12 = vector.load %arg10[%c0_9, %c0_10] : memref<8x768xf32, #tpu.memory_space<vmem>>, vector<8x768xf32>
      %c0_11 = arith.constant 0 : index
      %c0_12 = arith.constant 0 : index
      %13 = vector.load %arg4[%c0_11, %c0_12] : memref<768x896xbf16, #tpu.memory_space<vmem>>, vector<768x896xbf16>
      %14 = arith.extf %13 : vector<768x896xbf16> to vector<768x896xf32>
      %cst_13 = arith.constant dense<0.000000e+00> : vector<8x896xf32>
      %15 = tpu.matmul %12, %14, %cst_13 {dimension_numbers = #tpu.dot_dimension_numbers<[1], [0], [0], [1], [0, 0, 1, 1], [], []>} : vector<8x768xf32>, vector<768x896xf32>, vector<8x896xf32> -> vector<8x896xf32>
      %c0_14 = arith.constant 0 : index
      %c0_15 = arith.constant 0 : index
      %16 = vector.load %arg5[%c0_14, %c0_15] : memref<1x896xf32, #tpu.memory_space<vmem>>, vector<1x896xf32>
      %17 = vector.broadcast %16 : vector<1x896xf32> to vector<8x896xf32>
      %18 = arith.addf %15, %17 : vector<8x896xf32>
      %19 = vector.extract_strided_slice %18 {offsets = [0, 0], sizes = [8, 128], strides = [1, 1]} : vector<8x896xf32> to vector<8x128xf32>
      %c0_16 = arith.constant 0 : index
      %c0_17 = arith.constant 0 : index
      %20 = vector.load %arg8[%c0_16, %c0_17] : memref<8x128xf32, #tpu.memory_space<vmem>>, vector<8x128xf32>
      tpu.vector_store %arg8[%c0_16, %c0_17], %19 {strides = array<i32>} : memref<8x128xf32, #tpu.memory_space<vmem>>, vector<8x128xf32>,
      %21 = vector.extract_strided_slice %18 {offsets = [0, 128], sizes = [8, 768], strides = [1, 1]} : vector<8x896xf32> to vector<8x768xf32>
      %cst_18 = arith.constant 0.000000e+00 : f32
      %22 = vector.broadcast %cst_18 : f32 to vector<8x768xf32>
      %23 = arith.maximumf %21, %22 : vector<8x768xf32>
      %c0_19 = arith.constant 0 : index
      %c0_20 = arith.constant 0 : index
      %24 = vector.load %arg6[%c0_19, %c0_20] : memref<768x128xbf16, #tpu.memory_space<vmem>>, vector<768x128xbf16>
      %25 = arith.extf %24 : vector<768x128xbf16> to vector<768x128xf32>
      %cst_21 = arith.constant dense<0.000000e+00> : vector<8x128xf32>
      %26 = tpu.matmul %23, %25, %cst_21 {dimension_numbers = #tpu.dot_dimension_numbers<[1], [0], [0], [1], [0, 0, 1, 1], [], []>} : vector<8x768xf32>, vector<768x128xf32>, vector<8x128xf32> -> vector<8x128xf32>
      %c0_22 = arith.constant 0 : index
      %c0_23 = arith.constant 0 : index
      %27 = vector.load %arg7[%c0_22, %c0_23] : memref<1x128xf32, #tpu.memory_space<vmem>>, vector<1x128xf32>
      %28 = vector.broadcast %27 : vector<1x128xf32> to vector<8x128xf32>
      %29 = arith.addf %26, %28 : vector<8x128xf32>
      %30 = arith.mulf %29, %29 : vector<8x128xf32>
      %cst_24 = arith.constant dense<0.000000e+00> : vector<8xf32>
      %31 = vector.multi_reduction <add>, %30, %cst_24 [1] : vector<8x128xf32> to vector<8xf32>
      %32 = vector.shape_cast %31 : vector<8xf32> to vector<8x1xf32>
      %cst_25 = arith.constant 1.000000e-24 : f32
      %33 = vector.broadcast %cst_25 : f32 to vector<8x1xf32>
      %34 = arith.maximumf %32, %33 : vector<8x1xf32>
      %35 = math.rsqrt %34 : vector<8x1xf32>
      %36 = vector.broadcast %35 : vector<8x1xf32> to vector<8x128xf32>
      %37 = arith.mulf %29, %36 : vector<8x128xf32>
      %c0_26 = arith.constant 0 : index
      %c0_27 = arith.constant 0 : index
      %38 = vector.load %arg9[%c0_26, %c0_27] : memref<8x128xf32, #tpu.memory_space<vmem>>, vector<8x128xf32>
      tpu.vector_store %arg9[%c0_26, %c0_27], %37 {strides = array<i32>} : memref<8x128xf32, #tpu.memory_space<vmem>>, vector<8x128xf32>,
    } else {
    }
    return
  }
  func.func @transform_0(%arg0: i32, %arg1: i32) -> (i32, i32) {
    %c0_i32 = arith.constant 0 : i32
    return %arg0, %arg1 : i32, i32
  }
  func.func @transform_1(%arg0: i32, %arg1: i32) -> (i32, i32) {
    %c0_i32 = arith.constant 0 : i32
    %c0_i32_0 = arith.constant 0 : i32
    return %arg1, %c0_i32 : i32, i32
  }
  func.func @transform_2(%arg0: i32, %arg1: i32) -> (i32, i32) {
    %c0_i32 = arith.constant 0 : i32
    %c0_i32_0 = arith.constant 0 : i32
    %c0_i32_1 = arith.constant 0 : i32
    return %c0_i32, %c0_i32_0 : i32, i32
  }
  func.func @transform_3(%arg0: i32, %arg1: i32) -> (i32, i32) {
    %c0_i32 = arith.constant 0 : i32
    %c0_i32_0 = arith.constant 0 : i32
    %c0_i32_1 = arith.constant 0 : i32
    return %c0_i32, %c0_i32_0 : i32, i32
  }
  func.func @transform_4(%arg0: i32, %arg1: i32) -> (i32, i32) {
    %c0_i32 = arith.constant 0 : i32
    %c0_i32_0 = arith.constant 0 : i32
    %c0_i32_1 = arith.constant 0 : i32
    return %c0_i32, %c0_i32_0 : i32, i32
  }
  func.func @transform_5(%arg0: i32, %arg1: i32) -> (i32, i32) {
    %c0_i32 = arith.constant 0 : i32
    %c0_i32_0 = arith.constant 0 : i32
    %c0_i32_1 = arith.constant 0 : i32
    return %c0_i32, %c0_i32_0 : i32, i32
  }
  func.func @transform_6(%arg0: i32, %arg1: i32) -> (i32, i32) {
    %c0_i32 = arith.constant 0 : i32
    %c0_i32_0 = arith.constant 0 : i32
    return %arg0, %c0_i32 : i32, i32
  }
  func.func @transform_7(%arg0: i32, %arg1: i32) -> (i32, i32) {
    %c0_i32 = arith.constant 0 : i32
    %c0_i32_0 = arith.constant 0 : i32
    return %arg0, %c0_i32 : i32, i32
  }
}

</mosaic_0001>

<llo_original>
// kernel: tpu_custom_call.1
$region0: #{tpu_custom_call.1}
  #allocation0 [shape = 'u32[]', space=smem, size = 0x4, offset = 0x4, fixed_abs, tag = 'smem constant byte address 0x4 - core index']
  #allocation1 [shape = 'u32[72,128]{1,0:T(1,128)}', space=vmem, size = 0x9000, scoped, tag = 'internal scratch']
  #allocation2 [shape = 'f32[8,768]{1,0:T(8,128)}', space=vmem, size = 0x6000, scoped, tag = 'scratch operand']
  %s0 = inlined_call_operand.hbm [shape: bf16[8,3072], index: 0, kind: input, shape index: {}]
  %s1 = inlined_call_operand.hbm [shape: bf16[3072,768], index: 1, kind: input, shape index: {}]
  %s2 = inlined_call_operand.hbm [shape: bf16[768,896], index: 2, kind: input, shape index: {}]
  %s3 = inlined_call_operand.hbm [shape: f32[1,896], index: 3, kind: input, shape index: {}]
  %s4 = inlined_call_operand.hbm [shape: bf16[768,128], index: 4, kind: input, shape index: {}]
  %s5 = inlined_call_operand.hbm [shape: f32[1,128], index: 5, kind: input, shape index: {}]
  %s6 = inlined_call_operand.hbm [shape: f32[8,128], index: 6, kind: output, shape index: {0}]
  %s7 = inlined_call_operand.hbm [shape: f32[8,128], index: 7, kind: output, shape index: {1}]
  %8 = xla_tuple %s6, %s7
  %s9 = sld [smem:[#allocation0]]
  $region97: #{tpu_custom_call.1} parent=0
    _
  %s11 = ssub.s32 1, %s9
  %s12 = scalar_select 0, %s11, %s9
  $region1: #{tpu_custom_call.1} parent=0
    #allocation3 [shape = 'u8[16384]{0}', space=vmem, size = 0x4000, scoped, tag = 'input window, operand 0']
    #allocation4 [shape = 's32[2]{0}', space=sflag, size = 0x8, scoped, tag = 'scoped memory for tpu_custom_call.1']
    #allocation5 [shape = 's32[2]{0}', space=sflag, size = 0x8, scoped, tag = 'scoped memory for tpu_custom_call.1']
    #allocation6 [shape = 'u8[1572864]{0}', space=vmem, size = 0x180000, scoped, tag = 'input window, operand 1']
    #allocation7 [shape = 's32[2]{0}', space=sflag, size = 0x8, scoped, tag = 'scoped memory for tpu_custom_call.1']
    #allocation8 [shape = 'u8[1376256]{0}', space=vmem, size = 0x150000, scoped, tag = 'input window, operand 2, single buffered']
    #allocation9 [shape = 'u8[3584]{0}', space=vmem, size = 0x1000, scoped, tag = 'input window, operand 3, single buffered']
    #allocation10 [shape = 's32[1]{0}', space=sflag, size = 0x4, scoped, tag = 'scoped memory for tpu_custom_call.1']
    #allocation11 [shape = 'u8[196608]{0}', space=vmem, size = 0x30000, scoped, tag = 'input window, operand 4, single buffered']
    #allocation12 [shape = 'u8[512]{0}', space=vmem, size = 0x400, scoped, tag = 'input window, operand 5, single buffered']
    #allocation13 [shape = 's32[1]{0}', space=sflag, size = 0x4, scoped, tag = 'scoped memory for tpu_custom_call.1']
    #allocation14 [shape = 'u8[4096]{0}', space=vmem, size = 0x1000, scoped, tag = 'output window, operand 0, single buffered']
    #allocation15 [shape = 'u8[4096]{0}', space=vmem, size = 0x1000, scoped, tag = 'output window, operand 1, single buffered']
    #allocation16 [shape = 's32[1]{0}', space=sflag, size = 0x4, scoped, tag = 'scoped memory for tpu_custom_call.1']
    %13 = vsyncpa [#allocation4], 0
    %s14 = scalar_lea.sflag [#allocation4], 1
    %15 = vsyncpa %s14, 0
    %16 = vsyncpa [#allocation7], 0
    %s17 = scalar_lea.sflag [#allocation7], 1
    %18 = vsyncpa %s17, 0
    %19 = vsyncpa [#allocation10], 0
    %20 = vsyncpa [#allocation13], 0
    %21 = vsyncpa [#allocation5], 0
    %22 = vsyncpa [#allocation16], 0
    loop: start=0, step=1, limit=8
    $region2: #{tpu_custom_call.1} parent=1 // loop_pre_header
      _
    $region3: #{tpu_custom_call.1} parent=1 // loop_header
      %s24 = sphi 0, %s28
      %p25 = scmp.ge.s32.totalorder %s24, 8
      %s31 = sphi 0, %s43
      %s32 = sphi 0, %s39
      %s33 = sphi 0, %s31
      %s34 = sphi 0, %s32
      %s35 = sphi 0, %s33
      %s36 = sphi 0, %s34
      %s48 = sphi 0, %s50
      %s51 = sphi 0, %s48
      %s52 = sphi 0, %s51
      %s68 = sphi 0, %s52
      %s74 = sphi 0, %s76
      %s77 = sphi 0, %s74
      %s78 = sphi 0, %s77
      %s94 = sphi 0, %s78
      %s98 = sphi 0, %s98
      %s100 = sphi 0, %s98
      %s101 = sphi 0, %s100
      %s115 = sphi 0, %s101
      %s119 = sphi 0, %s119
      %s121 = sphi 0, %s119
      %s122 = sphi 0, %s121
      %s136 = sphi 0, %s122
      %s140 = sphi 0, %s140
      %s142 = sphi 0, %s140
      %s143 = sphi 0, %s142
      %s157 = sphi 0, %s143
      %s161 = sphi 0, %s161
      %s163 = sphi 0, %s161
      %s164 = sphi 0, %s163
      %s178 = sphi 0, %s164
      %s184 = sphi 0, %s186
      %s187 = sphi 0, %s184
      %s188 = sphi 0, %s187
      %s204 = sphi 0, %s188
      %s210 = sphi 0, %s212
      %s213 = sphi 0, %s210
      %s214 = sphi 0, %s213
      %s230 = sphi 0, %s214
    $region4: #{tpu_custom_call.1} parent=1 // loop_header_branch
      %27 = sbr.rel (%p25) target = $region8
    $region5: #{tpu_custom_call.1} parent=1 // loop_body
      %s29 = ssub.s32 %s24, 1
      %s30 = ssub.s32 %s24, 2
      %s37 = sadd.s32 1, %s32
      %p38 = scmp.ge.s32.totalorder %s37, 6
      %s39 = scalar_select %p38, 0, %s37
      %s40 = sadd.s32 1, %s31
      %s41 = scalar_select %p38, %s40, %s31
      %p42 = scmp.ge.s32.totalorder %s41, 1
      %s43 = scalar_select %p42, 0, %s41
      %s44 = ssub.s32 %s31, %s43
      %s45 = ssub.s32 %s32, %s39
      %s46 = sor.u32 %s44, %s45
      %p47 = scmp.eq.s32.totalorder %s46, 0
      %s49 = sadd.s32 %s48, 1
      %s50 = scalar_select %p47, %s48, %s49
      %p53 = pneg %p47
      %p54 = scmp.eq.s32.totalorder %s24, 5
      %p55 = por %p53, %p54
      %p56 = scmp.ne.s32.totalorder %s48, %s51
      %p57 = scmp.eq.s32.totalorder %s24, 0
      %p58 = por %p56, %p57
      %p59 = scmp.ne.s32.totalorder %s48, %s51
      %p60 = scmp.eq.s32.totalorder %s29, 5
      %p61 = por %p59, %p60
      %p62 = scmp.ne.s32.totalorder %s51, %s52
      %p63 = scmp.eq.s32.totalorder %s29, 0
      %p64 = por %p62, %p63
      %p65 = scmp.ne.s32.totalorder %s51, %s52
      %p66 = scmp.eq.s32.totalorder %s30, 5
      %p67 = por %p65, %p66
      %p69 = scmp.ne.s32.totalorder %s52, %s68
      %p70 = scmp.eq.s32.totalorder %s30, 0
      %p71 = por %p69, %p70
      %s72 = ssub.s32 %s32, %s39
      %p73 = scmp.eq.s32.totalorder %s72, 0
      %s75 = sadd.s32 %s74, 1
      %s76 = scalar_select %p73, %s74, %s75
      %p79 = pneg %p73
      %p80 = scmp.eq.s32.totalorder %s24, 5
      %p81 = por %p79, %p80
      %p82 = scmp.ne.s32.totalorder %s74, %s77
      %p83 = scmp.eq.s32.totalorder %s24, 0
      %p84 = por %p82, %p83
      %p85 = scmp.ne.s32.totalorder %s74, %s77
      %p86 = scmp.eq.s32.totalorder %s29, 5
      %p87 = por %p85, %p86
      %p88 = scmp.ne.s32.totalorder %s77, %s78
      %p89 = scmp.eq.s32.totalorder %s29, 0
      %p90 = por %p88, %p89
      %p91 = scmp.ne.s32.totalorder %s77, %s78
      %p92 = scmp.eq.s32.totalorder %s30, 5
      %p93 = por %p91, %p92
      %p95 = scmp.ne.s32.totalorder %s78, %s94
      %p96 = scmp.eq.s32.totalorder %s30, 0
      %p97 = por %p95, %p96
      %s99 = sadd.s32 %s98, 1
      %p102 = scmp.eq.s32.totalorder %s24, 5
      %p103 = scmp.ne.s32.totalorder %s98, %s100
      %p104 = scmp.eq.s32.totalorder %s24, 0
      %p105 = por %p103, %p104
      %p106 = scmp.ne.s32.totalorder %s98, %s100
      %p107 = scmp.eq.s32.totalorder %s29, 5
      %p108 = por %p106, %p107
      %p109 = scmp.ne.s32.totalorder %s100, %s101
      %p110 = scmp.eq.s32.totalorder %s29, 0
      %p111 = por %p109, %p110
      %p112 = scmp.ne.s32.totalorder %s100, %s101
      %p113 = scmp.eq.s32.totalorder %s30, 5
      %p114 = por %p112, %p113
      %p116 = scmp.ne.s32.totalorder %s101, %s115
      %p117 = scmp.eq.s32.totalorder %s30, 0
      %p118 = por %p116, %p117
      %s120 = sadd.s32 %s119, 1
      %p123 = scmp.eq.s32.totalorder %s24, 5
      %p124 = scmp.ne.s32.totalorder %s119, %s121
      %p125 = scmp.eq.s32.totalorder %s24, 0
      %p126 = por %p124, %p125
      %p127 = scmp.ne.s32.totalorder %s119, %s121
      %p128 = scmp.eq.s32.totalorder %s29, 5
      %p129 = por %p127, %p128
      %p130 = scmp.ne.s32.totalorder %s121, %s122
      %p131 = scmp.eq.s32.totalorder %s29, 0
      %p132 = por %p130, %p131
      %p133 = scmp.ne.s32.totalorder %s121, %s122
      %p134 = scmp.eq.s32.totalorder %s30, 5
      %p135 = por %p133, %p134
      %p137 = scmp.ne.s32.totalorder %s122, %s136
      %p138 = scmp.eq.s32.totalorder %s30, 0
      %p139 = por %p137, %p138
      %s141 = sadd.s32 %s140, 1
      %p144 = scmp.eq.s32.totalorder %s24, 5
      %p145 = scmp.ne.s32.totalorder %s140, %s142
      %p146 = scmp.eq.s32.totalorder %s24, 0
      %p147 = por %p145, %p146
      %p148 = scmp.ne.s32.totalorder %s140, %s142
      %p149 = scmp.eq.s32.totalorder %s29, 5
      %p150 = por %p148, %p149
      %p151 = scmp.ne.s32.totalorder %s142, %s143
      %p152 = scmp.eq.s32.totalorder %s29, 0
      %p153 = por %p151, %p152
      %p154 = scmp.ne.s32.totalorder %s142, %s143
      %p155 = scmp.eq.s32.totalorder %s30, 5
      %p156 = por %p154, %p155
      %p158 = scmp.ne.s32.totalorder %s143, %s157
      %p159 = scmp.eq.s32.totalorder %s30, 0
      %p160 = por %p158, %p159
      %s162 = sadd.s32 %s161, 1
      %p165 = scmp.eq.s32.totalorder %s24, 5
      %p166 = scmp.ne.s32.totalorder %s161, %s163
      %p167 = scmp.eq.s32.totalorder %s24, 0
      %p168 = por %p166, %p167
      %p169 = scmp.ne.s32.totalorder %s161, %s163
      %p170 = scmp.eq.s32.totalorder %s29, 5
      %p171 = por %p169, %p170
      %p172 = scmp.ne.s32.totalorder %s163, %s164
      %p173 = scmp.eq.s32.totalorder %s29, 0
      %p174 = por %p172, %p173
      %p175 = scmp.ne.s32.totalorder %s163, %s164
      %p176 = scmp.eq.s32.totalorder %s30, 5
      %p177 = por %p175, %p176
      %p179 = scmp.ne.s32.totalorder %s164, %s178
      %p180 = scmp.eq.s32.totalorder %s30, 0
      %p181 = por %p179, %p180
      %s182 = ssub.s32 %s31, %s43
      %p183 = scmp.eq.s32.totalorder %s182, 0
      %s185 = sadd.s32 %s184, 1
      %s186 = scalar_select %p183, %s184, %s185
      %p189 = pneg %p183
      %p190 = scmp.eq.s32.totalorder %s24, 5
      %p191 = por %p189, %p190
      %p192 = scmp.ne.s32.totalorder %s184, %s187
      %p193 = scmp.eq.s32.totalorder %s24, 0
      %p194 = por %p192, %p193
      %p195 = scmp.ne.s32.totalorder %s184, %s187
      %p196 = scmp.eq.s32.totalorder %s29, 5
      %p197 = por %p195, %p196
      %p198 = scmp.ne.s32.totalorder %s187, %s188
      %p199 = scmp.eq.s32.totalorder %s29, 0
      %p200 = por %p198, %p199
      %p201 = scmp.ne.s32.totalorder %s187, %s188
      %p202 = scmp.eq.s32.totalorder %s30, 5
      %p203 = por %p201, %p202
      %p205 = scmp.ne.s32.totalorder %s188, %s204
      %p206 = scmp.eq.s32.totalorder %s30, 0
      %p207 = por %p205, %p206
      %s208 = ssub.s32 %s31, %s43
      %p209 = scmp.eq.s32.totalorder %s208, 0
      %s211 = sadd.s32 %s210, 1
      %s212 = scalar_select %p209, %s210, %s211
      %p215 = pneg %p209
      %p216 = scmp.eq.s32.totalorder %s24, 5
      %p217 = por %p215, %p216
      %p218 = scmp.ne.s32.totalorder %s210, %s213
      %p219 = scmp.eq.s32.totalorder %s24, 0
      %p220 = por %p218, %p219
      %p221 = scmp.ne.s32.totalorder %s210, %s213
      %p222 = scmp.eq.s32.totalorder %s29, 5
      %p223 = por %p221, %p222
      %p224 = scmp.ne.s32.totalorder %s213, %s214
      %p225 = scmp.eq.s32.totalorder %s29, 0
      %p226 = por %p224, %p225
      %p227 = scmp.ne.s32.totalorder %s213, %s214
      %p228 = scmp.eq.s32.totalorder %s30, 5
      %p229 = por %p227, %p228
      %p231 = scmp.ne.s32.totalorder %s214, %s230
      %p232 = scmp.eq.s32.totalorder %s30, 0
      %p233 = por %p231, %p232
      %p234 = scmp.le.s32.totalorder 1, %s24
      %p235 = scmp.lt.s32.totalorder %s24, 7
      %p236 = pnand %p234, %p235
      %p237 = pneg %p236
      // Predicated region
      $region9: #{tpu_custom_call.1} parent=5 // pred_check
        _
      $region10: #{tpu_custom_call.1} parent=5 // pred_check_branch
        %239 = sbr.rel (%p236) target = $region12
      $region11: #{tpu_custom_call.1} parent=5 // pred_region
        %s240 = ssub.s32 %s24, 1
        // Predicated region
        $region13: #{tpu_custom_call.1} parent=11 // pred_check
          %p241 = pneg %p111
        $region14: #{tpu_custom_call.1} parent=11 // pred_check_branch
          %243 = sbr.rel (%p241) target = $region16
        $region15: #{tpu_custom_call.1} parent=11 // pred_region
          %245 = vsyncadd [#allocation7], 0
          %s246 = sshll.u32 %s2, 4
          %s247 = int_to_ptr.hbm [resolvable:$true] %s246
          %s248 = sshll.u32 [#allocation8], 4
          %s249 = int_to_ptr.vmem [resolvable:$true] %s248
          %254 = dma.hbm_to_vmem [thread:$0]  %s247, 43008, %s249, [#allocation7], 448, 448, 28
        $region16: #{tpu_custom_call.1} parent=11 // pred_fallthru
          _
        // Predicated region
        $region17: #{tpu_custom_call.1} parent=11 // pred_check
          %p255 = pneg %p132
        $region18: #{tpu_custom_call.1} parent=11 // pred_check_branch
          %257 = sbr.rel (%p255) target = $region20
        $region19: #{tpu_custom_call.1} parent=11 // pred_region
          %259 = vsyncadd [#allocation10], 0
          %s261 = sshll.u32 %s3, 4
          %s262 = int_to_ptr.hbm [resolvable:$true] %s261
          %s263 = sshll.u32 [#allocation9], 4
          %s264 = int_to_ptr.vmem [resolvable:$true] %s263
          %266 = dma.hbm_to_vmem [thread:$0]  %s262, 112, %s264, [#allocation10]
        $region20: #{tpu_custom_call.1} parent=11 // pred_fallthru
          _
        // Predicated region
        $region21: #{tpu_custom_call.1} parent=11 // pred_check
          %p267 = pneg %p153
        $region22: #{tpu_custom_call.1} parent=11 // pred_check_branch
          %269 = sbr.rel (%p267) target = $region24
        $region23: #{tpu_custom_call.1} parent=11 // pred_region
          %271 = vsyncadd [#allocation10], 0
          %s272 = sshll.u32 %s4, 4
          %s273 = int_to_ptr.hbm [resolvable:$true] %s272
          %s274 = sshll.u32 [#allocation11], 4
          %s275 = int_to_ptr.vmem [resolvable:$true] %s274
          %280 = dma.hbm_to_vmem [thread:$0]  %s273, 6144, %s275, [#allocation10], 64, 64, 4
        $region24: #{tpu_custom_call.1} parent=11 // pred_fallthru
          _
        // Predicated region
        $region25: #{tpu_custom_call.1} parent=11 // pred_check
          %p281 = pneg %p174
        $region26: #{tpu_custom_call.1} parent=11 // pred_check_branch
          %283 = sbr.rel (%p281) target = $region28
        $region27: #{tpu_custom_call.1} parent=11 // pred_region
          %285 = vsyncadd [#allocation13], 0
          %s287 = sshll.u32 %s5, 4
          %s288 = int_to_ptr.hbm [resolvable:$true] %s287
          %s289 = sshll.u32 [#allocation12], 4
          %s290 = int_to_ptr.vmem [resolvable:$true] %s289
          %292 = dma.hbm_to_vmem [thread:$0]  %s288, 16, %s290, [#allocation13]
        $region28: #{tpu_custom_call.1} parent=11 // pred_fallthru
          _
      $region12: #{tpu_custom_call.1} parent=5 // pred_fallthru
        _
      %p293 = scmp.lt.s32.totalorder %s24, 6
      // Predicated region
      $region29: #{tpu_custom_call.1} parent=5 // pred_check
        %p294 = pneg %p293
      $region30: #{tpu_custom_call.1} parent=5 // pred_check_branch
        %296 = sbr.rel (%p294) target = $region32
      $region31: #{tpu_custom_call.1} parent=5 // pred_region
        // Predicated region
        $region33: #{tpu_custom_call.1} parent=31 // pred_check
          %p297 = pneg %p58
        $region34: #{tpu_custom_call.1} parent=31 // pred_check_branch
          %299 = sbr.rel (%p297) target = $region36
        $region35: #{tpu_custom_call.1} parent=31 // pred_region
          %s300 = sand.u32 %s48, 1
          %s301 = scalar_lea.sflag [#allocation4], %s300
          %s302 = sand.u32 %s48, 1
          %s303 = smul.addr %s302, 16
          %s304 = scalar_lea.vmem [#allocation3], %s303
          %s305 = smul.u32 4, %s32
          %307 = vsyncadd %s301, 0
          %s308 = smul.addr %s31, 24
          %s309 = sadd.s32 %s305, %s308
          %s310 = smul.addr %s309, 4
          %s311 = scalar_lea.hbm %s0, %s310
          %s313 = sshll.u32 %s311, 4
          %s314 = int_to_ptr.hbm [resolvable:$true] %s313
          %s315 = sshll.u32 %s304, 4
          %s316 = int_to_ptr.vmem [resolvable:$true] %s315
          %318 = dma.hbm_to_vmem [thread:$0]  %s314, 256, %s316, %s301
        $region36: #{tpu_custom_call.1} parent=31 // pred_fallthru
          _
        // Predicated region
        $region37: #{tpu_custom_call.1} parent=31 // pred_check
          %p319 = pneg %p84
        $region38: #{tpu_custom_call.1} parent=31 // pred_check_branch
          %321 = sbr.rel (%p319) target = $region40
        $region39: #{tpu_custom_call.1} parent=31 // pred_region
          %s322 = sand.u32 %s24, 1
          %s323 = scalar_lea.sflag [#allocation7], %s322
          %s324 = sand.u32 %s74, 1
          %s325 = smul.addr %s324, 1536
          %s326 = scalar_lea.vmem [#allocation6], %s325
          %s327 = smul.u32 64, %s32
          %329 = vsyncadd %s323, 0
          %s330 = smul.addr %s327, 6
          %s331 = smul.addr %s330, 4
          %s332 = scalar_lea.hbm %s1, %s331
          %s333 = sshll.u32 %s332, 4
          %s334 = int_to_ptr.hbm [resolvable:$true] %s333
          %s335 = sshll.u32 %s326, 4
          %s336 = int_to_ptr.vmem [resolvable:$true] %s335
          %341 = dma.hbm_to_vmem [thread:$0]  %s334, 24576, %s336, %s323, 384, 384, 24
        $region40: #{tpu_custom_call.1} parent=31 // pred_fallthru
          _
      $region32: #{tpu_custom_call.1} parent=5 // pred_fallthru
        _
      %p342 = scmp.le.s32.totalorder 1, %s24
      %p343 = scmp.lt.s32.totalorder %s24, 7
      %p344 = pnand %p342, %p343
      %p345 = pneg %p344
      // Predicated region
      $region41: #{tpu_custom_call.1} parent=5 // pred_check
        _
      $region42: #{tpu_custom_call.1} parent=5 // pred_check_branch
        %347 = sbr.rel (%p344) target = $region44
      $region43: #{tpu_custom_call.1} parent=5 // pred_region
        %s348 = ssub.s32 %s24, 1
        %s349 = sand.u32 %s51, 1
        %s350 = scalar_lea.sflag [#allocation4], %s349
        %s351 = sand.u32 %s51, 1
        %s352 = smul.addr %s351, 16
        %s353 = scalar_lea.vmem [#allocation3], %s352
        // Predicated region
        $region45: #{tpu_custom_call.1} parent=43 // pred_check
          %p354 = pneg %p64
        $region46: #{tpu_custom_call.1} parent=43 // pred_check_branch
          %356 = sbr.rel (%p354) target = $region48
        $region47: #{tpu_custom_call.1} parent=43 // pred_region
          %358 = dma.done %s350, 256
        $region48: #{tpu_custom_call.1} parent=43 // pred_fallthru
          _
        %s359 = sand.u32 %s29, 1
        %s360 = scalar_lea.sflag [#allocation7], %s359
        %s361 = sand.u32 %s77, 1
        %s362 = smul.addr %s361, 1536
        %s363 = scalar_lea.vmem [#allocation6], %s362
        // Predicated region
        $region49: #{tpu_custom_call.1} parent=43 // pred_check
          %p364 = pneg %p90
        $region50: #{tpu_custom_call.1} parent=43 // pred_check_branch
          %366 = sbr.rel (%p364) target = $region52
        $region51: #{tpu_custom_call.1} parent=43 // pred_region
          %368 = dma.done %s360, 24576
        $region52: #{tpu_custom_call.1} parent=43 // pred_fallthru
          _
        // Predicated region
        $region53: #{tpu_custom_call.1} parent=43 // pred_check
          %p369 = pneg %p111
        $region54: #{tpu_custom_call.1} parent=43 // pred_check_branch
          %371 = sbr.rel (%p369) target = $region56
        $region55: #{tpu_custom_call.1} parent=43 // pred_region
          %373 = dma.done [#allocation7], 43008
        $region56: #{tpu_custom_call.1} parent=43 // pred_fallthru
          _
        // Predicated region
        $region57: #{tpu_custom_call.1} parent=43 // pred_check
          %p374 = pneg %p132
        $region58: #{tpu_custom_call.1} parent=43 // pred_check_branch
          %376 = sbr.rel (%p374) target = $region60
        $region59: #{tpu_custom_call.1} parent=43 // pred_region
          %378 = dma.done [#allocation10], 112
        $region60: #{tpu_custom_call.1} parent=43 // pred_fallthru
          _
        // Predicated region
        $region61: #{tpu_custom_call.1} parent=43 // pred_check
          %p379 = pneg %p153
        $region62: #{tpu_custom_call.1} parent=43 // pred_check_branch
          %381 = sbr.rel (%p379) target = $region64
        $region63: #{tpu_custom_call.1} parent=43 // pred_region
          %383 = dma.done [#allocation10], 6144
        $region64: #{tpu_custom_call.1} parent=43 // pred_fallthru
          _
        // Predicated region
        $region65: #{tpu_custom_call.1} parent=43 // pred_check
          %p384 = pneg %p174
        $region66: #{tpu_custom_call.1} parent=43 // pred_check_branch
          %386 = sbr.rel (%p384) target = $region68
        $region67: #{tpu_custom_call.1} parent=43 // pred_region
          %388 = dma.done [#allocation13], 16
        $region68: #{tpu_custom_call.1} parent=43 // pred_fallthru
          _
        %s389 = sand.u32 %s51, 1
        %s390 = scalar_lea.sflag [#allocation4], %s389
        %s391 = sand.u32 %s51, 1
        %s392 = smul.addr %s391, 16
        %s393 = scalar_lea.vmem [#allocation3], %s392
        %p394 = pneg %p64
        %p395 = pneg %p61
        %s396 = sand.u32 %s29, 1
        %s397 = scalar_lea.sflag [#allocation7], %s396
        %s398 = sand.u32 %s77, 1
        %s399 = smul.addr %s398, 1536
        %s400 = scalar_lea.vmem [#allocation6], %s399
        %p401 = pneg %p90
        %p402 = pneg %p87
        %p403 = pneg %p111
        %p404 = pneg %p108
        %p405 = pneg %p132
        %p406 = pneg %p129
        %p407 = pneg %p153
        %p408 = pneg %p150
        %p409 = pneg %p174
        %p410 = pneg %p171
        %p411 = pneg %p200
        %p412 = pneg %p197
        %p413 = pneg %p226
        %p414 = pneg %p223
        %s415 = smul.u32 4, %s34
        %s416 = smul.u32 64, %s34
        %p417 = scmp.eq.s32.totalorder %s34, 0
        // Predicated region
        $region69: #{tpu_custom_call.1} parent=43 // pred_check
          %p418 = pneg %p417
        $region70: #{tpu_custom_call.1} parent=43 // pred_check_branch
          %420 = sbr.rel (%p418) target = $region72
        $region71: #{tpu_custom_call.1} parent=43 // pred_region
          %421 = vst [vmem:[#allocation2] sm:$0xff] 0.0
          %422 = vst [vmem:[#allocation2 + $0x8] sm:$0xff] 0.0
          %423 = vst [vmem:[#allocation2 + $0x10] sm:$0xff] 0.0
          %424 = vst [vmem:[#allocation2 + $0x18] sm:$0xff] 0.0
          %425 = vst [vmem:[#allocation2 + $0x20] sm:$0xff] 0.0
          %426 = vst [vmem:[#allocation2 + $0x28] sm:$0xff] 0.0
        $region72: #{tpu_custom_call.1} parent=43 // pred_fallthru
          _
        %v427 = vld [vmem:[#allocation2] sm:$0xff]
        %v428 = vld [vmem:[#allocation2 + $0x8] sm:$0xff]
        %v429 = vld [vmem:[#allocation2 + $0x10] sm:$0xff]
        %v430 = vld [vmem:[#allocation2 + $0x18] sm:$0xff]
        %v431 = vld [vmem:[#allocation2 + $0x20] sm:$0xff]
        %v432 = vld [vmem:[#allocation2 + $0x28] sm:$0xff]
        %v433 = vld [vmem:[%s353] sm:$0xff]
        %v434 = vld [vmem:[%s353 + $0x8] sm:$0xff]
        %v435 = vld [vmem:[%s363] sm:$0xff]
        %v436 = vld [vmem:[%s363 + $0x8] sm:$0xff]
        %v437 = vld [vmem:[%s363 + $0x10] sm:$0xff]
        %v438 = vld [vmem:[%s363 + $0x18] sm:$0xff]
        %v439 = vld [vmem:[%s363 + $0x20] sm:$0xff]
        %v440 = vld [vmem:[%s363 + $0x28] sm:$0xff]
        %v441 = vld [vmem:[%s363 + $0x30] sm:$0xff]
        %v442 = vld [vmem:[%s363 + $0x38] sm:$0xff]
        %v443 = vld [vmem:[%s363 + $0x40] sm:$0xff]
        %v444 = vld [vmem:[%s363 + $0x48] sm:$0xff]
        %v445 = vld [vmem:[%s363 + $0x50] sm:$0xff]
        %v446 = vld [vmem:[%s363 + $0x58] sm:$0xff]
        %v447 = vld [vmem:[%s363 + $0x60] sm:$0xff]
        %v448 = vld [vmem:[%s363 + $0x68] sm:$0xff]
        %v449 = vld [vmem:[%s363 + $0x70] sm:$0xff]
        %v450 = vld [vmem:[%s363 + $0x78] sm:$0xff]
        %v451 = vld [vmem:[%s363 + $0x80] sm:$0xff]
        %v452 = vld [vmem:[%s363 + $0x88] sm:$0xff]
        %v453 = vld [vmem:[%s363 + $0x90] sm:$0xff]
        %v454 = vld [vmem:[%s363 + $0x98] sm:$0xff]
        %v455 = vld [vmem:[%s363 + $0xa0] sm:$0xff]
        %v456 = vld [vmem:[%s363 + $0xa8] sm:$0xff]
        %v457 = vld [vmem:[%s363 + $0xb0] sm:$0xff]
        %v458 = vld [vmem:[%s363 + $0xb8] sm:$0xff]
        %v459 = vld [vmem:[%s363 + $0xc0] sm:$0xff]
        %v460 = vld [vmem:[%s363 + $0xc8] sm:$0xff]
        %v461 = vld [vmem:[%s363 + $0xd0] sm:$0xff]
        %v462 = vld [vmem:[%s363 + $0xd8] sm:$0xff]
        %v463 = vld [vmem:[%s363 + $0xe0] sm:$0xff]
        %v464 = vld [vmem:[%s363 + $0xe8] sm:$0xff]
        %v465 = vld [vmem:[%s363 + $0xf0] sm:$0xff]
        %v466 = vld [vmem:[%s363 + $0xf8] sm:$0xff]
        %v467 = vld [vmem:[%s363 + $0x100] sm:$0xff]
        %v468 = vld [vmem:[%s363 + $0x108] sm:$0xff]
        %v469 = vld [vmem:[%s363 + $0x110] sm:$0xff]
        %v470 = vld [vmem:[%s363 + $0x118] sm:$0xff]
        %v471 = vld [vmem:[%s363 + $0x120] sm:$0xff]
        %v472 = vld [vmem:[%s363 + $0x128] sm:$0xff]
        %v473 = vld [vmem:[%s363 + $0x130] sm:$0xff]
        %v474 = vld [vmem:[%s363 + $0x138] sm:$0xff]
        %v475 = vld [vmem:[%s363 + $0x140] sm:$0xff]
        %v476 = vld [vmem:[%s363 + $0x148] sm:$0xff]
        %v477 = vld [vmem:[%s363 + $0x150] sm:$0xff]
        %v478 = vld [vmem:[%s363 + $0x158] sm:$0xff]
        %v479 = vld [vmem:[%s363 + $0x160] sm:$0xff]
        %v480 = vld [vmem:[%s363 + $0x168] sm:$0xff]
        %v481 = vld [vmem:[%s363 + $0x170] sm:$0xff]
        %v482 = vld [vmem:[%s363 + $0x178] sm:$0xff]
        %v483 = vld [vmem:[%s363 + $0x180] sm:$0xff]
        %v484 = vld [vmem:[%s363 + $0x188] sm:$0xff]
        %v485 = vld [vmem:[%s363 + $0x190] sm:$0xff]
        %v486 = vld [vmem:[%s363 + $0x198] sm:$0xff]
        %v487 = vld [vmem:[%s363 + $0x1a0] sm:$0xff]
        %v488 = vld [vmem:[%s363 + $0x1a8] sm:$0xff]
        %v489 = vld [vmem:[%s363 + $0x1b0] sm:$0xff]
        %v490 = vld [vmem:[%s363 + $0x1b8] sm:$0xff]
        %v491 = vld [vmem:[%s363 + $0x1c0] sm:$0xff]
        %v492 = vld [vmem:[%s363 + $0x1c8] sm:$0xff]
        %v493 = vld [vmem:[%s363 + $0x1d0] sm:$0xff]
        %v494 = vld [vmem:[%s363 + $0x1d8] sm:$0xff]
        %v495 = vld [vmem:[%s363 + $0x1e0] sm:$0xff]
        %v496 = vld [vmem:[%s363 + $0x1e8] sm:$0xff]
        %v497 = vld [vmem:[%s363 + $0x1f0] sm:$0xff]
        %v498 = vld [vmem:[%s363 + $0x1f8] sm:$0xff]
        %v499 = vld [vmem:[%s363 + $0x200] sm:$0xff]
        %v500 = vld [vmem:[%s363 + $0x208] sm:$0xff]
        %v501 = vld [vmem:[%s363 + $0x210] sm:$0xff]
        %v502 = vld [vmem:[%s363 + $0x218] sm:$0xff]
        %v503 = vld [vmem:[%s363 + $0x220] sm:$0xff]
        %v504 = vld [vmem:[%s363 + $0x228] sm:$0xff]
        %v505 = vld [vmem:[%s363 + $0x230] sm:$0xff]
        %v506 = vld [vmem:[%s363 + $0x238] sm:$0xff]
        %v507 = vld [vmem:[%s363 + $0x240] sm:$0xff]
        %v508 = vld [vmem:[%s363 + $0x248] sm:$0xff]
        %v509 = vld [vmem:[%s363 + $0x250] sm:$0xff]
        %v510 = vld [vmem:[%s363 + $0x258] sm:$0xff]
        %v511 = vld [vmem:[%s363 + $0x260] sm:$0xff]
        %v512 = vld [vmem:[%s363 + $0x268] sm:$0xff]
        %v513 = vld [vmem:[%s363 + $0x270] sm:$0xff]
        %v514 = vld [vmem:[%s363 + $0x278] sm:$0xff]
        %v515 = vld [vmem:[%s363 + $0x280] sm:$0xff]
        %v516 = vld [vmem:[%s363 + $0x288] sm:$0xff]
        %v517 = vld [vmem:[%s363 + $0x290] sm:$0xff]
        %v518 = vld [vmem:[%s363 + $0x298] sm:$0xff]
        %v519 = vld [vmem:[%s363 + $0x2a0] sm:$0xff]
        %v520 = vld [vmem:[%s363 + $0x2a8] sm:$0xff]
        %v521 = vld [vmem:[%s363 + $0x2b0] sm:$0xff]
        %v522 = vld [vmem:[%s363 + $0x2b8] sm:$0xff]
        %v523 = vld [vmem:[%s363 + $0x2c0] sm:$0xff]
        %v524 = vld [vmem:[%s363 + $0x2c8] sm:$0xff]
        %v525 = vld [vmem:[%s363 + $0x2d0] sm:$0xff]
        %v526 = vld [vmem:[%s363 + $0x2d8] sm:$0xff]
        %v527 = vld [vmem:[%s363 + $0x2e0] sm:$0xff]
        %v528 = vld [vmem:[%s363 + $0x2e8] sm:$0xff]
        %v529 = vld [vmem:[%s363 + $0x2f0] sm:$0xff]
        %v530 = vld [vmem:[%s363 + $0x2f8] sm:$0xff]
        %v531 = vld [vmem:[%s363 + $0x300] sm:$0xff]
        %v532 = vld [vmem:[%s363 + $0x308] sm:$0xff]
        %v533 = vld [vmem:[%s363 + $0x310] sm:$0xff]
        %v534 = vld [vmem:[%s363 + $0x318] sm:$0xff]
        %v535 = vld [vmem:[%s363 + $0x320] sm:$0xff]
        %v536 = vld [vmem:[%s363 + $0x328] sm:$0xff]
        %v537 = vld [vmem:[%s363 + $0x330] sm:$0xff]
        %v538 = vld [vmem:[%s363 + $0x338] sm:$0xff]
        %v539 = vld [vmem:[%s363 + $0x340] sm:$0xff]
        %v540 = vld [vmem:[%s363 + $0x348] sm:$0xff]
        %v541 = vld [vmem:[%s363 + $0x350] sm:$0xff]
        %v542 = vld [vmem:[%s363 + $0x358] sm:$0xff]
        %v543 = vld [vmem:[%s363 + $0x360] sm:$0xff]
        %v544 = vld [vmem:[%s363 + $0x368] sm:$0xff]
        %v545 = vld [vmem:[%s363 + $0x370] sm:$0xff]
        %v546 = vld [vmem:[%s363 + $0x378] sm:$0xff]
        %v547 = vld [vmem:[%s363 + $0x380] sm:$0xff]
        %v548 = vld [vmem:[%s363 + $0x388] sm:$0xff]
        %v549 = vld [vmem:[%s363 + $0x390] sm:$0xff]
        %v550 = vld [vmem:[%s363 + $0x398] sm:$0xff]
        %v551 = vld [vmem:[%s363 + $0x3a0] sm:$0xff]
        %v552 = vld [vmem:[%s363 + $0x3a8] sm:$0xff]
        %v553 = vld [vmem:[%s363 + $0x3b0] sm:$0xff]
        %v554 = vld [vmem:[%s363 + $0x3b8] sm:$0xff]
        %v555 = vld [vmem:[%s363 + $0x3c0] sm:$0xff]
        %v556 = vld [vmem:[%s363 + $0x3c8] sm:$0xff]
        %v557 = vld [vmem:[%s363 + $0x3d0] sm:$0xff]
        %v558 = vld [vmem:[%s363 + $0x3d8] sm:$0xff]
        %v559 = vld [vmem:[%s363 + $0x3e0] sm:$0xff]
        %v560 = vld [vmem:[%s363 + $0x3e8] sm:$0xff]
        %v561 = vld [vmem:[%s363 + $0x3f0] sm:$0xff]
        %v562 = vld [vmem:[%s363 + $0x3f8] sm:$0xff]
        %v563 = vld [vmem:[%s363 + $0x400] sm:$0xff]
        %v564 = vld [vmem:[%s363 + $0x408] sm:$0xff]
        %v565 = vld [vmem:[%s363 + $0x410] sm:$0xff]
        %v566 = vld [vmem:[%s363 + $0x418] sm:$0xff]
        %v567 = vld [vmem:[%s363 + $0x420] sm:$0xff]
        %v568 = vld [vmem:[%s363 + $0x428] sm:$0xff]
        %v569 = vld [vmem:[%s363 + $0x430] sm:$0xff]
        %v570 = vld [vmem:[%s363 + $0x438] sm:$0xff]
        %v571 = vld [vmem:[%s363 + $0x440] sm:$0xff]
        %v572 = vld [vmem:[%s363 + $0x448] sm:$0xff]
        %v573 = vld [vmem:[%s363 + $0x450] sm:$0xff]
        %v574 = vld [vmem:[%s363 + $0x458] sm:$0xff]
        %v575 = vld [vmem:[%s363 + $0x460] sm:$0xff]
        %v576 = vld [vmem:[%s363 + $0x468] sm:$0xff]
        %v577 = vld [vmem:[%s363 + $0x470] sm:$0xff]
        %v578 = vld [vmem:[%s363 + $0x478] sm:$0xff]
        %v579 = vld [vmem:[%s363 + $0x480] sm:$0xff]
        %v580 = vld [vmem:[%s363 + $0x488] sm:$0xff]
        %v581 = vld [vmem:[%s363 + $0x490] sm:$0xff]
        %v582 = vld [vmem:[%s363 + $0x498] sm:$0xff]
        %v583 = vld [vmem:[%s363 + $0x4a0] sm:$0xff]
        %v584 = vld [vmem:[%s363 + $0x4a8] sm:$0xff]
        %v585 = vld [vmem:[%s363 + $0x4b0] sm:$0xff]
        %v586 = vld [vmem:[%s363 + $0x4b8] sm:$0xff]
        %v587 = vld [vmem:[%s363 + $0x4c0] sm:$0xff]
        %v588 = vld [vmem:[%s363 + $0x4c8] sm:$0xff]
        %v589 = vld [vmem:[%s363 + $0x4d0] sm:$0xff]
        %v590 = vld [vmem:[%s363 + $0x4d8] sm:$0xff]
        %v591 = vld [vmem:[%s363 + $0x4e0] sm:$0xff]
        %v592 = vld [vmem:[%s363 + $0x4e8] sm:$0xff]
        %v593 = vld [vmem:[%s363 + $0x4f0] sm:$0xff]
        %v594 = vld [vmem:[%s363 + $0x4f8] sm:$0xff]
        %v595 = vld [vmem:[%s363 + $0x500] sm:$0xff]
        %v596 = vld [vmem:[%s363 + $0x508] sm:$0xff]
        %v597 = vld [vmem:[%s363 + $0x510] sm:$0xff]
        %v598 = vld [vmem:[%s363 + $0x518] sm:$0xff]
        %v599 = vld [vmem:[%s363 + $0x520] sm:$0xff]
        %v600 = vld [vmem:[%s363 + $0x528] sm:$0xff]
        %v601 = vld [vmem:[%s363 + $0x530] sm:$0xff]
        %v602 = vld [vmem:[%s363 + $0x538] sm:$0xff]
        %v603 = vld [vmem:[%s363 + $0x540] sm:$0xff]
        %v604 = vld [vmem:[%s363 + $0x548] sm:$0xff]
        %v605 = vld [vmem:[%s363 + $0x550] sm:$0xff]
        %v606 = vld [vmem:[%s363 + $0x558] sm:$0xff]
        %v607 = vld [vmem:[%s363 + $0x560] sm:$0xff]
        %v608 = vld [vmem:[%s363 + $0x568] sm:$0xff]
        %v609 = vld [vmem:[%s363 + $0x570] sm:$0xff]
        %v610 = vld [vmem:[%s363 + $0x578] sm:$0xff]
        %v611 = vld [vmem:[%s363 + $0x580] sm:$0xff]
        %v612 = vld [vmem:[%s363 + $0x588] sm:$0xff]
        %v613 = vld [vmem:[%s363 + $0x590] sm:$0xff]
        %v614 = vld [vmem:[%s363 + $0x598] sm:$0xff]
        %v615 = vld [vmem:[%s363 + $0x5a0] sm:$0xff]
        %v616 = vld [vmem:[%s363 + $0x5a8] sm:$0xff]
        %v617 = vld [vmem:[%s363 + $0x5b0] sm:$0xff]
        %v618 = vld [vmem:[%s363 + $0x5b8] sm:$0xff]
        %v619 = vld [vmem:[%s363 + $0x5c0] sm:$0xff]
        %v620 = vld [vmem:[%s363 + $0x5c8] sm:$0xff]
        %v621 = vld [vmem:[%s363 + $0x5d0] sm:$0xff]
        %v622 = vld [vmem:[%s363 + $0x5d8] sm:$0xff]
        %v623 = vld [vmem:[%s363 + $0x5e0] sm:$0xff]
        %v624 = vld [vmem:[%s363 + $0x5e8] sm:$0xff]
        %v625 = vld [vmem:[%s363 + $0x5f0] sm:$0xff]
        %v626 = vld [vmem:[%s363 + $0x5f8] sm:$0xff]
        %v629 = vunpack.c.l.b16 %v433
        %v630 = vunpack.c.h.b16 %v433
        %v631 = vunpack.c.l.b16 %v434
        %v632 = vunpack.c.h.b16 %v434
        %v633 = vpack.c.b16 %v629, %v629
        %v634 = vpack.c.b16 %v630, %v630
        %v635 = vpack.c.b16 %v631, %v631
        %v636 = vpack.c.b16 %v632, %v632
        %v833 = vunpack.c.l.b16 %v435
        %v834 = vunpack.c.h.b16 %v435
        %v835 = vunpack.c.l.b16 %v436
        %v836 = vunpack.c.h.b16 %v436
        %v837 = vunpack.c.l.b16 %v437
        %v838 = vunpack.c.h.b16 %v437
        %v839 = vunpack.c.l.b16 %v438
        %v840 = vunpack.c.h.b16 %v438
        %v841 = vunpack.c.l.b16 %v439
        %v842 = vunpack.c.h.b16 %v439
        %v843 = vunpack.c.l.b16 %v440
        %v844 = vunpack.c.h.b16 %v440
        %v845 = vunpack.c.l.b16 %v441
        %v846 = vunpack.c.h.b16 %v441
        %v847 = vunpack.c.l.b16 %v442
        %v848 = vunpack.c.h.b16 %v442
        %v849 = vunpack.c.l.b16 %v443
        %v850 = vunpack.c.h.b16 %v443
        %v851 = vunpack.c.l.b16 %v444
        %v852 = vunpack.c.h.b16 %v444
        %v853 = vunpack.c.l.b16 %v445
        %v854 = vunpack.c.h.b16 %v445
        %v855 = vunpack.c.l.b16 %v446
        %v856 = vunpack.c.h.b16 %v446
        %v857 = vunpack.c.l.b16 %v447
        %v858 = vunpack.c.h.b16 %v447
        %v859 = vunpack.c.l.b16 %v448
        %v860 = vunpack.c.h.b16 %v448
        %v861 = vunpack.c.l.b16 %v449
        %v862 = vunpack.c.h.b16 %v449
        %v863 = vunpack.c.l.b16 %v450
        %v864 = vunpack.c.h.b16 %v450
        %v865 = vunpack.c.l.b16 %v451
        %v866 = vunpack.c.h.b16 %v451
        %v867 = vunpack.c.l.b16 %v452
        %v868 = vunpack.c.h.b16 %v452
        %v869 = vunpack.c.l.b16 %v453
        %v870 = vunpack.c.h.b16 %v453
        %v871 = vunpack.c.l.b16 %v454
        %v872 = vunpack.c.h.b16 %v454
        %v873 = vunpack.c.l.b16 %v455
        %v874 = vunpack.c.h.b16 %v455
        %v875 = vunpack.c.l.b16 %v456
        %v876 = vunpack.c.h.b16 %v456
        %v877 = vunpack.c.l.b16 %v457
        %v878 = vunpack.c.h.b16 %v457
        %v879 = vunpack.c.l.b16 %v458
        %v880 = vunpack.c.h.b16 %v458
        %v881 = vunpack.c.l.b16 %v459
        %v882 = vunpack.c.h.b16 %v459
        %v883 = vunpack.c.l.b16 %v460
        %v884 = vunpack.c.h.b16 %v460
        %v885 = vunpack.c.l.b16 %v461
        %v886 = vunpack.c.h.b16 %v461
        %v887 = vunpack.c.l.b16 %v462
        %v888 = vunpack.c.h.b16 %v462
        %v889 = vunpack.c.l.b16 %v463
        %v890 = vunpack.c.h.b16 %v463
        %v891 = vunpack.c.l.b16 %v464
        %v892 = vunpack.c.h.b16 %v464
        %v893 = vunpack.c.l.b16 %v465
        %v894 = vunpack.c.h.b16 %v465
        %v895 = vunpack.c.l.b16 %v466
        %v896 = vunpack.c.h.b16 %v466
        %v897 = vunpack.c.l.b16 %v467
        %v898 = vunpack.c.h.b16 %v467
        %v899 = vunpack.c.l.b16 %v468
        %v900 = vunpack.c.h.b16 %v468
        %v901 = vunpack.c.l.b16 %v469
        %v902 = vunpack.c.h.b16 %v469
        %v903 = vunpack.c.l.b16 %v470
        %v904 = vunpack.c.h.b16 %v470
        %v905 = vunpack.c.l.b16 %v471
        %v906 = vunpack.c.h.b16 %v471
        %v907 = vunpack.c.l.b16 %v472
        %v908 = vunpack.c.h.b16 %v472
        %v909 = vunpack.c.l.b16 %v473
        %v910 = vunpack.c.h.b16 %v473
        %v911 = vunpack.c.l.b16 %v474
        %v912 = vunpack.c.h.b16 %v474
        %v913 = vunpack.c.l.b16 %v475
        %v914 = vunpack.c.h.b16 %v475
        %v915 = vunpack.c.l.b16 %v476
        %v916 = vunpack.c.h.b16 %v476
        %v917 = vunpack.c.l.b16 %v477
        %v918 = vunpack.c.h.b16 %v477
        %v919 = vunpack.c.l.b16 %v478
        %v920 = vunpack.c.h.b16 %v478
        %v921 = vunpack.c.l.b16 %v479
        %v922 = vunpack.c.h.b16 %v479
        %v923 = vunpack.c.l.b16 %v480
        %v924 = vunpack.c.h.b16 %v480
        %v925 = vunpack.c.l.b16 %v481
        %v926 = vunpack.c.h.b16 %v481
        %v927 = vunpack.c.l.b16 %v482
        %v928 = vunpack.c.h.b16 %v482
        %v929 = vunpack.c.l.b16 %v483
        %v930 = vunpack.c.h.b16 %v483
        %v931 = vunpack.c.l.b16 %v484
        %v932 = vunpack.c.h.b16 %v484
        %v933 = vunpack.c.l.b16 %v485
        %v934 = vunpack.c.h.b16 %v485
        %v935 = vunpack.c.l.b16 %v486
        %v936 = vunpack.c.h.b16 %v486
        %v937 = vunpack.c.l.b16 %v487
        %v938 = vunpack.c.h.b16 %v487
        %v939 = vunpack.c.l.b16 %v488
        %v940 = vunpack.c.h.b16 %v488
        %v941 = vunpack.c.l.b16 %v489
        %v942 = vunpack.c.h.b16 %v489
        %v943 = vunpack.c.l.b16 %v490
        %v944 = vunpack.c.h.b16 %v490
        %v945 = vunpack.c.l.b16 %v491
        %v946 = vunpack.c.h.b16 %v491
        %v947 = vunpack.c.l.b16 %v492
        %v948 = vunpack.c.h.b16 %v492
        %v949 = vunpack.c.l.b16 %v493
        %v950 = vunpack.c.h.b16 %v493
        %v951 = vunpack.c.l.b16 %v494
        %v952 = vunpack.c.h.b16 %v494
        %v953 = vunpack.c.l.b16 %v495
        %v954 = vunpack.c.h.b16 %v495
        %v955 = vunpack.c.l.b16 %v496
        %v956 = vunpack.c.h.b16 %v496
        %v957 = vunpack.c.l.b16 %v497
        %v958 = vunpack.c.h.b16 %v497
        %v959 = vunpack.c.l.b16 %v498
        %v960 = vunpack.c.h.b16 %v498
        %v961 = vunpack.c.l.b16 %v499
        %v962 = vunpack.c.h.b16 %v499
        %v963 = vunpack.c.l.b16 %v500
        %v964 = vunpack.c.h.b16 %v500
        %v965 = vunpack.c.l.b16 %v501
        %v966 = vunpack.c.h.b16 %v501
        %v967 = vunpack.c.l.b16 %v502
        %v968 = vunpack.c.h.b16 %v502
        %v969 = vunpack.c.l.b16 %v503
        %v970 = vunpack.c.h.b16 %v503
        %v971 = vunpack.c.l.b16 %v504
        %v972 = vunpack.c.h.b16 %v504
        %v973 = vunpack.c.l.b16 %v505
        %v974 = vunpack.c.h.b16 %v505
        %v975 = vunpack.c.l.b16 %v506
        %v976 = vunpack.c.h.b16 %v506
        %v977 = vunpack.c.l.b16 %v507
        %v978 = vunpack.c.h.b16 %v507
        %v979 = vunpack.c.l.b16 %v508
        %v980 = vunpack.c.h.b16 %v508
        %v981 = vunpack.c.l.b16 %v509
        %v982 = vunpack.c.h.b16 %v509
        %v983 = vunpack.c.l.b16 %v510
        %v984 = vunpack.c.h.b16 %v510
        %v985 = vunpack.c.l.b16 %v511
        %v986 = vunpack.c.h.b16 %v511
        %v987 = vunpack.c.l.b16 %v512
        %v988 = vunpack.c.h.b16 %v512
        %v989 = vunpack.c.l.b16 %v513
        %v990 = vunpack.c.h.b16 %v513
        %v991 = vunpack.c.l.b16 %v514
        %v992 = vunpack.c.h.b16 %v514
        %v993 = vunpack.c.l.b16 %v515
        %v994 = vunpack.c.h.b16 %v515
        %v995 = vunpack.c.l.b16 %v516
        %v996 = vunpack.c.h.b16 %v516
        %v997 = vunpack.c.l.b16 %v517
        %v998 = vunpack.c.h.b16 %v517
        %v999 = vunpack.c.l.b16 %v518
        %v1000 = vunpack.c.h.b16 %v518
        %v1001 = vunpack.c.l.b16 %v519
        %v1002 = vunpack.c.h.b16 %v519
        %v1003 = vunpack.c.l.b16 %v520
        %v1004 = vunpack.c.h.b16 %v520
        %v1005 = vunpack.c.l.b16 %v521
        %v1006 = vunpack.c.h.b16 %v521
        %v1007 = vunpack.c.l.b16 %v522
        %v1008 = vunpack.c.h.b16 %v522
        %v1009 = vunpack.c.l.b16 %v523
        %v1010 = vunpack.c.h.b16 %v523
        %v1011 = vunpack.c.l.b16 %v524
        %v1012 = vunpack.c.h.b16 %v524
        %v1013 = vunpack.c.l.b16 %v525
        %v1014 = vunpack.c.h.b16 %v525
        %v1015 = vunpack.c.l.b16 %v526
        %v1016 = vunpack.c.h.b16 %v526
        %v1017 = vunpack.c.l.b16 %v527
        %v1018 = vunpack.c.h.b16 %v527
        %v1019 = vunpack.c.l.b16 %v528
        %v1020 = vunpack.c.h.b16 %v528
        %v1021 = vunpack.c.l.b16 %v529
        %v1022 = vunpack.c.h.b16 %v529
        %v1023 = vunpack.c.l.b16 %v530
        %v1024 = vunpack.c.h.b16 %v530
        %v1025 = vunpack.c.l.b16 %v531
        %v1026 = vunpack.c.h.b16 %v531
        %v1027 = vunpack.c.l.b16 %v532
        %v1028 = vunpack.c.h.b16 %v532
        %v1029 = vunpack.c.l.b16 %v533
        %v1030 = vunpack.c.h.b16 %v533
        %v1031 = vunpack.c.l.b16 %v534
        %v1032 = vunpack.c.h.b16 %v534
        %v1033 = vunpack.c.l.b16 %v535
        %v1034 = vunpack.c.h.b16 %v535
        %v1035 = vunpack.c.l.b16 %v536
        %v1036 = vunpack.c.h.b16 %v536
        %v1037 = vunpack.c.l.b16 %v537
        %v1038 = vunpack.c.h.b16 %v537
        %v1039 = vunpack.c.l.b16 %v538
        %v1040 = vunpack.c.h.b16 %v538
        %v1041 = vunpack.c.l.b16 %v539
        %v1042 = vunpack.c.h.b16 %v539
        %v1043 = vunpack.c.l.b16 %v540
        %v1044 = vunpack.c.h.b16 %v540
        %v1045 = vunpack.c.l.b16 %v541
        %v1046 = vunpack.c.h.b16 %v541
        %v1047 = vunpack.c.l.b16 %v542
        %v1048 = vunpack.c.h.b16 %v542
        %v1049 = vunpack.c.l.b16 %v543
        %v1050 = vunpack.c.h.b16 %v543
        %v1051 = vunpack.c.l.b16 %v544
        %v1052 = vunpack.c.h.b16 %v544
        %v1053 = vunpack.c.l.b16 %v545
        %v1054 = vunpack.c.h.b16 %v545
        %v1055 = vunpack.c.l.b16 %v546
        %v1056 = vunpack.c.h.b16 %v546
        %v1057 = vunpack.c.l.b16 %v547
        %v1058 = vunpack.c.h.b16 %v547
        %v1059 = vunpack.c.l.b16 %v548
        %v1060 = vunpack.c.h.b16 %v548
        %v1061 = vunpack.c.l.b16 %v549
        %v1062 = vunpack.c.h.b16 %v549
        %v1063 = vunpack.c.l.b16 %v550
        %v1064 = vunpack.c.h.b16 %v550
        %v1065 = vunpack.c.l.b16 %v551
        %v1066 = vunpack.c.h.b16 %v551
        %v1067 = vunpack.c.l.b16 %v552
        %v1068 = vunpack.c.h.b16 %v552
        %v1069 = vunpack.c.l.b16 %v553
        %v1070 = vunpack.c.h.b16 %v553
        %v1071 = vunpack.c.l.b16 %v554
        %v1072 = vunpack.c.h.b16 %v554
        %v1073 = vunpack.c.l.b16 %v555
        %v1074 = vunpack.c.h.b16 %v555
        %v1075 = vunpack.c.l.b16 %v556
        %v1076 = vunpack.c.h.b16 %v556
        %v1077 = vunpack.c.l.b16 %v557
        %v1078 = vunpack.c.h.b16 %v557
        %v1079 = vunpack.c.l.b16 %v558
        %v1080 = vunpack.c.h.b16 %v558
        %v1081 = vunpack.c.l.b16 %v559
        %v1082 = vunpack.c.h.b16 %v559
        %v1083 = vunpack.c.l.b16 %v560
        %v1084 = vunpack.c.h.b16 %v560
        %v1085 = vunpack.c.l.b16 %v561
        %v1086 = vunpack.c.h.b16 %v561
        %v1087 = vunpack.c.l.b16 %v562
        %v1088 = vunpack.c.h.b16 %v562
        %v1089 = vunpack.c.l.b16 %v563
        %v1090 = vunpack.c.h.b16 %v563
        %v1091 = vunpack.c.l.b16 %v564
        %v1092 = vunpack.c.h.b16 %v564
        %v1093 = vunpack.c.l.b16 %v565
        %v1094 = vunpack.c.h.b16 %v565
        %v1095 = vunpack.c.l.b16 %v566
        %v1096 = vunpack.c.h.b16 %v566
        %v1097 = vunpack.c.l.b16 %v567
        %v1098 = vunpack.c.h.b16 %v567
        %v1099 = vunpack.c.l.b16 %v568
        %v1100 = vunpack.c.h.b16 %v568
        %v1101 = vunpack.c.l.b16 %v569
        %v1102 = vunpack.c.h.b16 %v569
        %v1103 = vunpack.c.l.b16 %v570
        %v1104 = vunpack.c.h.b16 %v570
        %v1105 = vunpack.c.l.b16 %v571
        %v1106 = vunpack.c.h.b16 %v571
        %v1107 = vunpack.c.l.b16 %v572
        %v1108 = vunpack.c.h.b16 %v572
        %v1109 = vunpack.c.l.b16 %v573
        %v1110 = vunpack.c.h.b16 %v573
        %v1111 = vunpack.c.l.b16 %v574
        %v1112 = vunpack.c.h.b16 %v574
        %v1113 = vunpack.c.l.b16 %v575
        %v1114 = vunpack.c.h.b16 %v575
        %v1115 = vunpack.c.l.b16 %v576
        %v1116 = vunpack.c.h.b16 %v576
        %v1117 = vunpack.c.l.b16 %v577
        %v1118 = vunpack.c.h.b16 %v577
        %v1119 = vunpack.c.l.b16 %v578
        %v1120 = vunpack.c.h.b16 %v578
        %v1121 = vunpack.c.l.b16 %v579
        %v1122 = vunpack.c.h.b16 %v579
        %v1123 = vunpack.c.l.b16 %v580
        %v1124 = vunpack.c.h.b16 %v580
        %v1125 = vunpack.c.l.b16 %v581
        %v1126 = vunpack.c.h.b16 %v581
        %v1127 = vunpack.c.l.b16 %v582
        %v1128 = vunpack.c.h.b16 %v582
        %v1129 = vunpack.c.l.b16 %v583
        %v1130 = vunpack.c.h.b16 %v583
        %v1131 = vunpack.c.l.b16 %v584
        %v1132 = vunpack.c.h.b16 %v584
        %v1133 = vunpack.c.l.b16 %v585
        %v1134 = vunpack.c.h.b16 %v585
        %v1135 = vunpack.c.l.b16 %v586
        %v1136 = vunpack.c.h.b16 %v586
        %v1137 = vunpack.c.l.b16 %v587
        %v1138 = vunpack.c.h.b16 %v587
        %v1139 = vunpack.c.l.b16 %v588
        %v1140 = vunpack.c.h.b16 %v588
        %v1141 = vunpack.c.l.b16 %v589
        %v1142 = vunpack.c.h.b16 %v589
        %v1143 = vunpack.c.l.b16 %v590
        %v1144 = vunpack.c.h.b16 %v590
        %v1145 = vunpack.c.l.b16 %v591
        %v1146 = vunpack.c.h.b16 %v591
        %v1147 = vunpack.c.l.b16 %v592
        %v1148 = vunpack.c.h.b16 %v592
        %v1149 = vunpack.c.l.b16 %v593
        %v1150 = vunpack.c.h.b16 %v593
        %v1151 = vunpack.c.l.b16 %v594
        %v1152 = vunpack.c.h.b16 %v594
        %v1153 = vunpack.c.l.b16 %v595
        %v1154 = vunpack.c.h.b16 %v595
        %v1155 = vunpack.c.l.b16 %v596
        %v1156 = vunpack.c.h.b16 %v596
        %v1157 = vunpack.c.l.b16 %v597
        %v1158 = vunpack.c.h.b16 %v597
        %v1159 = vunpack.c.l.b16 %v598
        %v1160 = vunpack.c.h.b16 %v598
        %v1161 = vunpack.c.l.b16 %v599
        %v1162 = vunpack.c.h.b16 %v599
        %v1163 = vunpack.c.l.b16 %v600
        %v1164 = vunpack.c.h.b16 %v600
        %v1165 = vunpack.c.l.b16 %v601
        %v1166 = vunpack.c.h.b16 %v601
        %v1167 = vunpack.c.l.b16 %v602
        %v1168 = vunpack.c.h.b16 %v602
        %v1169 = vunpack.c.l.b16 %v603
        %v1170 = vunpack.c.h.b16 %v603
        %v1171 = vunpack.c.l.b16 %v604
        %v1172 = vunpack.c.h.b16 %v604
        %v1173 = vunpack.c.l.b16 %v605
        %v1174 = vunpack.c.h.b16 %v605
        %v1175 = vunpack.c.l.b16 %v606
        %v1176 = vunpack.c.h.b16 %v606
        %v1177 = vunpack.c.l.b16 %v607
        %v1178 = vunpack.c.h.b16 %v607
        %v1179 = vunpack.c.l.b16 %v608
        %v1180 = vunpack.c.h.b16 %v608
        %v1181 = vunpack.c.l.b16 %v609
        %v1182 = vunpack.c.h.b16 %v609
        %v1183 = vunpack.c.l.b16 %v610
        %v1184 = vunpack.c.h.b16 %v610
        %v1185 = vunpack.c.l.b16 %v611
        %v1186 = vunpack.c.h.b16 %v611
        %v1187 = vunpack.c.l.b16 %v612
        %v1188 = vunpack.c.h.b16 %v612
        %v1189 = vunpack.c.l.b16 %v613
        %v1190 = vunpack.c.h.b16 %v613
        %v1191 = vunpack.c.l.b16 %v614
        %v1192 = vunpack.c.h.b16 %v614
        %v1193 = vunpack.c.l.b16 %v615
        %v1194 = vunpack.c.h.b16 %v615
        %v1195 = vunpack.c.l.b16 %v616
        %v1196 = vunpack.c.h.b16 %v616
        %v1197 = vunpack.c.l.b16 %v617
        %v1198 = vunpack.c.h.b16 %v617
        %v1199 = vunpack.c.l.b16 %v618
        %v1200 = vunpack.c.h.b16 %v618
        %v1201 = vunpack.c.l.b16 %v619
        %v1202 = vunpack.c.h.b16 %v619
        %v1203 = vunpack.c.l.b16 %v620
        %v1204 = vunpack.c.h.b16 %v620
        %v1205 = vunpack.c.l.b16 %v621
        %v1206 = vunpack.c.h.b16 %v621
        %v1207 = vunpack.c.l.b16 %v622
        %v1208 = vunpack.c.h.b16 %v622
        %v1209 = vunpack.c.l.b16 %v623
        %v1210 = vunpack.c.h.b16 %v623
        %v1211 = vunpack.c.l.b16 %v624
        %v1212 = vunpack.c.h.b16 %v624
        %v1213 = vunpack.c.l.b16 %v625
        %v1214 = vunpack.c.h.b16 %v625
        %v1215 = vunpack.c.l.b16 %v626
        %v1216 = vunpack.c.h.b16 %v626
        %v1217 = vpack.c.b16 %v839, %v833
        %v1218 = vpack.c.b16 %v840, %v834
        %v1219 = vpack.c.b16 %v841, %v835
        %v1220 = vpack.c.b16 %v842, %v836
        %v1221 = vpack.c.b16 %v843, %v837
        %v1222 = vpack.c.b16 %v844, %v838
        %v1223 = vpack.c.b16 %v851, %v845
        %v1224 = vpack.c.b16 %v852, %v846
        %v1225 = vpack.c.b16 %v853, %v847
        %v1226 = vpack.c.b16 %v854, %v848
        %v1227 = vpack.c.b16 %v855, %v849
        %v1228 = vpack.c.b16 %v856, %v850
        %v1229 = vpack.c.b16 %v863, %v857
        %v1230 = vpack.c.b16 %v864, %v858
        %v1231 = vpack.c.b16 %v865, %v859
        %v1232 = vpack.c.b16 %v866, %v860
        %v1233 = vpack.c.b16 %v867, %v861
        %v1234 = vpack.c.b16 %v868, %v862
        %v1235 = vpack.c.b16 %v875, %v869
        %v1236 = vpack.c.b16 %v876, %v870
        %v1237 = vpack.c.b16 %v877, %v871
        %v1238 = vpack.c.b16 %v878, %v872
        %v1239 = vpack.c.b16 %v879, %v873
        %v1240 = vpack.c.b16 %v880, %v874
        %v1241 = vpack.c.b16 %v887, %v881
        %v1242 = vpack.c.b16 %v888, %v882
        %v1243 = vpack.c.b16 %v889, %v883
        %v1244 = vpack.c.b16 %v890, %v884
        %v1245 = vpack.c.b16 %v891, %v885
        %v1246 = vpack.c.b16 %v892, %v886
        %v1247 = vpack.c.b16 %v899, %v893
        %v1248 = vpack.c.b16 %v900, %v894
        %v1249 = vpack.c.b16 %v901, %v895
        %v1250 = vpack.c.b16 %v902, %v896
        %v1251 = vpack.c.b16 %v903, %v897
        %v1252 = vpack.c.b16 %v904, %v898
        %v1253 = vpack.c.b16 %v911, %v905
        %v1254 = vpack.c.b16 %v912, %v906
        %v1255 = vpack.c.b16 %v913, %v907
        %v1256 = vpack.c.b16 %v914, %v908
        %v1257 = vpack.c.b16 %v915, %v909
        %v1258 = vpack.c.b16 %v916, %v910
        %v1259 = vpack.c.b16 %v923, %v917
        %v1260 = vpack.c.b16 %v924, %v918
        %v1261 = vpack.c.b16 %v925, %v919
        %v1262 = vpack.c.b16 %v926, %v920
        %v1263 = vpack.c.b16 %v927, %v921
        %v1264 = vpack.c.b16 %v928, %v922
        %v1265 = vpack.c.b16 %v935, %v929
        %v1266 = vpack.c.b16 %v936, %v930
        %v1267 = vpack.c.b16 %v937, %v931
        %v1268 = vpack.c.b16 %v938, %v932
        %v1269 = vpack.c.b16 %v939, %v933
        %v1270 = vpack.c.b16 %v940, %v934
        %v1271 = vpack.c.b16 %v947, %v941
        %v1272 = vpack.c.b16 %v948, %v942
        %v1273 = vpack.c.b16 %v949, %v943
        %v1274 = vpack.c.b16 %v950, %v944
        %v1275 = vpack.c.b16 %v951, %v945
        %v1276 = vpack.c.b16 %v952, %v946
        %v1277 = vpack.c.b16 %v959, %v953
        %v1278 = vpack.c.b16 %v960, %v954
        %v1279 = vpack.c.b16 %v961, %v955
        %v1280 = vpack.c.b16 %v962, %v956
        %v1281 = vpack.c.b16 %v963, %v957
        %v1282 = vpack.c.b16 %v964, %v958
        %v1283 = vpack.c.b16 %v971, %v965
        %v1284 = vpack.c.b16 %v972, %v966
        %v1285 = vpack.c.b16 %v973, %v967
        %v1286 = vpack.c.b16 %v974, %v968
        %v1287 = vpack.c.b16 %v975, %v969
        %v1288 = vpack.c.b16 %v976, %v970
        %v1289 = vpack.c.b16 %v983, %v977
        %v1290 = vpack.c.b16 %v984, %v978
        %v1291 = vpack.c.b16 %v985, %v979
        %v1292 = vpack.c.b16 %v986, %v980
        %v1293 = vpack.c.b16 %v987, %v981
        %v1294 = vpack.c.b16 %v988, %v982
        %v1295 = vpack.c.b16 %v995, %v989
        %v1296 = vpack.c.b16 %v996, %v990
        %v1297 = vpack.c.b16 %v997, %v991
        %v1298 = vpack.c.b16 %v998, %v992
        %v1299 = vpack.c.b16 %v999, %v993
        %v1300 = vpack.c.b16 %v1000, %v994
        %v1301 = vpack.c.b16 %v1007, %v1001
        %v1302 = vpack.c.b16 %v1008, %v1002
        %v1303 = vpack.c.b16 %v1009, %v1003
        %v1304 = vpack.c.b16 %v1010, %v1004
        %v1305 = vpack.c.b16 %v1011, %v1005
        %v1306 = vpack.c.b16 %v1012, %v1006
        %v1307 = vpack.c.b16 %v1019, %v1013
        %v1308 = vpack.c.b16 %v1020, %v1014
        %v1309 = vpack.c.b16 %v1021, %v1015
        %v1310 = vpack.c.b16 %v1022, %v1016
        %v1311 = vpack.c.b16 %v1023, %v1017
        %v1312 = vpack.c.b16 %v1024, %v1018
        %v1313 = vpack.c.b16 %v1031, %v1025
        %v1314 = vpack.c.b16 %v1032, %v1026
        %v1315 = vpack.c.b16 %v1033, %v1027
        %v1316 = vpack.c.b16 %v1034, %v1028
        %v1317 = vpack.c.b16 %v1035, %v1029
        %v1318 = vpack.c.b16 %v1036, %v1030
        %v1319 = vpack.c.b16 %v1043, %v1037
        %v1320 = vpack.c.b16 %v1044, %v1038
        %v1321 = vpack.c.b16 %v1045, %v1039
        %v1322 = vpack.c.b16 %v1046, %v1040
        %v1323 = vpack.c.b16 %v1047, %v1041
        %v1324 = vpack.c.b16 %v1048, %v1042
        %v1325 = vpack.c.b16 %v1055, %v1049
        %v1326 = vpack.c.b16 %v1056, %v1050
        %v1327 = vpack.c.b16 %v1057, %v1051
        %v1328 = vpack.c.b16 %v1058, %v1052
        %v1329 = vpack.c.b16 %v1059, %v1053
        %v1330 = vpack.c.b16 %v1060, %v1054
        %v1331 = vpack.c.b16 %v1067, %v1061
        %v1332 = vpack.c.b16 %v1068, %v1062
        %v1333 = vpack.c.b16 %v1069, %v1063
        %v1334 = vpack.c.b16 %v1070, %v1064
        %v1335 = vpack.c.b16 %v1071, %v1065
        %v1336 = vpack.c.b16 %v1072, %v1066
        %v1337 = vpack.c.b16 %v1079, %v1073
        %v1338 = vpack.c.b16 %v1080, %v1074
        %v1339 = vpack.c.b16 %v1081, %v1075
        %v1340 = vpack.c.b16 %v1082, %v1076
        %v1341 = vpack.c.b16 %v1083, %v1077
        %v1342 = vpack.c.b16 %v1084, %v1078
        %v1343 = vpack.c.b16 %v1091, %v1085
        %v1344 = vpack.c.b16 %v1092, %v1086
        %v1345 = vpack.c.b16 %v1093, %v1087
        %v1346 = vpack.c.b16 %v1094, %v1088
        %v1347 = vpack.c.b16 %v1095, %v1089
        %v1348 = vpack.c.b16 %v1096, %v1090
        %v1349 = vpack.c.b16 %v1103, %v1097
        %v1350 = vpack.c.b16 %v1104, %v1098
        %v1351 = vpack.c.b16 %v1105, %v1099
        %v1352 = vpack.c.b16 %v1106, %v1100
        %v1353 = vpack.c.b16 %v1107, %v1101
        %v1354 = vpack.c.b16 %v1108, %v1102
        %v1355 = vpack.c.b16 %v1115, %v1109
        %v1356 = vpack.c.b16 %v1116, %v1110
        %v1357 = vpack.c.b16 %v1117, %v1111
        %v1358 = vpack.c.b16 %v1118, %v1112
        %v1359 = vpack.c.b16 %v1119, %v1113
        %v1360 = vpack.c.b16 %v1120, %v1114
        %v1361 = vpack.c.b16 %v1127, %v1121
        %v1362 = vpack.c.b16 %v1128, %v1122
        %v1363 = vpack.c.b16 %v1129, %v1123
        %v1364 = vpack.c.b16 %v1130, %v1124
        %v1365 = vpack.c.b16 %v1131, %v1125
        %v1366 = vpack.c.b16 %v1132, %v1126
        %v1367 = vpack.c.b16 %v1139, %v1133
        %v1368 = vpack.c.b16 %v1140, %v1134
        %v1369 = vpack.c.b16 %v1141, %v1135
        %v1370 = vpack.c.b16 %v1142, %v1136
        %v1371 = vpack.c.b16 %v1143, %v1137
        %v1372 = vpack.c.b16 %v1144, %v1138
        %v1373 = vpack.c.b16 %v1151, %v1145
        %v1374 = vpack.c.b16 %v1152, %v1146
        %v1375 = vpack.c.b16 %v1153, %v1147
        %v1376 = vpack.c.b16 %v1154, %v1148
        %v1377 = vpack.c.b16 %v1155, %v1149
        %v1378 = vpack.c.b16 %v1156, %v1150
        %v1379 = vpack.c.b16 %v1163, %v1157
        %v1380 = vpack.c.b16 %v1164, %v1158
        %v1381 = vpack.c.b16 %v1165, %v1159
        %v1382 = vpack.c.b16 %v1166, %v1160
        %v1383 = vpack.c.b16 %v1167, %v1161
        %v1384 = vpack.c.b16 %v1168, %v1162
        %v1385 = vpack.c.b16 %v1175, %v1169
        %v1386 = vpack.c.b16 %v1176, %v1170
        %v1387 = vpack.c.b16 %v1177, %v1171
        %v1388 = vpack.c.b16 %v1178, %v1172
        %v1389 = vpack.c.b16 %v1179, %v1173
        %v1390 = vpack.c.b16 %v1180, %v1174
        %v1391 = vpack.c.b16 %v1187, %v1181
        %v1392 = vpack.c.b16 %v1188, %v1182
        %v1393 = vpack.c.b16 %v1189, %v1183
        %v1394 = vpack.c.b16 %v1190, %v1184
        %v1395 = vpack.c.b16 %v1191, %v1185
        %v1396 = vpack.c.b16 %v1192, %v1186
        %v1397 = vpack.c.b16 %v1199, %v1193
        %v1398 = vpack.c.b16 %v1200, %v1194
        %v1399 = vpack.c.b16 %v1201, %v1195
        %v1400 = vpack.c.b16 %v1202, %v1196
        %v1401 = vpack.c.b16 %v1203, %v1197
        %v1402 = vpack.c.b16 %v1204, %v1198
        %v1403 = vpack.c.b16 %v1211, %v1205
        %v1404 = vpack.c.b16 %v1212, %v1206
        %v1405 = vpack.c.b16 %v1213, %v1207
        %v1406 = vpack.c.b16 %v1214, %v1208
        %v1407 = vpack.c.b16 %v1215, %v1209
        %v1408 = vpack.c.b16 %v1216, %v1210
        %1601 = vmatpush.bf16.msra.mxu0 %v1259
        %1602 = vmatpush.bf16.msra.mxu0 %v1253
        %1603 = vmatpush.bf16.msra.mxu0 %v1247
        %1604 = vmatpush.bf16.msra.mxu0 %v1241
        %1605 = vmatpush.bf16.msra.mxu0 %v1235
        %1606 = vmatpush.bf16.msra.mxu0 %v1229
        %1607 = vmatpush.bf16.msra.mxu0 %v1223
        %1608 = vmatpush.bf16.msra.mxu0 %v1217
        %1609 = vmatmul.bf16.gmra.mxu0 %v633
        %v1610 = vpop.f32.mrf.mxu0
        %v1611 = vadd.f32 0.0, %v1610
        %v1612 = vpop.f32.mrf.mxu0
        %1613 = vdwg.mxu0
        %1614 = vmatpush.bf16.msra.mxu0 %v1307
        %1615 = vmatpush.bf16.msra.mxu0 %v1301
        %1616 = vmatpush.bf16.msra.mxu0 %v1295
        %1617 = vmatpush.bf16.msra.mxu0 %v1289
        %1618 = vmatpush.bf16.msra.mxu0 %v1283
        %1619 = vmatpush.bf16.msra.mxu0 %v1277
        %1620 = vmatpush.bf16.msra.mxu0 %v1271
        %1621 = vmatpush.bf16.msra.mxu0 %v1265
        %1622 = vmatmul.bf16.gmra.mxu0 %v634
        %v1623 = vpop.f32.mrf.mxu0
        %v1624 = vadd.f32 %v1611, %v1623
        %v1625 = vpop.f32.mrf.mxu0
        %1626 = vdwg.mxu0
        %1627 = vmatpush.bf16.msra.mxu0 %v1355
        %1628 = vmatpush.bf16.msra.mxu0 %v1349
        %1629 = vmatpush.bf16.msra.mxu0 %v1343
        %1630 = vmatpush.bf16.msra.mxu0 %v1337
        %1631 = vmatpush.bf16.msra.mxu0 %v1331
        %1632 = vmatpush.bf16.msra.mxu0 %v1325
        %1633 = vmatpush.bf16.msra.mxu0 %v1319
        %1634 = vmatpush.bf16.msra.mxu0 %v1313
        %1635 = vmatmul.bf16.gmra.mxu0 %v635
        %v1636 = vpop.f32.mrf.mxu0
        %v1637 = vadd.f32 %v1624, %v1636
        %v1638 = vpop.f32.mrf.mxu0
        %1639 = vdwg.mxu0
        %1640 = vmatpush.bf16.msra.mxu0 %v1403
        %1641 = vmatpush.bf16.msra.mxu0 %v1397
        %1642 = vmatpush.bf16.msra.mxu0 %v1391
        %1643 = vmatpush.bf16.msra.mxu0 %v1385
        %1644 = vmatpush.bf16.msra.mxu0 %v1379
        %1645 = vmatpush.bf16.msra.mxu0 %v1373
        %1646 = vmatpush.bf16.msra.mxu0 %v1367
        %1647 = vmatpush.bf16.msra.mxu0 %v1361
        %1648 = vmatmul.bf16.gmra.mxu0 %v636
        %v1649 = vpop.f32.mrf.mxu0
        %v1650 = vadd.f32 %v1637, %v1649
        %v1651 = vpop.f32.mrf.mxu0
        %1652 = vdwg.mxu0
        %1653 = vmatpush.bf16.msra.mxu0 %v1260
        %1654 = vmatpush.bf16.msra.mxu0 %v1254
        %1655 = vmatpush.bf16.msra.mxu0 %v1248
        %1656 = vmatpush.bf16.msra.mxu0 %v1242
        %1657 = vmatpush.bf16.msra.mxu0 %v1236
        %1658 = vmatpush.bf16.msra.mxu0 %v1230
        %1659 = vmatpush.bf16.msra.mxu0 %v1224
        %1660 = vmatpush.bf16.msra.mxu0 %v1218
        %1661 = vmatmul.bf16.gmra.mxu0 %v633
        %v1662 = vpop.f32.mrf.mxu0
        %v1663 = vadd.f32 0.0, %v1662
        %v1664 = vpop.f32.mrf.mxu0
        %1665 = vdwg.mxu0
        %1666 = vmatpush.bf16.msra.mxu0 %v1308
        %1667 = vmatpush.bf16.msra.mxu0 %v1302
        %1668 = vmatpush.bf16.msra.mxu0 %v1296
        %1669 = vmatpush.bf16.msra.mxu0 %v1290
        %1670 = vmatpush.bf16.msra.mxu0 %v1284
        %1671 = vmatpush.bf16.msra.mxu0 %v1278
        %1672 = vmatpush.bf16.msra.mxu0 %v1272
        %1673 = vmatpush.bf16.msra.mxu0 %v1266
        %1674 = vmatmul.bf16.gmra.mxu0 %v634
        %v1675 = vpop.f32.mrf.mxu0
        %v1676 = vadd.f32 %v1663, %v1675
        %v1677 = vpop.f32.mrf.mxu0
        %1678 = vdwg.mxu0
        %1679 = vmatpush.bf16.msra.mxu0 %v1356
        %1680 = vmatpush.bf16.msra.mxu0 %v1350
        %1681 = vmatpush.bf16.msra.mxu0 %v1344
        %1682 = vmatpush.bf16.msra.mxu0 %v1338
        %1683 = vmatpush.bf16.msra.mxu0 %v1332
        %1684 = vmatpush.bf16.msra.mxu0 %v1326
        %1685 = vmatpush.bf16.msra.mxu0 %v1320
        %1686 = vmatpush.bf16.msra.mxu0 %v1314
        %1687 = vmatmul.bf16.gmra.mxu0 %v635
        %v1688 = vpop.f32.mrf.mxu0
        %v1689 = vadd.f32 %v1676, %v1688
        %v1690 = vpop.f32.mrf.mxu0
        %1691 = vdwg.mxu0
        %1692 = vmatpush.bf16.msra.mxu0 %v1404
        %1693 = vmatpush.bf16.msra.mxu0 %v1398
        %1694 = vmatpush.bf16.msra.mxu0 %v1392
        %1695 = vmatpush.bf16.msra.mxu0 %v1386
        %1696 = vmatpush.bf16.msra.mxu0 %v1380
        %1697 = vmatpush.bf16.msra.mxu0 %v1374
        %1698 = vmatpush.bf16.msra.mxu0 %v1368
        %1699 = vmatpush.bf16.msra.mxu0 %v1362
        %1700 = vmatmul.bf16.gmra.mxu0 %v636
        %v1701 = vpop.f32.mrf.mxu0
        %v1702 = vadd.f32 %v1689, %v1701
        %v1703 = vpop.f32.mrf.mxu0
        %1704 = vdwg.mxu0
        %1705 = vmatpush.bf16.msra.mxu0 %v1261
        %1706 = vmatpush.bf16.msra.mxu0 %v1255
        %1707 = vmatpush.bf16.msra.mxu0 %v1249
        %1708 = vmatpush.bf16.msra.mxu0 %v1243
        %1709 = vmatpush.bf16.msra.mxu0 %v1237
        %1710 = vmatpush.bf16.msra.mxu0 %v1231
        %1711 = vmatpush.bf16.msra.mxu0 %v1225
        %1712 = vmatpush.bf16.msra.mxu0 %v1219
        %1713 = vmatmul.bf16.gmra.mxu0 %v633
        %v1714 = vpop.f32.mrf.mxu0
        %v1715 = vadd.f32 0.0, %v1714
        %v1716 = vpop.f32.mrf.mxu0
        %1717 = vdwg.mxu0
        %1718 = vmatpush.bf16.msra.mxu0 %v1309
        %1719 = vmatpush.bf16.msra.mxu0 %v1303
        %1720 = vmatpush.bf16.msra.mxu0 %v1297
        %1721 = vmatpush.bf16.msra.mxu0 %v1291
        %1722 = vmatpush.bf16.msra.mxu0 %v1285
        %1723 = vmatpush.bf16.msra.mxu0 %v1279
        %1724 = vmatpush.bf16.msra.mxu0 %v1273
        %1725 = vmatpush.bf16.msra.mxu0 %v1267
        %1726 = vmatmul.bf16.gmra.mxu0 %v634
        %v1727 = vpop.f32.mrf.mxu0
        %v1728 = vadd.f32 %v1715, %v1727
        %v1729 = vpop.f32.mrf.mxu0
        %1730 = vdwg.mxu0
        %1731 = vmatpush.bf16.msra.mxu0 %v1357
        %1732 = vmatpush.bf16.msra.mxu0 %v1351
        %1733 = vmatpush.bf16.msra.mxu0 %v1345
        %1734 = vmatpush.bf16.msra.mxu0 %v1339
        %1735 = vmatpush.bf16.msra.mxu0 %v1333
        %1736 = vmatpush.bf16.msra.mxu0 %v1327
        %1737 = vmatpush.bf16.msra.mxu0 %v1321
        %1738 = vmatpush.bf16.msra.mxu0 %v1315
        %1739 = vmatmul.bf16.gmra.mxu0 %v635
        %v1740 = vpop.f32.mrf.mxu0
        %v1741 = vadd.f32 %v1728, %v1740
        %v1742 = vpop.f32.mrf.mxu0
        %1743 = vdwg.mxu0
        %1744 = vmatpush.bf16.msra.mxu0 %v1405
        %1745 = vmatpush.bf16.msra.mxu0 %v1399
        %1746 = vmatpush.bf16.msra.mxu0 %v1393
        %1747 = vmatpush.bf16.msra.mxu0 %v1387
        %1748 = vmatpush.bf16.msra.mxu0 %v1381
        %1749 = vmatpush.bf16.msra.mxu0 %v1375
        %1750 = vmatpush.bf16.msra.mxu0 %v1369
        %1751 = vmatpush.bf16.msra.mxu0 %v1363
        %1752 = vmatmul.bf16.gmra.mxu0 %v636
        %v1753 = vpop.f32.mrf.mxu0
        %v1754 = vadd.f32 %v1741, %v1753
        %v1755 = vpop.f32.mrf.mxu0
        %1756 = vdwg.mxu0
        %1757 = vmatpush.bf16.msra.mxu0 %v1262
        %1758 = vmatpush.bf16.msra.mxu0 %v1256
        %1759 = vmatpush.bf16.msra.mxu0 %v1250
        %1760 = vmatpush.bf16.msra.mxu0 %v1244
        %1761 = vmatpush.bf16.msra.mxu0 %v1238
        %1762 = vmatpush.bf16.msra.mxu0 %v1232
        %1763 = vmatpush.bf16.msra.mxu0 %v1226
        %1764 = vmatpush.bf16.msra.mxu0 %v1220
        %1765 = vmatmul.bf16.gmra.mxu0 %v633
        %v1766 = vpop.f32.mrf.mxu0
        %v1767 = vadd.f32 0.0, %v1766
        %v1768 = vpop.f32.mrf.mxu0
        %1769 = vdwg.mxu0
        %1770 = vmatpush.bf16.msra.mxu0 %v1310
        %1771 = vmatpush.bf16.msra.mxu0 %v1304
        %1772 = vmatpush.bf16.msra.mxu0 %v1298
        %1773 = vmatpush.bf16.msra.mxu0 %v1292
        %1774 = vmatpush.bf16.msra.mxu0 %v1286
        %1775 = vmatpush.bf16.msra.mxu0 %v1280
        %1776 = vmatpush.bf16.msra.mxu0 %v1274
        %1777 = vmatpush.bf16.msra.mxu0 %v1268
        %1778 = vmatmul.bf16.gmra.mxu0 %v634
        %v1779 = vpop.f32.mrf.mxu0
        %v1780 = vadd.f32 %v1767, %v1779
        %v1781 = vpop.f32.mrf.mxu0
        %1782 = vdwg.mxu0
        %1783 = vmatpush.bf16.msra.mxu0 %v1358
        %1784 = vmatpush.bf16.msra.mxu0 %v1352
        %1785 = vmatpush.bf16.msra.mxu0 %v1346
        %1786 = vmatpush.bf16.msra.mxu0 %v1340
        %1787 = vmatpush.bf16.msra.mxu0 %v1334
        %1788 = vmatpush.bf16.msra.mxu0 %v1328
        %1789 = vmatpush.bf16.msra.mxu0 %v1322
        %1790 = vmatpush.bf16.msra.mxu0 %v1316
        %1791 = vmatmul.bf16.gmra.mxu0 %v635
        %v1792 = vpop.f32.mrf.mxu0
        %v1793 = vadd.f32 %v1780, %v1792
        %v1794 = vpop.f32.mrf.mxu0
        %1795 = vdwg.mxu0
        %1796 = vmatpush.bf16.msra.mxu0 %v1406
        %1797 = vmatpush.bf16.msra.mxu0 %v1400
        %1798 = vmatpush.bf16.msra.mxu0 %v1394
        %1799 = vmatpush.bf16.msra.mxu0 %v1388
        %1800 = vmatpush.bf16.msra.mxu0 %v1382
        %1801 = vmatpush.bf16.msra.mxu0 %v1376
        %1802 = vmatpush.bf16.msra.mxu0 %v1370
        %1803 = vmatpush.bf16.msra.mxu0 %v1364
        %1804 = vmatmul.bf16.gmra.mxu0 %v636
        %v1805 = vpop.f32.mrf.mxu0
        %v1806 = vadd.f32 %v1793, %v1805
        %v1807 = vpop.f32.mrf.mxu0
        %1808 = vdwg.mxu0
        %1809 = vmatpush.bf16.msra.mxu0 %v1263
        %1810 = vmatpush.bf16.msra.mxu0 %v1257
        %1811 = vmatpush.bf16.msra.mxu0 %v1251
        %1812 = vmatpush.bf16.msra.mxu0 %v1245
        %1813 = vmatpush.bf16.msra.mxu0 %v1239
        %1814 = vmatpush.bf16.msra.mxu0 %v1233
        %1815 = vmatpush.bf16.msra.mxu0 %v1227
        %1816 = vmatpush.bf16.msra.mxu0 %v1221
        %1817 = vmatmul.bf16.gmra.mxu0 %v633
        %v1818 = vpop.f32.mrf.mxu0
        %v1819 = vadd.f32 0.0, %v1818
        %v1820 = vpop.f32.mrf.mxu0
        %1821 = vdwg.mxu0
        %1822 = vmatpush.bf16.msra.mxu0 %v1311
        %1823 = vmatpush.bf16.msra.mxu0 %v1305
        %1824 = vmatpush.bf16.msra.mxu0 %v1299
        %1825 = vmatpush.bf16.msra.mxu0 %v1293
        %1826 = vmatpush.bf16.msra.mxu0 %v1287
        %1827 = vmatpush.bf16.msra.mxu0 %v1281
        %1828 = vmatpush.bf16.msra.mxu0 %v1275
        %1829 = vmatpush.bf16.msra.mxu0 %v1269
        %1830 = vmatmul.bf16.gmra.mxu0 %v634
        %v1831 = vpop.f32.mrf.mxu0
        %v1832 = vadd.f32 %v1819, %v1831
        %v1833 = vpop.f32.mrf.mxu0
        %1834 = vdwg.mxu0
        %1835 = vmatpush.bf16.msra.mxu0 %v1359
        %1836 = vmatpush.bf16.msra.mxu0 %v1353
        %1837 = vmatpush.bf16.msra.mxu0 %v1347
        %1838 = vmatpush.bf16.msra.mxu0 %v1341
        %1839 = vmatpush.bf16.msra.mxu0 %v1335
        %1840 = vmatpush.bf16.msra.mxu0 %v1329
        %1841 = vmatpush.bf16.msra.mxu0 %v1323
        %1842 = vmatpush.bf16.msra.mxu0 %v1317
        %1843 = vmatmul.bf16.gmra.mxu0 %v635
        %v1844 = vpop.f32.mrf.mxu0
        %v1845 = vadd.f32 %v1832, %v1844
        %v1846 = vpop.f32.mrf.mxu0
        %1847 = vdwg.mxu0
        %1848 = vmatpush.bf16.msra.mxu0 %v1407
        %1849 = vmatpush.bf16.msra.mxu0 %v1401
        %1850 = vmatpush.bf16.msra.mxu0 %v1395
        %1851 = vmatpush.bf16.msra.mxu0 %v1389
        %1852 = vmatpush.bf16.msra.mxu0 %v1383
        %1853 = vmatpush.bf16.msra.mxu0 %v1377
        %1854 = vmatpush.bf16.msra.mxu0 %v1371
        %1855 = vmatpush.bf16.msra.mxu0 %v1365
        %1856 = vmatmul.bf16.gmra.mxu0 %v636
        %v1857 = vpop.f32.mrf.mxu0
        %v1858 = vadd.f32 %v1845, %v1857
        %v1859 = vpop.f32.mrf.mxu0
        %1860 = vdwg.mxu0
        %1861 = vmatpush.bf16.msra.mxu0 %v1264
        %1862 = vmatpush.bf16.msra.mxu0 %v1258
        %1863 = vmatpush.bf16.msra.mxu0 %v1252
        %1864 = vmatpush.bf16.msra.mxu0 %v1246
        %1865 = vmatpush.bf16.msra.mxu0 %v1240
        %1866 = vmatpush.bf16.msra.mxu0 %v1234
        %1867 = vmatpush.bf16.msra.mxu0 %v1228
        %1868 = vmatpush.bf16.msra.mxu0 %v1222
        %1869 = vmatmul.bf16.gmra.mxu0 %v633
        %v1870 = vpop.f32.mrf.mxu0
        %v1871 = vadd.f32 0.0, %v1870
        %v1872 = vpop.f32.mrf.mxu0
        %1873 = vdwg.mxu0
        %1874 = vmatpush.bf16.msra.mxu0 %v1312
        %1875 = vmatpush.bf16.msra.mxu0 %v1306
        %1876 = vmatpush.bf16.msra.mxu0 %v1300
        %1877 = vmatpush.bf16.msra.mxu0 %v1294
        %1878 = vmatpush.bf16.msra.mxu0 %v1288
        %1879 = vmatpush.bf16.msra.mxu0 %v1282
        %1880 = vmatpush.bf16.msra.mxu0 %v1276
        %1881 = vmatpush.bf16.msra.mxu0 %v1270
        %1882 = vmatmul.bf16.gmra.mxu0 %v634
        %v1883 = vpop.f32.mrf.mxu0
        %v1884 = vadd.f32 %v1871, %v1883
        %v1885 = vpop.f32.mrf.mxu0
        %1886 = vdwg.mxu0
        %1887 = vmatpush.bf16.msra.mxu0 %v1360
        %1888 = vmatpush.bf16.msra.mxu0 %v1354
        %1889 = vmatpush.bf16.msra.mxu0 %v1348
        %1890 = vmatpush.bf16.msra.mxu0 %v1342
        %1891 = vmatpush.bf16.msra.mxu0 %v1336
        %1892 = vmatpush.bf16.msra.mxu0 %v1330
        %1893 = vmatpush.bf16.msra.mxu0 %v1324
        %1894 = vmatpush.bf16.msra.mxu0 %v1318
        %1895 = vmatmul.bf16.gmra.mxu0 %v635
        %v1896 = vpop.f32.mrf.mxu0
        %v1897 = vadd.f32 %v1884, %v1896
        %v1898 = vpop.f32.mrf.mxu0
        %1899 = vdwg.mxu0
        %1900 = vmatpush.bf16.msra.mxu0 %v1408
        %1901 = vmatpush.bf16.msra.mxu0 %v1402
        %1902 = vmatpush.bf16.msra.mxu0 %v1396
        %1903 = vmatpush.bf16.msra.mxu0 %v1390
        %1904 = vmatpush.bf16.msra.mxu0 %v1384
        %1905 = vmatpush.bf16.msra.mxu0 %v1378
        %1906 = vmatpush.bf16.msra.mxu0 %v1372
        %1907 = vmatpush.bf16.msra.mxu0 %v1366
        %1908 = vmatmul.bf16.gmra.mxu0 %v636
        %v1909 = vpop.f32.mrf.mxu0
        %v1910 = vadd.f32 %v1897, %v1909
        %v1911 = vpop.f32.mrf.mxu0
        %1912 = vdwg.mxu0
        %v1913 = vadd.f32 %v427, %v1650
        %v1914 = vadd.f32 %v428, %v1702
        %v1915 = vadd.f32 %v429, %v1754
        %v1916 = vadd.f32 %v430, %v1806
        %v1917 = vadd.f32 %v431, %v1858
        %v1918 = vadd.f32 %v432, %v1910
        %1919 = vst [vmem:[#allocation2] sm:$0xff] %v1913
        %1920 = vst [vmem:[#allocation2 + $0x8] sm:$0xff] %v1914
        %1921 = vst [vmem:[#allocation2 + $0x10] sm:$0xff] %v1915
        %1922 = vst [vmem:[#allocation2 + $0x18] sm:$0xff] %v1916
        %1923 = vst [vmem:[#allocation2 + $0x20] sm:$0xff] %v1917
        %1924 = vst [vmem:[#allocation2 + $0x28] sm:$0xff] %v1918
        %p1925 = scmp.eq.s32.totalorder %s34, 5
        // Predicated region
        $region73: #{tpu_custom_call.1} parent=43 // pred_check
          %p1926 = pneg %p1925
        $region74: #{tpu_custom_call.1} parent=43 // pred_check_branch
          %1928 = sbr.rel (%p1926) target = $region76
        $region75: #{tpu_custom_call.1} parent=43 // pred_region
          %v1929 = vld [vmem:[#allocation2] sm:$0xff]
          %v1930 = vld [vmem:[#allocation2 + $0x8] sm:$0xff]
          %v1931 = vld [vmem:[#allocation2 + $0x10] sm:$0xff]
          %v1932 = vld [vmem:[#allocation2 + $0x18] sm:$0xff]
          %v1933 = vld [vmem:[#allocation2 + $0x20] sm:$0xff]
          %v1934 = vld [vmem:[#allocation2 + $0x28] sm:$0xff]
          %v1935 = vld [vmem:[#allocation8] sm:$0xff]
          %v1936 = vld [vmem:[#allocation8 + $0x8] sm:$0xff]
          %v1937 = vld [vmem:[#allocation8 + $0x10] sm:$0xff]
          %v1938 = vld [vmem:[#allocation8 + $0x18] sm:$0xf]
          %v1939 = vld [vmem:[#allocation8 + $0x1c] sm:$0xff]
          %v1940 = vld [vmem:[#allocation8 + $0x24] sm:$0xff]
          %v1941 = vld [vmem:[#allocation8 + $0x2c] sm:$0xff]
          %v1942 = vld [vmem:[#allocation8 + $0x34] sm:$0xf]
          %v1943 = vld [vmem:[#allocation8 + $0x38] sm:$0xff]
          %v1944 = vld [vmem:[#allocation8 + $0x40] sm:$0xff]
          %v1945 = vld [vmem:[#allocation8 + $0x48] sm:$0xff]
          %v1946 = vld [vmem:[#allocation8 + $0x50] sm:$0xf]
          %v1947 = vld [vmem:[#allocation8 + $0x54] sm:$0xff]
          %v1948 = vld [vmem:[#allocation8 + $0x5c] sm:$0xff]
          %v1949 = vld [vmem:[#allocation8 + $0x64] sm:$0xff]
          %v1950 = vld [vmem:[#allocation8 + $0x6c] sm:$0xf]
          %v1951 = vld [vmem:[#allocation8 + $0x70] sm:$0xff]
          %v1952 = vld [vmem:[#allocation8 + $0x78] sm:$0xff]
          %v1953 = vld [vmem:[#allocation8 + $0x80] sm:$0xff]
          %v1954 = vld [vmem:[#allocation8 + $0x88] sm:$0xf]
          %v1955 = vld [vmem:[#allocation8 + $0x8c] sm:$0xff]
          %v1956 = vld [vmem:[#allocation8 + $0x94] sm:$0xff]
          %v1957 = vld [vmem:[#allocation8 + $0x9c] sm:$0xff]
          %v1958 = vld [vmem:[#allocation8 + $0xa4] sm:$0xf]
          %v1959 = vld [vmem:[#allocation8 + $0xa8] sm:$0xff]
          %v1960 = vld [vmem:[#allocation8 + $0xb0] sm:$0xff]
          %v1961 = vld [vmem:[#allocation8 + $0xb8] sm:$0xff]
          %v1962 = vld [vmem:[#allocation8 + $0xc0] sm:$0xf]
          %v1963 = vld [vmem:[#allocation8 + $0xc4] sm:$0xff]
          %v1964 = vld [vmem:[#allocation8 + $0xcc] sm:$0xff]
          %v1965 = vld [vmem:[#allocation8 + $0xd4] sm:$0xff]
          %v1966 = vld [vmem:[#allocation8 + $0xdc] sm:$0xf]
          %v1967 = vld [vmem:[#allocation8 + $0xe0] sm:$0xff]
          %v1968 = vld [vmem:[#allocation8 + $0xe8] sm:$0xff]
          %v1969 = vld [vmem:[#allocation8 + $0xf0] sm:$0xff]
          %v1970 = vld [vmem:[#allocation8 + $0xf8] sm:$0xf]
          %v1971 = vld [vmem:[#allocation8 + $0xfc] sm:$0xff]
          %v1972 = vld [vmem:[#allocation8 + $0x104] sm:$0xff]
          %v1973 = vld [vmem:[#allocation8 + $0x10c] sm:$0xff]
          %v1974 = vld [vmem:[#allocation8 + $0x114] sm:$0xf]
          %v1975 = vld [vmem:[#allocation8 + $0x118] sm:$0xff]
          %v1976 = vld [vmem:[#allocation8 + $0x120] sm:$0xff]
          %v1977 = vld [vmem:[#allocation8 + $0x128] sm:$0xff]
          %v1978 = vld [vmem:[#allocation8 + $0x130] sm:$0xf]
          %v1979 = vld [vmem:[#allocation8 + $0x134] sm:$0xff]
          %v1980 = vld [vmem:[#allocation8 + $0x13c] sm:$0xff]
          %v1981 = vld [vmem:[#allocation8 + $0x144] sm:$0xff]
          %v1982 = vld [vmem:[#allocation8 + $0x14c] sm:$0xf]
          %v1983 = vld [vmem:[#allocation8 + $0x150] sm:$0xff]
          %v1984 = vld [vmem:[#allocation8 + $0x158] sm:$0xff]
          %v1985 = vld [vmem:[#allocation8 + $0x160] sm:$0xff]
          %v1986 = vld [vmem:[#allocation8 + $0x168] sm:$0xf]
          %v1987 = vld [vmem:[#allocation8 + $0x16c] sm:$0xff]
          %v1988 = vld [vmem:[#allocation8 + $0x174] sm:$0xff]
          %v1989 = vld [vmem:[#allocation8 + $0x17c] sm:$0xff]
          %v1990 = vld [vmem:[#allocation8 + $0x184] sm:$0xf]
          %v1991 = vld [vmem:[#allocation8 + $0x188] sm:$0xff]
          %v1992 = vld [vmem:[#allocation8 + $0x190] sm:$0xff]
          %v1993 = vld [vmem:[#allocation8 + $0x198] sm:$0xff]
          %v1994 = vld [vmem:[#allocation8 + $0x1a0] sm:$0xf]
          %v1995 = vld [vmem:[#allocation8 + $0x1a4] sm:$0xff]
          %v1996 = vld [vmem:[#allocation8 + $0x1ac] sm:$0xff]
          %v1997 = vld [vmem:[#allocation8 + $0x1b4] sm:$0xff]
          %v1998 = vld [vmem:[#allocation8 + $0x1bc] sm:$0xf]
          %v1999 = vld [vmem:[#allocation8 + $0x1c0] sm:$0xff]
          %v2000 = vld [vmem:[#allocation8 + $0x1c8] sm:$0xff]
          %v2001 = vld [vmem:[#allocation8 + $0x1d0] sm:$0xff]
          %v2002 = vld [vmem:[#allocation8 + $0x1d8] sm:$0xf]
          %v2003 = vld [vmem:[#allocation8 + $0x1dc] sm:$0xff]
          %v2004 = vld [vmem:[#allocation8 + $0x1e4] sm:$0xff]
          %v2005 = vld [vmem:[#allocation8 + $0x1ec] sm:$0xff]
          %v2006 = vld [vmem:[#allocation8 + $0x1f4] sm:$0xf]
          %v2007 = vld [vmem:[#allocation8 + $0x1f8] sm:$0xff]
          %v2008 = vld [vmem:[#allocation8 + $0x200] sm:$0xff]
          %v2009 = vld [vmem:[#allocation8 + $0x208] sm:$0xff]
          %v2010 = vld [vmem:[#allocation8 + $0x210] sm:$0xf]
          %v2011 = vld [vmem:[#allocation8 + $0x214] sm:$0xff]
          %v2012 = vld [vmem:[#allocation8 + $0x21c] sm:$0xff]
          %v2013 = vld [vmem:[#allocation8 + $0x224] sm:$0xff]
          %v2014 = vld [vmem:[#allocation8 + $0x22c] sm:$0xf]
          %v2015 = vld [vmem:[#allocation8 + $0x230] sm:$0xff]
          %v2016 = vld [vmem:[#allocation8 + $0x238] sm:$0xff]
          %v2017 = vld [vmem:[#allocation8 + $0x240] sm:$0xff]
          %v2018 = vld [vmem:[#allocation8 + $0x248] sm:$0xf]
          %v2019 = vld [vmem:[#allocation8 + $0x24c] sm:$0xff]
          %v2020 = vld [vmem:[#allocation8 + $0x254] sm:$0xff]
          %v2021 = vld [vmem:[#allocation8 + $0x25c] sm:$0xff]
          %v2022 = vld [vmem:[#allocation8 + $0x264] sm:$0xf]
          %v2023 = vld [vmem:[#allocation8 + $0x268] sm:$0xff]
          %v2024 = vld [vmem:[#allocation8 + $0x270] sm:$0xff]
          %v2025 = vld [vmem:[#allocation8 + $0x278] sm:$0xff]
          %v2026 = vld [vmem:[#allocation8 + $0x280] sm:$0xf]
          %v2027 = vld [vmem:[#allocation8 + $0x284] sm:$0xff]
          %v2028 = vld [vmem:[#allocation8 + $0x28c] sm:$0xff]
          %v2029 = vld [vmem:[#allocation8 + $0x294] sm:$0xff]
          %v2030 = vld [vmem:[#allocation8 + $0x29c] sm:$0xf]
          %v2031 = vld [vmem:[#allocation8 + $0x2a0] sm:$0xff]
          %v2032 = vld [vmem:[#allocation8 + $0x2a8] sm:$0xff]
          %v2033 = vld [vmem:[#allocation8 + $0x2b0] sm:$0xff]
          %v2034 = vld [vmem:[#allocation8 + $0x2b8] sm:$0xf]
          %v2035 = vld [vmem:[#allocation8 + $0x2bc] sm:$0xff]
          %v2036 = vld [vmem:[#allocation8 + $0x2c4] sm:$0xff]
          %v2037 = vld [vmem:[#allocation8 + $0x2cc] sm:$0xff]
          %v2038 = vld [vmem:[#allocation8 + $0x2d4] sm:$0xf]
          %v2039 = vld [vmem:[#allocation8 + $0x2d8] sm:$0xff]
          %v2040 = vld [vmem:[#allocation8 + $0x2e0] sm:$0xff]
          %v2041 = vld [vmem:[#allocation8 + $0x2e8] sm:$0xff]
          %v2042 = vld [vmem:[#allocation8 + $0x2f0] sm:$0xf]
          %v2043 = vld [vmem:[#allocation8 + $0x2f4] sm:$0xff]
          %v2044 = vld [vmem:[#allocation8 + $0x2fc] sm:$0xff]
          %v2045 = vld [vmem:[#allocation8 + $0x304] sm:$0xff]
          %v2046 = vld [vmem:[#allocation8 + $0x30c] sm:$0xf]
          %v2047 = vld [vmem:[#allocation8 + $0x310] sm:$0xff]
          %v2048 = vld [vmem:[#allocation8 + $0x318] sm:$0xff]
          %v2049 = vld [vmem:[#allocation8 + $0x320] sm:$0xff]
          %v2050 = vld [vmem:[#allocation8 + $0x328] sm:$0xf]
          %v2051 = vld [vmem:[#allocation8 + $0x32c] sm:$0xff]
          %v2052 = vld [vmem:[#allocation8 + $0x334] sm:$0xff]
          %v2053 = vld [vmem:[#allocation8 + $0x33c] sm:$0xff]
          %v2054 = vld [vmem:[#allocation8 + $0x344] sm:$0xf]
          %v2055 = vld [vmem:[#allocation8 + $0x348] sm:$0xff]
          %v2056 = vld [vmem:[#allocation8 + $0x350] sm:$0xff]
          %v2057 = vld [vmem:[#allocation8 + $0x358] sm:$0xff]
          %v2058 = vld [vmem:[#allocation8 + $0x360] sm:$0xf]
          %v2059 = vld [vmem:[#allocation8 + $0x364] sm:$0xff]
          %v2060 = vld [vmem:[#allocation8 + $0x36c] sm:$0xff]
          %v2061 = vld [vmem:[#allocation8 + $0x374] sm:$0xff]
          %v2062 = vld [vmem:[#allocation8 + $0x37c] sm:$0xf]
          %v2063 = vld [vmem:[#allocation8 + $0x380] sm:$0xff]
          %v2064 = vld [vmem:[#allocation8 + $0x388] sm:$0xff]
          %v2065 = vld [vmem:[#allocation8 + $0x390] sm:$0xff]
          %v2066 = vld [vmem:[#allocation8 + $0x398] sm:$0xf]
          %v2067 = vld [vmem:[#allocation8 + $0x39c] sm:$0xff]
          %v2068 = vld [vmem:[#allocation8 + $0x3a4] sm:$0xff]
          %v2069 = vld [vmem:[#allocation8 + $0x3ac] sm:$0xff]
          %v2070 = vld [vmem:[#allocation8 + $0x3b4] sm:$0xf]
          %v2071 = vld [vmem:[#allocation8 + $0x3b8] sm:$0xff]
          %v2072 = vld [vmem:[#allocation8 + $0x3c0] sm:$0xff]
          %v2073 = vld [vmem:[#allocation8 + $0x3c8] sm:$0xff]
          %v2074 = vld [vmem:[#allocation8 + $0x3d0] sm:$0xf]
          %v2075 = vld [vmem:[#allocation8 + $0x3d4] sm:$0xff]
          %v2076 = vld [vmem:[#allocation8 + $0x3dc] sm:$0xff]
          %v2077 = vld [vmem:[#allocation8 + $0x3e4] sm:$0xff]
          %v2078 = vld [vmem:[#allocation8 + $0x3ec] sm:$0xf]
          %v2079 = vld [vmem:[#allocation8 + $0x3f0] sm:$0xff]
          %v2080 = vld [vmem:[#allocation8 + $0x3f8] sm:$0xff]
          %v2081 = vld [vmem:[#allocation8 + $0x400] sm:$0xff]
          %v2082 = vld [vmem:[#allocation8 + $0x408] sm:$0xf]
          %v2083 = vld [vmem:[#allocation8 + $0x40c] sm:$0xff]
          %v2084 = vld [vmem:[#allocation8 + $0x414] sm:$0xff]
          %v2085 = vld [vmem:[#allocation8 + $0x41c] sm:$0xff]
          %v2086 = vld [vmem:[#allocation8 + $0x424] sm:$0xf]
          %v2087 = vld [vmem:[#allocation8 + $0x428] sm:$0xff]
          %v2088 = vld [vmem:[#allocation8 + $0x430] sm:$0xff]
          %v2089 = vld [vmem:[#allocation8 + $0x438] sm:$0xff]
          %v2090 = vld [vmem:[#allocation8 + $0x440] sm:$0xf]
          %v2091 = vld [vmem:[#allocation8 + $0x444] sm:$0xff]
          %v2092 = vld [vmem:[#allocation8 + $0x44c] sm:$0xff]
          %v2093 = vld [vmem:[#allocation8 + $0x454] sm:$0xff]
          %v2094 = vld [vmem:[#allocation8 + $0x45c] sm:$0xf]
          %v2095 = vld [vmem:[#allocation8 + $0x460] sm:$0xff]
          %v2096 = vld [vmem:[#allocation8 + $0x468] sm:$0xff]
          %v2097 = vld [vmem:[#allocation8 + $0x470] sm:$0xff]
          %v2098 = vld [vmem:[#allocation8 + $0x478] sm:$0xf]
          %v2099 = vld [vmem:[#allocation8 + $0x47c] sm:$0xff]
          %v2100 = vld [vmem:[#allocation8 + $0x484] sm:$0xff]
          %v2101 = vld [vmem:[#allocation8 + $0x48c] sm:$0xff]
          %v2102 = vld [vmem:[#allocation8 + $0x494] sm:$0xf]
          %v2103 = vld [vmem:[#allocation8 + $0x498] sm:$0xff]
          %v2104 = vld [vmem:[#allocation8 + $0x4a0] sm:$0xff]
          %v2105 = vld [vmem:[#allocation8 + $0x4a8] sm:$0xff]
          %v2106 = vld [vmem:[#allocation8 + $0x4b0] sm:$0xf]
          %v2107 = vld [vmem:[#allocation8 + $0x4b4] sm:$0xff]
          %v2108 = vld [vmem:[#allocation8 + $0x4bc] sm:$0xff]
          %v2109 = vld [vmem:[#allocation8 + $0x4c4] sm:$0xff]
          %v2110 = vld [vmem:[#allocation8 + $0x4cc] sm:$0xf]
          %v2111 = vld [vmem:[#allocation8 + $0x4d0] sm:$0xff]
          %v2112 = vld [vmem:[#allocation8 + $0x4d8] sm:$0xff]
          %v2113 = vld [vmem:[#allocation8 + $0x4e0] sm:$0xff]
          %v2114 = vld [vmem:[#allocation8 + $0x4e8] sm:$0xf]
          %v2115 = vld [vmem:[#allocation8 + $0x4ec] sm:$0xff]
          %v2116 = vld [vmem:[#allocation8 + $0x4f4] sm:$0xff]
          %v2117 = vld [vmem:[#allocation8 + $0x4fc] sm:$0xff]
          %v2118 = vld [vmem:[#allocation8 + $0x504] sm:$0xf]
          %v2119 = vld [vmem:[#allocation8 + $0x508] sm:$0xff]
          %v2120 = vld [vmem:[#allocation8 + $0x510] sm:$0xff]
          %v2121 = vld [vmem:[#allocation8 + $0x518] sm:$0xff]
          %v2122 = vld [vmem:[#allocation8 + $0x520] sm:$0xf]
          %v2123 = vld [vmem:[#allocation8 + $0x524] sm:$0xff]
          %v2124 = vld [vmem:[#allocation8 + $0x52c] sm:$0xff]
          %v2125 = vld [vmem:[#allocation8 + $0x534] sm:$0xff]
          %v2126 = vld [vmem:[#allocation8 + $0x53c] sm:$0xf]
          %v2127 = vld [vmem:[#allocation8 + $0x540] sm:$0xff]
          %v2128 = vld [vmem:[#allocation8 + $0x548] sm:$0xff]
          %v2129 = vld [vmem:[#allocation8 + $0x550] sm:$0xff]
          %v2130 = vld [vmem:[#allocation8 + $0x558] sm:$0xf]
          %v2131 = vld [vmem:[#allocation8 + $0x55c] sm:$0xff]
          %v2132 = vld [vmem:[#allocation8 + $0x564] sm:$0xff]
          %v2133 = vld [vmem:[#allocation8 + $0x56c] sm:$0xff]
          %v2134 = vld [vmem:[#allocation8 + $0x574] sm:$0xf]
          %v2135 = vld [vmem:[#allocation8 + $0x578] sm:$0xff]
          %v2136 = vld [vmem:[#allocation8 + $0x580] sm:$0xff]
          %v2137 = vld [vmem:[#allocation8 + $0x588] sm:$0xff]
          %v2138 = vld [vmem:[#allocation8 + $0x590] sm:$0xf]
          %v2139 = vld [vmem:[#allocation8 + $0x594] sm:$0xff]
          %v2140 = vld [vmem:[#allocation8 + $0x59c] sm:$0xff]
          %v2141 = vld [vmem:[#allocation8 + $0x5a4] sm:$0xff]
          %v2142 = vld [vmem:[#allocation8 + $0x5ac] sm:$0xf]
          %v2143 = vld [vmem:[#allocation8 + $0x5b0] sm:$0xff]
          %v2144 = vld [vmem:[#allocation8 + $0x5b8] sm:$0xff]
          %v2145 = vld [vmem:[#allocation8 + $0x5c0] sm:$0xff]
          %v2146 = vld [vmem:[#allocation8 + $0x5c8] sm:$0xf]
          %v2147 = vld [vmem:[#allocation8 + $0x5cc] sm:$0xff]
          %v2148 = vld [vmem:[#allocation8 + $0x5d4] sm:$0xff]
          %v2149 = vld [vmem:[#allocation8 + $0x5dc] sm:$0xff]
          %v2150 = vld [vmem:[#allocation8 + $0x5e4] sm:$0xf]
          %v2151 = vld [vmem:[#allocation8 + $0x5e8] sm:$0xff]
          %v2152 = vld [vmem:[#allocation8 + $0x5f0] sm:$0xff]
          %v2153 = vld [vmem:[#allocation8 + $0x5f8] sm:$0xff]
          %v2154 = vld [vmem:[#allocation8 + $0x600] sm:$0xf]
          %v2155 = vld [vmem:[#allocation8 + $0x604] sm:$0xff]
          %v2156 = vld [vmem:[#allocation8 + $0x60c] sm:$0xff]
          %v2157 = vld [vmem:[#allocation8 + $0x614] sm:$0xff]
          %v2158 = vld [vmem:[#allocation8 + $0x61c] sm:$0xf]
          %v2159 = vld [vmem:[#allocation8 + $0x620] sm:$0xff]
          %v2160 = vld [vmem:[#allocation8 + $0x628] sm:$0xff]
          %v2161 = vld [vmem:[#allocation8 + $0x630] sm:$0xff]
          %v2162 = vld [vmem:[#allocation8 + $0x638] sm:$0xf]
          %v2163 = vld [vmem:[#allocation8 + $0x63c] sm:$0xff]
          %v2164 = vld [vmem:[#allocation8 + $0x644] sm:$0xff]
          %v2165 = vld [vmem:[#allocation8 + $0x64c] sm:$0xff]
          %v2166 = vld [vmem:[#allocation8 + $0x654] sm:$0xf]
          %v2167 = vld [vmem:[#allocation8 + $0x658] sm:$0xff]
          %v2168 = vld [vmem:[#allocation8 + $0x660] sm:$0xff]
          %v2169 = vld [vmem:[#allocation8 + $0x668] sm:$0xff]
          %v2170 = vld [vmem:[#allocation8 + $0x670] sm:$0xf]
          %v2171 = vld [vmem:[#allocation8 + $0x674] sm:$0xff]
          %v2172 = vld [vmem:[#allocation8 + $0x67c] sm:$0xff]
          %v2173 = vld [vmem:[#allocation8 + $0x684] sm:$0xff]
          %v2174 = vld [vmem:[#allocation8 + $0x68c] sm:$0xf]
          %v2175 = vld [vmem:[#allocation8 + $0x690] sm:$0xff]
          %v2176 = vld [vmem:[#allocation8 + $0x698] sm:$0xff]
          %v2177 = vld [vmem:[#allocation8 + $0x6a0] sm:$0xff]
          %v2178 = vld [vmem:[#allocation8 + $0x6a8] sm:$0xf]
          %v2179 = vld [vmem:[#allocation8 + $0x6ac] sm:$0xff]
          %v2180 = vld [vmem:[#allocation8 + $0x6b4] sm:$0xff]
          %v2181 = vld [vmem:[#allocation8 + $0x6bc] sm:$0xff]
          %v2182 = vld [vmem:[#allocation8 + $0x6c4] sm:$0xf]
          %v2183 = vld [vmem:[#allocation8 + $0x6c8] sm:$0xff]
          %v2184 = vld [vmem:[#allocation8 + $0x6d0] sm:$0xff]
          %v2185 = vld [vmem:[#allocation8 + $0x6d8] sm:$0xff]
          %v2186 = vld [vmem:[#allocation8 + $0x6e0] sm:$0xf]
          %v2187 = vld [vmem:[#allocation8 + $0x6e4] sm:$0xff]
          %v2188 = vld [vmem:[#allocation8 + $0x6ec] sm:$0xff]
          %v2189 = vld [vmem:[#allocation8 + $0x6f4] sm:$0xff]
          %v2190 = vld [vmem:[#allocation8 + $0x6fc] sm:$0xf]
          %v2191 = vld [vmem:[#allocation8 + $0x700] sm:$0xff]
          %v2192 = vld [vmem:[#allocation8 + $0x708] sm:$0xff]
          %v2193 = vld [vmem:[#allocation8 + $0x710] sm:$0xff]
          %v2194 = vld [vmem:[#allocation8 + $0x718] sm:$0xf]
          %v2195 = vld [vmem:[#allocation8 + $0x71c] sm:$0xff]
          %v2196 = vld [vmem:[#allocation8 + $0x724] sm:$0xff]
          %v2197 = vld [vmem:[#allocation8 + $0x72c] sm:$0xff]
          %v2198 = vld [vmem:[#allocation8 + $0x734] sm:$0xf]
          %v2199 = vld [vmem:[#allocation8 + $0x738] sm:$0xff]
          %v2200 = vld [vmem:[#allocation8 + $0x740] sm:$0xff]
          %v2201 = vld [vmem:[#allocation8 + $0x748] sm:$0xff]
          %v2202 = vld [vmem:[#allocation8 + $0x750] sm:$0xf]
          %v2203 = vld [vmem:[#allocation8 + $0x754] sm:$0xff]
          %v2204 = vld [vmem:[#allocation8 + $0x75c] sm:$0xff]
          %v2205 = vld [vmem:[#allocation8 + $0x764] sm:$0xff]
          %v2206 = vld [vmem:[#allocation8 + $0x76c] sm:$0xf]
          %v2207 = vld [vmem:[#allocation8 + $0x770] sm:$0xff]
          %v2208 = vld [vmem:[#allocation8 + $0x778] sm:$0xff]
          %v2209 = vld [vmem:[#allocation8 + $0x780] sm:$0xff]
          %v2210 = vld [vmem:[#allocation8 + $0x788] sm:$0xf]
          %v2211 = vld [vmem:[#allocation8 + $0x78c] sm:$0xff]
          %v2212 = vld [vmem:[#allocation8 + $0x794] sm:$0xff]
          %v2213 = vld [vmem:[#allocation8 + $0x79c] sm:$0xff]
          %v2214 = vld [vmem:[#allocation8 + $0x7a4] sm:$0xf]
          %v2215 = vld [vmem:[#allocation8 + $0x7a8] sm:$0xff]
          %v2216 = vld [vmem:[#allocation8 + $0x7b0] sm:$0xff]
          %v2217 = vld [vmem:[#allocation8 + $0x7b8] sm:$0xff]
          %v2218 = vld [vmem:[#allocation8 + $0x7c0] sm:$0xf]
          %v2219 = vld [vmem:[#allocation8 + $0x7c4] sm:$0xff]
          %v2220 = vld [vmem:[#allocation8 + $0x7cc] sm:$0xff]
          %v2221 = vld [vmem:[#allocation8 + $0x7d4] sm:$0xff]
          %v2222 = vld [vmem:[#allocation8 + $0x7dc] sm:$0xf]
          %v2223 = vld [vmem:[#allocation8 + $0x7e0] sm:$0xff]
          %v2224 = vld [vmem:[#allocation8 + $0x7e8] sm:$0xff]
          %v2225 = vld [vmem:[#allocation8 + $0x7f0] sm:$0xff]
          %v2226 = vld [vmem:[#allocation8 + $0x7f8] sm:$0xf]
          %v2227 = vld [vmem:[#allocation8 + $0x7fc] sm:$0xff]
          %v2228 = vld [vmem:[#allocation8 + $0x804] sm:$0xff]
          %v2229 = vld [vmem:[#allocation8 + $0x80c] sm:$0xff]
          %v2230 = vld [vmem:[#allocation8 + $0x814] sm:$0xf]
          %v2231 = vld [vmem:[#allocation8 + $0x818] sm:$0xff]
          %v2232 = vld [vmem:[#allocation8 + $0x820] sm:$0xff]
          %v2233 = vld [vmem:[#allocation8 + $0x828] sm:$0xff]
          %v2234 = vld [vmem:[#allocation8 + $0x830] sm:$0xf]
          %v2235 = vld [vmem:[#allocation8 + $0x834] sm:$0xff]
          %v2236 = vld [vmem:[#allocation8 + $0x83c] sm:$0xff]
          %v2237 = vld [vmem:[#allocation8 + $0x844] sm:$0xff]
          %v2238 = vld [vmem:[#allocation8 + $0x84c] sm:$0xf]
          %v2239 = vld [vmem:[#allocation8 + $0x850] sm:$0xff]
          %v2240 = vld [vmem:[#allocation8 + $0x858] sm:$0xff]
          %v2241 = vld [vmem:[#allocation8 + $0x860] sm:$0xff]
          %v2242 = vld [vmem:[#allocation8 + $0x868] sm:$0xf]
          %v2243 = vld [vmem:[#allocation8 + $0x86c] sm:$0xff]
          %v2244 = vld [vmem:[#allocation8 + $0x874] sm:$0xff]
          %v2245 = vld [vmem:[#allocation8 + $0x87c] sm:$0xff]
          %v2246 = vld [vmem:[#allocation8 + $0x884] sm:$0xf]
          %v2247 = vld [vmem:[#allocation8 + $0x888] sm:$0xff]
          %v2248 = vld [vmem:[#allocation8 + $0x890] sm:$0xff]
          %v2249 = vld [vmem:[#allocation8 + $0x898] sm:$0xff]
          %v2250 = vld [vmem:[#allocation8 + $0x8a0] sm:$0xf]
          %v2251 = vld [vmem:[#allocation8 + $0x8a4] sm:$0xff]
          %v2252 = vld [vmem:[#allocation8 + $0x8ac] sm:$0xff]
          %v2253 = vld [vmem:[#allocation8 + $0x8b4] sm:$0xff]
          %v2254 = vld [vmem:[#allocation8 + $0x8bc] sm:$0xf]
          %v2255 = vld [vmem:[#allocation8 + $0x8c0] sm:$0xff]
          %v2256 = vld [vmem:[#allocation8 + $0x8c8] sm:$0xff]
          %v2257 = vld [vmem:[#allocation8 + $0x8d0] sm:$0xff]
          %v2258 = vld [vmem:[#allocation8 + $0x8d8] sm:$0xf]
          %v2259 = vld [vmem:[#allocation8 + $0x8dc] sm:$0xff]
          %v2260 = vld [vmem:[#allocation8 + $0x8e4] sm:$0xff]
          %v2261 = vld [vmem:[#allocation8 + $0x8ec] sm:$0xff]
          %v2262 = vld [vmem:[#allocation8 + $0x8f4] sm:$0xf]
          %v2263 = vld [vmem:[#allocation8 + $0x8f8] sm:$0xff]
          %v2264 = vld [vmem:[#allocation8 + $0x900] sm:$0xff]
          %v2265 = vld [vmem:[#allocation8 + $0x908] sm:$0xff]
          %v2266 = vld [vmem:[#allocation8 + $0x910] sm:$0xf]
          %v2267 = vld [vmem:[#allocation8 + $0x914] sm:$0xff]
          %v2268 = vld [vmem:[#allocation8 + $0x91c] sm:$0xff]
          %v2269 = vld [vmem:[#allocation8 + $0x924] sm:$0xff]
          %v2270 = vld [vmem:[#allocation8 + $0x92c] sm:$0xf]
          %v2271 = vld [vmem:[#allocation8 + $0x930] sm:$0xff]
          %v2272 = vld [vmem:[#allocation8 + $0x938] sm:$0xff]
          %v2273 = vld [vmem:[#allocation8 + $0x940] sm:$0xff]
          %v2274 = vld [vmem:[#allocation8 + $0x948] sm:$0xf]
          %v2275 = vld [vmem:[#allocation8 + $0x94c] sm:$0xff]
          %v2276 = vld [vmem:[#allocation8 + $0x954] sm:$0xff]
          %v2277 = vld [vmem:[#allocation8 + $0x95c] sm:$0xff]
          %v2278 = vld [vmem:[#allocation8 + $0x964] sm:$0xf]
          %v2279 = vld [vmem:[#allocation8 + $0x968] sm:$0xff]
          %v2280 = vld [vmem:[#allocation8 + $0x970] sm:$0xff]
          %v2281 = vld [vmem:[#allocation8 + $0x978] sm:$0xff]
          %v2282 = vld [vmem:[#allocation8 + $0x980] sm:$0xf]
          %v2283 = vld [vmem:[#allocation8 + $0x984] sm:$0xff]
          %v2284 = vld [vmem:[#allocation8 + $0x98c] sm:$0xff]
          %v2285 = vld [vmem:[#allocation8 + $0x994] sm:$0xff]
          %v2286 = vld [vmem:[#allocation8 + $0x99c] sm:$0xf]
          %v2287 = vld [vmem:[#allocation8 + $0x9a0] sm:$0xff]
          %v2288 = vld [vmem:[#allocation8 + $0x9a8] sm:$0xff]
          %v2289 = vld [vmem:[#allocation8 + $0x9b0] sm:$0xff]
          %v2290 = vld [vmem:[#allocation8 + $0x9b8] sm:$0xf]
          %v2291 = vld [vmem:[#allocation8 + $0x9bc] sm:$0xff]
          %v2292 = vld [vmem:[#allocation8 + $0x9c4] sm:$0xff]
          %v2293 = vld [vmem:[#allocation8 + $0x9cc] sm:$0xff]
          %v2294 = vld [vmem:[#allocation8 + $0x9d4] sm:$0xf]
          %v2295 = vld [vmem:[#allocation8 + $0x9d8] sm:$0xff]
          %v2296 = vld [vmem:[#allocation8 + $0x9e0] sm:$0xff]
          %v2297 = vld [vmem:[#allocation8 + $0x9e8] sm:$0xff]
          %v2298 = vld [vmem:[#allocation8 + $0x9f0] sm:$0xf]
          %v2299 = vld [vmem:[#allocation8 + $0x9f4] sm:$0xff]
          %v2300 = vld [vmem:[#allocation8 + $0x9fc] sm:$0xff]
          %v2301 = vld [vmem:[#allocation8 + $0xa04] sm:$0xff]
          %v2302 = vld [vmem:[#allocation8 + $0xa0c] sm:$0xf]
          %v2303 = vld [vmem:[#allocation8 + $0xa10] sm:$0xff]
          %v2304 = vld [vmem:[#allocation8 + $0xa18] sm:$0xff]
          %v2305 = vld [vmem:[#allocation8 + $0xa20] sm:$0xff]
          %v2306 = vld [vmem:[#allocation8 + $0xa28] sm:$0xf]
          %v2307 = vld [vmem:[#allocation8 + $0xa2c] sm:$0xff]
          %v2308 = vld [vmem:[#allocation8 + $0xa34] sm:$0xff]
          %v2309 = vld [vmem:[#allocation8 + $0xa3c] sm:$0xff]
          %v2310 = vld [vmem:[#allocation8 + $0xa44] sm:$0xf]
          %v2311 = vld [vmem:[#allocation8 + $0xa48] sm:$0xff]
          %v2312 = vld [vmem:[#allocation8 + $0xa50] sm:$0xff]
          %v2313 = vld [vmem:[#allocation8 + $0xa58] sm:$0xff]
          %v2314 = vld [vmem:[#allocation8 + $0xa60] sm:$0xf]
          %v2315 = vld [vmem:[#allocation8 + $0xa64] sm:$0xff]
          %v2316 = vld [vmem:[#allocation8 + $0xa6c] sm:$0xff]
          %v2317 = vld [vmem:[#allocation8 + $0xa74] sm:$0xff]
          %v2318 = vld [vmem:[#allocation8 + $0xa7c] sm:$0xf]
          %v2319 = vunpack.c.l.bf16 %v1935
          %v2320 = vunpack.c.h.bf16 %v1935
          %v2321 = vunpack.c.l.bf16 %v1936
          %v2322 = vunpack.c.h.bf16 %v1936
          %v2323 = vunpack.c.l.bf16 %v1937
          %v2324 = vunpack.c.h.bf16 %v1937
          %v2325 = vunpack.c.l.bf16 %v1938
          %v2326 = vunpack.c.l.bf16 %v1939
          %v2327 = vunpack.c.h.bf16 %v1939
          %v2328 = vunpack.c.l.bf16 %v1940
          %v2329 = vunpack.c.h.bf16 %v1940
          %v2330 = vunpack.c.l.bf16 %v1941
          %v2331 = vunpack.c.h.bf16 %v1941
          %v2332 = vunpack.c.l.bf16 %v1942
          %v2333 = vunpack.c.l.bf16 %v1943
          %v2334 = vunpack.c.h.bf16 %v1943
          %v2335 = vunpack.c.l.bf16 %v1944
          %v2336 = vunpack.c.h.bf16 %v1944
          %v2337 = vunpack.c.l.bf16 %v1945
          %v2338 = vunpack.c.h.bf16 %v1945
          %v2339 = vunpack.c.l.bf16 %v1946
          %v2340 = vunpack.c.l.bf16 %v1947
          %v2341 = vunpack.c.h.bf16 %v1947
          %v2342 = vunpack.c.l.bf16 %v1948
          %v2343 = vunpack.c.h.bf16 %v1948
          %v2344 = vunpack.c.l.bf16 %v1949
          %v2345 = vunpack.c.h.bf16 %v1949
          %v2346 = vunpack.c.l.bf16 %v1950
          %v2347 = vunpack.c.l.bf16 %v1951
          %v2348 = vunpack.c.h.bf16 %v1951
          %v2349 = vunpack.c.l.bf16 %v1952
          %v2350 = vunpack.c.h.bf16 %v1952
          %v2351 = vunpack.c.l.bf16 %v1953
          %v2352 = vunpack.c.h.bf16 %v1953
          %v2353 = vunpack.c.l.bf16 %v1954
          %v2354 = vunpack.c.l.bf16 %v1955
          %v2355 = vunpack.c.h.bf16 %v1955
          %v2356 = vunpack.c.l.bf16 %v1956
          %v2357 = vunpack.c.h.bf16 %v1956
          %v2358 = vunpack.c.l.bf16 %v1957
          %v2359 = vunpack.c.h.bf16 %v1957
          %v2360 = vunpack.c.l.bf16 %v1958
          %v2361 = vunpack.c.l.bf16 %v1959
          %v2362 = vunpack.c.h.bf16 %v1959
          %v2363 = vunpack.c.l.bf16 %v1960
          %v2364 = vunpack.c.h.bf16 %v1960
          %v2365 = vunpack.c.l.bf16 %v1961
          %v2366 = vunpack.c.h.bf16 %v1961
          %v2367 = vunpack.c.l.bf16 %v1962
          %v2368 = vunpack.c.l.bf16 %v1963
          %v2369 = vunpack.c.h.bf16 %v1963
          %v2370 = vunpack.c.l.bf16 %v1964
          %v2371 = vunpack.c.h.bf16 %v1964
          %v2372 = vunpack.c.l.bf16 %v1965
          %v2373 = vunpack.c.h.bf16 %v1965
          %v2374 = vunpack.c.l.bf16 %v1966
          %v2375 = vunpack.c.l.bf16 %v1967
          %v2376 = vunpack.c.h.bf16 %v1967
          %v2377 = vunpack.c.l.bf16 %v1968
          %v2378 = vunpack.c.h.bf16 %v1968
          %v2379 = vunpack.c.l.bf16 %v1969
          %v2380 = vunpack.c.h.bf16 %v1969
          %v2381 = vunpack.c.l.bf16 %v1970
          %v2382 = vunpack.c.l.bf16 %v1971
          %v2383 = vunpack.c.h.bf16 %v1971
          %v2384 = vunpack.c.l.bf16 %v1972
          %v2385 = vunpack.c.h.bf16 %v1972
          %v2386 = vunpack.c.l.bf16 %v1973
          %v2387 = vunpack.c.h.bf16 %v1973
          %v2388 = vunpack.c.l.bf16 %v1974
          %v2389 = vunpack.c.l.bf16 %v1975
          %v2390 = vunpack.c.h.bf16 %v1975
          %v2391 = vunpack.c.l.bf16 %v1976
          %v2392 = vunpack.c.h.bf16 %v1976
          %v2393 = vunpack.c.l.bf16 %v1977
          %v2394 = vunpack.c.h.bf16 %v1977
          %v2395 = vunpack.c.l.bf16 %v1978
          %v2396 = vunpack.c.l.bf16 %v1979
          %v2397 = vunpack.c.h.bf16 %v1979
          %v2398 = vunpack.c.l.bf16 %v1980
          %v2399 = vunpack.c.h.bf16 %v1980
          %v2400 = vunpack.c.l.bf16 %v1981
          %v2401 = vunpack.c.h.bf16 %v1981
          %v2402 = vunpack.c.l.bf16 %v1982
          %v2403 = vunpack.c.l.bf16 %v1983
          %v2404 = vunpack.c.h.bf16 %v1983
          %v2405 = vunpack.c.l.bf16 %v1984
          %v2406 = vunpack.c.h.bf16 %v1984
          %v2407 = vunpack.c.l.bf16 %v1985
          %v2408 = vunpack.c.h.bf16 %v1985
          %v2409 = vunpack.c.l.bf16 %v1986
          %v2410 = vunpack.c.l.bf16 %v1987
          %v2411 = vunpack.c.h.bf16 %v1987
          %v2412 = vunpack.c.l.bf16 %v1988
          %v2413 = vunpack.c.h.bf16 %v1988
          %v2414 = vunpack.c.l.bf16 %v1989
          %v2415 = vunpack.c.h.bf16 %v1989
          %v2416 = vunpack.c.l.bf16 %v1990
          %v2417 = vunpack.c.l.bf16 %v1991
          %v2418 = vunpack.c.h.bf16 %v1991
          %v2419 = vunpack.c.l.bf16 %v1992
          %v2420 = vunpack.c.h.bf16 %v1992
          %v2421 = vunpack.c.l.bf16 %v1993
          %v2422 = vunpack.c.h.bf16 %v1993
          %v2423 = vunpack.c.l.bf16 %v1994
          %v2424 = vunpack.c.l.bf16 %v1995
          %v2425 = vunpack.c.h.bf16 %v1995
          %v2426 = vunpack.c.l.bf16 %v1996
          %v2427 = vunpack.c.h.bf16 %v1996
          %v2428 = vunpack.c.l.bf16 %v1997
          %v2429 = vunpack.c.h.bf16 %v1997
          %v2430 = vunpack.c.l.bf16 %v1998
          %v2431 = vunpack.c.l.bf16 %v1999
          %v2432 = vunpack.c.h.bf16 %v1999
          %v2433 = vunpack.c.l.bf16 %v2000
          %v2434 = vunpack.c.h.bf16 %v2000
          %v2435 = vunpack.c.l.bf16 %v2001
          %v2436 = vunpack.c.h.bf16 %v2001
          %v2437 = vunpack.c.l.bf16 %v2002
          %v2438 = vunpack.c.l.bf16 %v2003
          %v2439 = vunpack.c.h.bf16 %v2003
          %v2440 = vunpack.c.l.bf16 %v2004
          %v2441 = vunpack.c.h.bf16 %v2004
          %v2442 = vunpack.c.l.bf16 %v2005
          %v2443 = vunpack.c.h.bf16 %v2005
          %v2444 = vunpack.c.l.bf16 %v2006
          %v2445 = vunpack.c.l.bf16 %v2007
          %v2446 = vunpack.c.h.bf16 %v2007
          %v2447 = vunpack.c.l.bf16 %v2008
          %v2448 = vunpack.c.h.bf16 %v2008
          %v2449 = vunpack.c.l.bf16 %v2009
          %v2450 = vunpack.c.h.bf16 %v2009
          %v2451 = vunpack.c.l.bf16 %v2010
          %v2452 = vunpack.c.l.bf16 %v2011
          %v2453 = vunpack.c.h.bf16 %v2011
          %v2454 = vunpack.c.l.bf16 %v2012
          %v2455 = vunpack.c.h.bf16 %v2012
          %v2456 = vunpack.c.l.bf16 %v2013
          %v2457 = vunpack.c.h.bf16 %v2013
          %v2458 = vunpack.c.l.bf16 %v2014
          %v2459 = vunpack.c.l.bf16 %v2015
          %v2460 = vunpack.c.h.bf16 %v2015
          %v2461 = vunpack.c.l.bf16 %v2016
          %v2462 = vunpack.c.h.bf16 %v2016
          %v2463 = vunpack.c.l.bf16 %v2017
          %v2464 = vunpack.c.h.bf16 %v2017
          %v2465 = vunpack.c.l.bf16 %v2018
          %v2466 = vunpack.c.l.bf16 %v2019
          %v2467 = vunpack.c.h.bf16 %v2019
          %v2468 = vunpack.c.l.bf16 %v2020
          %v2469 = vunpack.c.h.bf16 %v2020
          %v2470 = vunpack.c.l.bf16 %v2021
          %v2471 = vunpack.c.h.bf16 %v2021
          %v2472 = vunpack.c.l.bf16 %v2022
          %v2473 = vunpack.c.l.bf16 %v2023
          %v2474 = vunpack.c.h.bf16 %v2023
          %v2475 = vunpack.c.l.bf16 %v2024
          %v2476 = vunpack.c.h.bf16 %v2024
          %v2477 = vunpack.c.l.bf16 %v2025
          %v2478 = vunpack.c.h.bf16 %v2025
          %v2479 = vunpack.c.l.bf16 %v2026
          %v2480 = vunpack.c.l.bf16 %v2027
          %v2481 = vunpack.c.h.bf16 %v2027
          %v2482 = vunpack.c.l.bf16 %v2028
          %v2483 = vunpack.c.h.bf16 %v2028
          %v2484 = vunpack.c.l.bf16 %v2029
          %v2485 = vunpack.c.h.bf16 %v2029
          %v2486 = vunpack.c.l.bf16 %v2030
          %v2487 = vunpack.c.l.bf16 %v2031
          %v2488 = vunpack.c.h.bf16 %v2031
          %v2489 = vunpack.c.l.bf16 %v2032
          %v2490 = vunpack.c.h.bf16 %v2032
          %v2491 = vunpack.c.l.bf16 %v2033
          %v2492 = vunpack.c.h.bf16 %v2033
          %v2493 = vunpack.c.l.bf16 %v2034
          %v2494 = vunpack.c.l.bf16 %v2035
          %v2495 = vunpack.c.h.bf16 %v2035
          %v2496 = vunpack.c.l.bf16 %v2036
          %v2497 = vunpack.c.h.bf16 %v2036
          %v2498 = vunpack.c.l.bf16 %v2037
          %v2499 = vunpack.c.h.bf16 %v2037
          %v2500 = vunpack.c.l.bf16 %v2038
          %v2501 = vunpack.c.l.bf16 %v2039
          %v2502 = vunpack.c.h.bf16 %v2039
          %v2503 = vunpack.c.l.bf16 %v2040
          %v2504 = vunpack.c.h.bf16 %v2040
          %v2505 = vunpack.c.l.bf16 %v2041
          %v2506 = vunpack.c.h.bf16 %v2041
          %v2507 = vunpack.c.l.bf16 %v2042
          %v2508 = vunpack.c.l.bf16 %v2043
          %v2509 = vunpack.c.h.bf16 %v2043
          %v2510 = vunpack.c.l.bf16 %v2044
          %v2511 = vunpack.c.h.bf16 %v2044
          %v2512 = vunpack.c.l.bf16 %v2045
          %v2513 = vunpack.c.h.bf16 %v2045
          %v2514 = vunpack.c.l.bf16 %v2046
          %v2515 = vunpack.c.l.bf16 %v2047
          %v2516 = vunpack.c.h.bf16 %v2047
          %v2517 = vunpack.c.l.bf16 %v2048
          %v2518 = vunpack.c.h.bf16 %v2048
          %v2519 = vunpack.c.l.bf16 %v2049
          %v2520 = vunpack.c.h.bf16 %v2049
          %v2521 = vunpack.c.l.bf16 %v2050
          %v2522 = vunpack.c.l.bf16 %v2051
          %v2523 = vunpack.c.h.bf16 %v2051
          %v2524 = vunpack.c.l.bf16 %v2052
          %v2525 = vunpack.c.h.bf16 %v2052
          %v2526 = vunpack.c.l.bf16 %v2053
          %v2527 = vunpack.c.h.bf16 %v2053
          %v2528 = vunpack.c.l.bf16 %v2054
          %v2529 = vunpack.c.l.bf16 %v2055
          %v2530 = vunpack.c.h.bf16 %v2055
          %v2531 = vunpack.c.l.bf16 %v2056
          %v2532 = vunpack.c.h.bf16 %v2056
          %v2533 = vunpack.c.l.bf16 %v2057
          %v2534 = vunpack.c.h.bf16 %v2057
          %v2535 = vunpack.c.l.bf16 %v2058
          %v2536 = vunpack.c.l.bf16 %v2059
          %v2537 = vunpack.c.h.bf16 %v2059
          %v2538 = vunpack.c.l.bf16 %v2060
          %v2539 = vunpack.c.h.bf16 %v2060
          %v2540 = vunpack.c.l.bf16 %v2061
          %v2541 = vunpack.c.h.bf16 %v2061
          %v2542 = vunpack.c.l.bf16 %v2062
          %v2543 = vunpack.c.l.bf16 %v2063
          %v2544 = vunpack.c.h.bf16 %v2063
          %v2545 = vunpack.c.l.bf16 %v2064
          %v2546 = vunpack.c.h.bf16 %v2064
          %v2547 = vunpack.c.l.bf16 %v2065
          %v2548 = vunpack.c.h.bf16 %v2065
          %v2549 = vunpack.c.l.bf16 %v2066
          %v2550 = vunpack.c.l.bf16 %v2067
          %v2551 = vunpack.c.h.bf16 %v2067
          %v2552 = vunpack.c.l.bf16 %v2068
          %v2553 = vunpack.c.h.bf16 %v2068
          %v2554 = vunpack.c.l.bf16 %v2069
          %v2555 = vunpack.c.h.bf16 %v2069
          %v2556 = vunpack.c.l.bf16 %v2070
          %v2557 = vunpack.c.l.bf16 %v2071
          %v2558 = vunpack.c.h.bf16 %v2071
          %v2559 = vunpack.c.l.bf16 %v2072
          %v2560 = vunpack.c.h.bf16 %v2072
          %v2561 = vunpack.c.l.bf16 %v2073
          %v2562 = vunpack.c.h.bf16 %v2073
          %v2563 = vunpack.c.l.bf16 %v2074
          %v2564 = vunpack.c.l.bf16 %v2075
          %v2565 = vunpack.c.h.bf16 %v2075
          %v2566 = vunpack.c.l.bf16 %v2076
          %v2567 = vunpack.c.h.bf16 %v2076
          %v2568 = vunpack.c.l.bf16 %v2077
          %v2569 = vunpack.c.h.bf16 %v2077
          %v2570 = vunpack.c.l.bf16 %v2078
          %v2571 = vunpack.c.l.bf16 %v2079
          %v2572 = vunpack.c.h.bf16 %v2079
          %v2573 = vunpack.c.l.bf16 %v2080
          %v2574 = vunpack.c.h.bf16 %v2080
          %v2575 = vunpack.c.l.bf16 %v2081
          %v2576 = vunpack.c.h.bf16 %v2081
          %v2577 = vunpack.c.l.bf16 %v2082
          %v2578 = vunpack.c.l.bf16 %v2083
          %v2579 = vunpack.c.h.bf16 %v2083
          %v2580 = vunpack.c.l.bf16 %v2084
          %v2581 = vunpack.c.h.bf16 %v2084
          %v2582 = vunpack.c.l.bf16 %v2085
          %v2583 = vunpack.c.h.bf16 %v2085
          %v2584 = vunpack.c.l.bf16 %v2086
          %v2585 = vunpack.c.l.bf16 %v2087
          %v2586 = vunpack.c.h.bf16 %v2087
          %v2587 = vunpack.c.l.bf16 %v2088
          %v2588 = vunpack.c.h.bf16 %v2088
          %v2589 = vunpack.c.l.bf16 %v2089
          %v2590 = vunpack.c.h.bf16 %v2089
          %v2591 = vunpack.c.l.bf16 %v2090
          %v2592 = vunpack.c.l.bf16 %v2091
          %v2593 = vunpack.c.h.bf16 %v2091
          %v2594 = vunpack.c.l.bf16 %v2092
          %v2595 = vunpack.c.h.bf16 %v2092
          %v2596 = vunpack.c.l.bf16 %v2093
          %v2597 = vunpack.c.h.bf16 %v2093
          %v2598 = vunpack.c.l.bf16 %v2094
          %v2599 = vunpack.c.l.bf16 %v2095
          %v2600 = vunpack.c.h.bf16 %v2095
          %v2601 = vunpack.c.l.bf16 %v2096
          %v2602 = vunpack.c.h.bf16 %v2096
          %v2603 = vunpack.c.l.bf16 %v2097
          %v2604 = vunpack.c.h.bf16 %v2097
          %v2605 = vunpack.c.l.bf16 %v2098
          %v2606 = vunpack.c.l.bf16 %v2099
          %v2607 = vunpack.c.h.bf16 %v2099
          %v2608 = vunpack.c.l.bf16 %v2100
          %v2609 = vunpack.c.h.bf16 %v2100
          %v2610 = vunpack.c.l.bf16 %v2101
          %v2611 = vunpack.c.h.bf16 %v2101
          %v2612 = vunpack.c.l.bf16 %v2102
          %v2613 = vunpack.c.l.bf16 %v2103
          %v2614 = vunpack.c.h.bf16 %v2103
          %v2615 = vunpack.c.l.bf16 %v2104
          %v2616 = vunpack.c.h.bf16 %v2104
          %v2617 = vunpack.c.l.bf16 %v2105
          %v2618 = vunpack.c.h.bf16 %v2105
          %v2619 = vunpack.c.l.bf16 %v2106
          %v2620 = vunpack.c.l.bf16 %v2107
          %v2621 = vunpack.c.h.bf16 %v2107
          %v2622 = vunpack.c.l.bf16 %v2108
          %v2623 = vunpack.c.h.bf16 %v2108
          %v2624 = vunpack.c.l.bf16 %v2109
          %v2625 = vunpack.c.h.bf16 %v2109
          %v2626 = vunpack.c.l.bf16 %v2110
          %v2627 = vunpack.c.l.bf16 %v2111
          %v2628 = vunpack.c.h.bf16 %v2111
          %v2629 = vunpack.c.l.bf16 %v2112
          %v2630 = vunpack.c.h.bf16 %v2112
          %v2631 = vunpack.c.l.bf16 %v2113
          %v2632 = vunpack.c.h.bf16 %v2113
          %v2633 = vunpack.c.l.bf16 %v2114
          %v2634 = vunpack.c.l.bf16 %v2115
          %v2635 = vunpack.c.h.bf16 %v2115
          %v2636 = vunpack.c.l.bf16 %v2116
          %v2637 = vunpack.c.h.bf16 %v2116
          %v2638 = vunpack.c.l.bf16 %v2117
          %v2639 = vunpack.c.h.bf16 %v2117
          %v2640 = vunpack.c.l.bf16 %v2118
          %v2641 = vunpack.c.l.bf16 %v2119
          %v2642 = vunpack.c.h.bf16 %v2119
          %v2643 = vunpack.c.l.bf16 %v2120
          %v2644 = vunpack.c.h.bf16 %v2120
          %v2645 = vunpack.c.l.bf16 %v2121
          %v2646 = vunpack.c.h.bf16 %v2121
          %v2647 = vunpack.c.l.bf16 %v2122
          %v2648 = vunpack.c.l.bf16 %v2123
          %v2649 = vunpack.c.h.bf16 %v2123
          %v2650 = vunpack.c.l.bf16 %v2124
          %v2651 = vunpack.c.h.bf16 %v2124
          %v2652 = vunpack.c.l.bf16 %v2125
          %v2653 = vunpack.c.h.bf16 %v2125
          %v2654 = vunpack.c.l.bf16 %v2126
          %v2655 = vunpack.c.l.bf16 %v2127
          %v2656 = vunpack.c.h.bf16 %v2127
          %v2657 = vunpack.c.l.bf16 %v2128
          %v2658 = vunpack.c.h.bf16 %v2128
          %v2659 = vunpack.c.l.bf16 %v2129
          %v2660 = vunpack.c.h.bf16 %v2129
          %v2661 = vunpack.c.l.bf16 %v2130
          %v2662 = vunpack.c.l.bf16 %v2131
          %v2663 = vunpack.c.h.bf16 %v2131
          %v2664 = vunpack.c.l.bf16 %v2132
          %v2665 = vunpack.c.h.bf16 %v2132
          %v2666 = vunpack.c.l.bf16 %v2133
          %v2667 = vunpack.c.h.bf16 %v2133
          %v2668 = vunpack.c.l.bf16 %v2134
          %v2669 = vunpack.c.l.bf16 %v2135
          %v2670 = vunpack.c.h.bf16 %v2135
          %v2671 = vunpack.c.l.bf16 %v2136
          %v2672 = vunpack.c.h.bf16 %v2136
          %v2673 = vunpack.c.l.bf16 %v2137
          %v2674 = vunpack.c.h.bf16 %v2137
          %v2675 = vunpack.c.l.bf16 %v2138
          %v2676 = vunpack.c.l.bf16 %v2139
          %v2677 = vunpack.c.h.bf16 %v2139
          %v2678 = vunpack.c.l.bf16 %v2140
          %v2679 = vunpack.c.h.bf16 %v2140
          %v2680 = vunpack.c.l.bf16 %v2141
          %v2681 = vunpack.c.h.bf16 %v2141
          %v2682 = vunpack.c.l.bf16 %v2142
          %v2683 = vunpack.c.l.bf16 %v2143
          %v2684 = vunpack.c.h.bf16 %v2143
          %v2685 = vunpack.c.l.bf16 %v2144
          %v2686 = vunpack.c.h.bf16 %v2144
          %v2687 = vunpack.c.l.bf16 %v2145
          %v2688 = vunpack.c.h.bf16 %v2145
          %v2689 = vunpack.c.l.bf16 %v2146
          %v2690 = vunpack.c.l.bf16 %v2147
          %v2691 = vunpack.c.h.bf16 %v2147
          %v2692 = vunpack.c.l.bf16 %v2148
          %v2693 = vunpack.c.h.bf16 %v2148
          %v2694 = vunpack.c.l.bf16 %v2149
          %v2695 = vunpack.c.h.bf16 %v2149
          %v2696 = vunpack.c.l.bf16 %v2150
          %v2697 = vunpack.c.l.bf16 %v2151
          %v2698 = vunpack.c.h.bf16 %v2151
          %v2699 = vunpack.c.l.bf16 %v2152
          %v2700 = vunpack.c.h.bf16 %v2152
          %v2701 = vunpack.c.l.bf16 %v2153
          %v2702 = vunpack.c.h.bf16 %v2153
          %v2703 = vunpack.c.l.bf16 %v2154
          %v2704 = vunpack.c.l.bf16 %v2155
          %v2705 = vunpack.c.h.bf16 %v2155
          %v2706 = vunpack.c.l.bf16 %v2156
          %v2707 = vunpack.c.h.bf16 %v2156
          %v2708 = vunpack.c.l.bf16 %v2157
          %v2709 = vunpack.c.h.bf16 %v2157
          %v2710 = vunpack.c.l.bf16 %v2158
          %v2711 = vunpack.c.l.bf16 %v2159
          %v2712 = vunpack.c.h.bf16 %v2159
          %v2713 = vunpack.c.l.bf16 %v2160
          %v2714 = vunpack.c.h.bf16 %v2160
          %v2715 = vunpack.c.l.bf16 %v2161
          %v2716 = vunpack.c.h.bf16 %v2161
          %v2717 = vunpack.c.l.bf16 %v2162
          %v2718 = vunpack.c.l.bf16 %v2163
          %v2719 = vunpack.c.h.bf16 %v2163
          %v2720 = vunpack.c.l.bf16 %v2164
          %v2721 = vunpack.c.h.bf16 %v2164
          %v2722 = vunpack.c.l.bf16 %v2165
          %v2723 = vunpack.c.h.bf16 %v2165
          %v2724 = vunpack.c.l.bf16 %v2166
          %v2725 = vunpack.c.l.bf16 %v2167
          %v2726 = vunpack.c.h.bf16 %v2167
          %v2727 = vunpack.c.l.bf16 %v2168
          %v2728 = vunpack.c.h.bf16 %v2168
          %v2729 = vunpack.c.l.bf16 %v2169
          %v2730 = vunpack.c.h.bf16 %v2169
          %v2731 = vunpack.c.l.bf16 %v2170
          %v2732 = vunpack.c.l.bf16 %v2171
          %v2733 = vunpack.c.h.bf16 %v2171
          %v2734 = vunpack.c.l.bf16 %v2172
          %v2735 = vunpack.c.h.bf16 %v2172
          %v2736 = vunpack.c.l.bf16 %v2173
          %v2737 = vunpack.c.h.bf16 %v2173
          %v2738 = vunpack.c.l.bf16 %v2174
          %v2739 = vunpack.c.l.bf16 %v2175
          %v2740 = vunpack.c.h.bf16 %v2175
          %v2741 = vunpack.c.l.bf16 %v2176
          %v2742 = vunpack.c.h.bf16 %v2176
          %v2743 = vunpack.c.l.bf16 %v2177
          %v2744 = vunpack.c.h.bf16 %v2177
          %v2745 = vunpack.c.l.bf16 %v2178
          %v2746 = vunpack.c.l.bf16 %v2179
          %v2747 = vunpack.c.h.bf16 %v2179
          %v2748 = vunpack.c.l.bf16 %v2180
          %v2749 = vunpack.c.h.bf16 %v2180
          %v2750 = vunpack.c.l.bf16 %v2181
          %v2751 = vunpack.c.h.bf16 %v2181
          %v2752 = vunpack.c.l.bf16 %v2182
          %v2753 = vunpack.c.l.bf16 %v2183
          %v2754 = vunpack.c.h.bf16 %v2183
          %v2755 = vunpack.c.l.bf16 %v2184
          %v2756 = vunpack.c.h.bf16 %v2184
          %v2757 = vunpack.c.l.bf16 %v2185
          %v2758 = vunpack.c.h.bf16 %v2185
          %v2759 = vunpack.c.l.bf16 %v2186
          %v2760 = vunpack.c.l.bf16 %v2187
          %v2761 = vunpack.c.h.bf16 %v2187
          %v2762 = vunpack.c.l.bf16 %v2188
          %v2763 = vunpack.c.h.bf16 %v2188
          %v2764 = vunpack.c.l.bf16 %v2189
          %v2765 = vunpack.c.h.bf16 %v2189
          %v2766 = vunpack.c.l.bf16 %v2190
          %v2767 = vunpack.c.l.bf16 %v2191
          %v2768 = vunpack.c.h.bf16 %v2191
          %v2769 = vunpack.c.l.bf16 %v2192
          %v2770 = vunpack.c.h.bf16 %v2192
          %v2771 = vunpack.c.l.bf16 %v2193
          %v2772 = vunpack.c.h.bf16 %v2193
          %v2773 = vunpack.c.l.bf16 %v2194
          %v2774 = vunpack.c.l.bf16 %v2195
          %v2775 = vunpack.c.h.bf16 %v2195
          %v2776 = vunpack.c.l.bf16 %v2196
          %v2777 = vunpack.c.h.bf16 %v2196
          %v2778 = vunpack.c.l.bf16 %v2197
          %v2779 = vunpack.c.h.bf16 %v2197
          %v2780 = vunpack.c.l.bf16 %v2198
          %v2781 = vunpack.c.l.bf16 %v2199
          %v2782 = vunpack.c.h.bf16 %v2199
          %v2783 = vunpack.c.l.bf16 %v2200
          %v2784 = vunpack.c.h.bf16 %v2200
          %v2785 = vunpack.c.l.bf16 %v2201
          %v2786 = vunpack.c.h.bf16 %v2201
          %v2787 = vunpack.c.l.bf16 %v2202
          %v2788 = vunpack.c.l.bf16 %v2203
          %v2789 = vunpack.c.h.bf16 %v2203
          %v2790 = vunpack.c.l.bf16 %v2204
          %v2791 = vunpack.c.h.bf16 %v2204
          %v2792 = vunpack.c.l.bf16 %v2205
          %v2793 = vunpack.c.h.bf16 %v2205
          %v2794 = vunpack.c.l.bf16 %v2206
          %v2795 = vunpack.c.l.bf16 %v2207
          %v2796 = vunpack.c.h.bf16 %v2207
          %v2797 = vunpack.c.l.bf16 %v2208
          %v2798 = vunpack.c.h.bf16 %v2208
          %v2799 = vunpack.c.l.bf16 %v2209
          %v2800 = vunpack.c.h.bf16 %v2209
          %v2801 = vunpack.c.l.bf16 %v2210
          %v2802 = vunpack.c.l.bf16 %v2211
          %v2803 = vunpack.c.h.bf16 %v2211
          %v2804 = vunpack.c.l.bf16 %v2212
          %v2805 = vunpack.c.h.bf16 %v2212
          %v2806 = vunpack.c.l.bf16 %v2213
          %v2807 = vunpack.c.h.bf16 %v2213
          %v2808 = vunpack.c.l.bf16 %v2214
          %v2809 = vunpack.c.l.bf16 %v2215
          %v2810 = vunpack.c.h.bf16 %v2215
          %v2811 = vunpack.c.l.bf16 %v2216
          %v2812 = vunpack.c.h.bf16 %v2216
          %v2813 = vunpack.c.l.bf16 %v2217
          %v2814 = vunpack.c.h.bf16 %v2217
          %v2815 = vunpack.c.l.bf16 %v2218
          %v2816 = vunpack.c.l.bf16 %v2219
          %v2817 = vunpack.c.h.bf16 %v2219
          %v2818 = vunpack.c.l.bf16 %v2220
          %v2819 = vunpack.c.h.bf16 %v2220
          %v2820 = vunpack.c.l.bf16 %v2221
          %v2821 = vunpack.c.h.bf16 %v2221
          %v2822 = vunpack.c.l.bf16 %v2222
          %v2823 = vunpack.c.l.bf16 %v2223
          %v2824 = vunpack.c.h.bf16 %v2223
          %v2825 = vunpack.c.l.bf16 %v2224
          %v2826 = vunpack.c.h.bf16 %v2224
          %v2827 = vunpack.c.l.bf16 %v2225
          %v2828 = vunpack.c.h.bf16 %v2225
          %v2829 = vunpack.c.l.bf16 %v2226
          %v2830 = vunpack.c.l.bf16 %v2227
          %v2831 = vunpack.c.h.bf16 %v2227
          %v2832 = vunpack.c.l.bf16 %v2228
          %v2833 = vunpack.c.h.bf16 %v2228
          %v2834 = vunpack.c.l.bf16 %v2229
          %v2835 = vunpack.c.h.bf16 %v2229
          %v2836 = vunpack.c.l.bf16 %v2230
          %v2837 = vunpack.c.l.bf16 %v2231
          %v2838 = vunpack.c.h.bf16 %v2231
          %v2839 = vunpack.c.l.bf16 %v2232
          %v2840 = vunpack.c.h.bf16 %v2232
          %v2841 = vunpack.c.l.bf16 %v2233
          %v2842 = vunpack.c.h.bf16 %v2233
          %v2843 = vunpack.c.l.bf16 %v2234
          %v2844 = vunpack.c.l.bf16 %v2235
          %v2845 = vunpack.c.h.bf16 %v2235
          %v2846 = vunpack.c.l.bf16 %v2236
          %v2847 = vunpack.c.h.bf16 %v2236
          %v2848 = vunpack.c.l.bf16 %v2237
          %v2849 = vunpack.c.h.bf16 %v2237
          %v2850 = vunpack.c.l.bf16 %v2238
          %v2851 = vunpack.c.l.bf16 %v2239
          %v2852 = vunpack.c.h.bf16 %v2239
          %v2853 = vunpack.c.l.bf16 %v2240
          %v2854 = vunpack.c.h.bf16 %v2240
          %v2855 = vunpack.c.l.bf16 %v2241
          %v2856 = vunpack.c.h.bf16 %v2241
          %v2857 = vunpack.c.l.bf16 %v2242
          %v2858 = vunpack.c.l.bf16 %v2243
          %v2859 = vunpack.c.h.bf16 %v2243
          %v2860 = vunpack.c.l.bf16 %v2244
          %v2861 = vunpack.c.h.bf16 %v2244
          %v2862 = vunpack.c.l.bf16 %v2245
          %v2863 = vunpack.c.h.bf16 %v2245
          %v2864 = vunpack.c.l.bf16 %v2246
          %v2865 = vunpack.c.l.bf16 %v2247
          %v2866 = vunpack.c.h.bf16 %v2247
          %v2867 = vunpack.c.l.bf16 %v2248
          %v2868 = vunpack.c.h.bf16 %v2248
          %v2869 = vunpack.c.l.bf16 %v2249
          %v2870 = vunpack.c.h.bf16 %v2249
          %v2871 = vunpack.c.l.bf16 %v2250
          %v2872 = vunpack.c.l.bf16 %v2251
          %v2873 = vunpack.c.h.bf16 %v2251
          %v2874 = vunpack.c.l.bf16 %v2252
          %v2875 = vunpack.c.h.bf16 %v2252
          %v2876 = vunpack.c.l.bf16 %v2253
          %v2877 = vunpack.c.h.bf16 %v2253
          %v2878 = vunpack.c.l.bf16 %v2254
          %v2879 = vunpack.c.l.bf16 %v2255
          %v2880 = vunpack.c.h.bf16 %v2255
          %v2881 = vunpack.c.l.bf16 %v2256
          %v2882 = vunpack.c.h.bf16 %v2256
          %v2883 = vunpack.c.l.bf16 %v2257
          %v2884 = vunpack.c.h.bf16 %v2257
          %v2885 = vunpack.c.l.bf16 %v2258
          %v2886 = vunpack.c.l.bf16 %v2259
          %v2887 = vunpack.c.h.bf16 %v2259
          %v2888 = vunpack.c.l.bf16 %v2260
          %v2889 = vunpack.c.h.bf16 %v2260
          %v2890 = vunpack.c.l.bf16 %v2261
          %v2891 = vunpack.c.h.bf16 %v2261
          %v2892 = vunpack.c.l.bf16 %v2262
          %v2893 = vunpack.c.l.bf16 %v2263
          %v2894 = vunpack.c.h.bf16 %v2263
          %v2895 = vunpack.c.l.bf16 %v2264
          %v2896 = vunpack.c.h.bf16 %v2264
          %v2897 = vunpack.c.l.bf16 %v2265
          %v2898 = vunpack.c.h.bf16 %v2265
          %v2899 = vunpack.c.l.bf16 %v2266
          %v2900 = vunpack.c.l.bf16 %v2267
          %v2901 = vunpack.c.h.bf16 %v2267
          %v2902 = vunpack.c.l.bf16 %v2268
          %v2903 = vunpack.c.h.bf16 %v2268
          %v2904 = vunpack.c.l.bf16 %v2269
          %v2905 = vunpack.c.h.bf16 %v2269
          %v2906 = vunpack.c.l.bf16 %v2270
          %v2907 = vunpack.c.l.bf16 %v2271
          %v2908 = vunpack.c.h.bf16 %v2271
          %v2909 = vunpack.c.l.bf16 %v2272
          %v2910 = vunpack.c.h.bf16 %v2272
          %v2911 = vunpack.c.l.bf16 %v2273
          %v2912 = vunpack.c.h.bf16 %v2273
          %v2913 = vunpack.c.l.bf16 %v2274
          %v2914 = vunpack.c.l.bf16 %v2275
          %v2915 = vunpack.c.h.bf16 %v2275
          %v2916 = vunpack.c.l.bf16 %v2276
          %v2917 = vunpack.c.h.bf16 %v2276
          %v2918 = vunpack.c.l.bf16 %v2277
          %v2919 = vunpack.c.h.bf16 %v2277
          %v2920 = vunpack.c.l.bf16 %v2278
          %v2921 = vunpack.c.l.bf16 %v2279
          %v2922 = vunpack.c.h.bf16 %v2279
          %v2923 = vunpack.c.l.bf16 %v2280
          %v2924 = vunpack.c.h.bf16 %v2280
          %v2925 = vunpack.c.l.bf16 %v2281
          %v2926 = vunpack.c.h.bf16 %v2281
          %v2927 = vunpack.c.l.bf16 %v2282
          %v2928 = vunpack.c.l.bf16 %v2283
          %v2929 = vunpack.c.h.bf16 %v2283
          %v2930 = vunpack.c.l.bf16 %v2284
          %v2931 = vunpack.c.h.bf16 %v2284
          %v2932 = vunpack.c.l.bf16 %v2285
          %v2933 = vunpack.c.h.bf16 %v2285
          %v2934 = vunpack.c.l.bf16 %v2286
          %v2935 = vunpack.c.l.bf16 %v2287
          %v2936 = vunpack.c.h.bf16 %v2287
          %v2937 = vunpack.c.l.bf16 %v2288
          %v2938 = vunpack.c.h.bf16 %v2288
          %v2939 = vunpack.c.l.bf16 %v2289
          %v2940 = vunpack.c.h.bf16 %v2289
          %v2941 = vunpack.c.l.bf16 %v2290
          %v2942 = vunpack.c.l.bf16 %v2291
          %v2943 = vunpack.c.h.bf16 %v2291
          %v2944 = vunpack.c.l.bf16 %v2292
          %v2945 = vunpack.c.h.bf16 %v2292
          %v2946 = vunpack.c.l.bf16 %v2293
          %v2947 = vunpack.c.h.bf16 %v2293
          %v2948 = vunpack.c.l.bf16 %v2294
          %v2949 = vunpack.c.l.bf16 %v2295
          %v2950 = vunpack.c.h.bf16 %v2295
          %v2951 = vunpack.c.l.bf16 %v2296
          %v2952 = vunpack.c.h.bf16 %v2296
          %v2953 = vunpack.c.l.bf16 %v2297
          %v2954 = vunpack.c.h.bf16 %v2297
          %v2955 = vunpack.c.l.bf16 %v2298
          %v2956 = vunpack.c.l.bf16 %v2299
          %v2957 = vunpack.c.h.bf16 %v2299
          %v2958 = vunpack.c.l.bf16 %v2300
          %v2959 = vunpack.c.h.bf16 %v2300
          %v2960 = vunpack.c.l.bf16 %v2301
          %v2961 = vunpack.c.h.bf16 %v2301
          %v2962 = vunpack.c.l.bf16 %v2302
          %v2963 = vunpack.c.l.bf16 %v2303
          %v2964 = vunpack.c.h.bf16 %v2303
          %v2965 = vunpack.c.l.bf16 %v2304
          %v2966 = vunpack.c.h.bf16 %v2304
          %v2967 = vunpack.c.l.bf16 %v2305
          %v2968 = vunpack.c.h.bf16 %v2305
          %v2969 = vunpack.c.l.bf16 %v2306
          %v2970 = vunpack.c.l.bf16 %v2307
          %v2971 = vunpack.c.h.bf16 %v2307
          %v2972 = vunpack.c.l.bf16 %v2308
          %v2973 = vunpack.c.h.bf16 %v2308
          %v2974 = vunpack.c.l.bf16 %v2309
          %v2975 = vunpack.c.h.bf16 %v2309
          %v2976 = vunpack.c.l.bf16 %v2310
          %v2977 = vunpack.c.l.bf16 %v2311
          %v2978 = vunpack.c.h.bf16 %v2311
          %v2979 = vunpack.c.l.bf16 %v2312
          %v2980 = vunpack.c.h.bf16 %v2312
          %v2981 = vunpack.c.l.bf16 %v2313
          %v2982 = vunpack.c.h.bf16 %v2313
          %v2983 = vunpack.c.l.bf16 %v2314
          %v2984 = vunpack.c.l.bf16 %v2315
          %v2985 = vunpack.c.h.bf16 %v2315
          %v2986 = vunpack.c.l.bf16 %v2316
          %v2987 = vunpack.c.h.bf16 %v2316
          %v2988 = vunpack.c.l.bf16 %v2317
          %v2989 = vunpack.c.h.bf16 %v2317
          %v2990 = vunpack.c.l.bf16 %v2318
          %v2991 = vld [vmem:[#allocation9] sm:$0xff]
          %v2993 = vperm.slane %v2991, 0
          %v2994 = vperm.slane %v2991, 1
          %v2995 = vperm.slane %v2991, 2
          %v2996 = vperm.slane %v2991, 3
          %v2997 = vperm.slane %v2991, 4
          %v2998 = vperm.slane %v2991, 5
          %v2999 = vperm.slane %v2991, 6
          %3007 = vmatpush.msra.mxu0 %v2424
          %3008 = vmatpush.msra.mxu0 %v2417
          %3009 = vmatpush.msra.mxu0 %v2410
          %3010 = vmatpush.msra.mxu0 %v2403
          %3011 = vmatpush.msra.mxu0 %v2396
          %3012 = vmatpush.msra.mxu0 %v2389
          %3013 = vmatpush.msra.mxu0 %v2382
          %3014 = vmatpush.msra.mxu0 %v2375
          %3015 = vmatpush.msra.mxu0 %v2368
          %3016 = vmatpush.msra.mxu0 %v2361
          %3017 = vmatpush.msra.mxu0 %v2354
          %3018 = vmatpush.msra.mxu0 %v2347
          %3019 = vmatpush.msra.mxu0 %v2340
          %3020 = vmatpush.msra.mxu0 %v2333
          %3021 = vmatpush.msra.mxu0 %v2326
          %3022 = vmatpush.msra.mxu0 %v2319
          %3023 = vmatmul.f32.gmra.mxu0 %v1929
          %v3024 = vpop.f32.mrf.mxu0
          %v3025 = vadd.f32 %v2993, %v3024
          %3026 = vdwg.mxu0
          %3027 = vmatpush.msra.mxu0 %v2536
          %3028 = vmatpush.msra.mxu0 %v2529
          %3029 = vmatpush.msra.mxu0 %v2522
          %3030 = vmatpush.msra.mxu0 %v2515
          %3031 = vmatpush.msra.mxu0 %v2508
          %3032 = vmatpush.msra.mxu0 %v2501
          %3033 = vmatpush.msra.mxu0 %v2494
          %3034 = vmatpush.msra.mxu0 %v2487
          %3035 = vmatpush.msra.mxu0 %v2480
          %3036 = vmatpush.msra.mxu0 %v2473
          %3037 = vmatpush.msra.mxu0 %v2466
          %3038 = vmatpush.msra.mxu0 %v2459
          %3039 = vmatpush.msra.mxu0 %v2452
          %3040 = vmatpush.msra.mxu0 %v2445
          %3041 = vmatpush.msra.mxu0 %v2438
          %3042 = vmatpush.msra.mxu0 %v2431
          %3043 = vmatmul.f32.gmra.mxu0 %v1930
          %v3044 = vpop.f32.mrf.mxu0
          %v3045 = vadd.f32 %v3025, %v3044
          %3046 = vdwg.mxu0
          %3047 = vmatpush.msra.mxu0 %v2648
          %3048 = vmatpush.msra.mxu0 %v2641
          %3049 = vmatpush.msra.mxu0 %v2634
          %3050 = vmatpush.msra.mxu0 %v2627
          %3051 = vmatpush.msra.mxu0 %v2620
          %3052 = vmatpush.msra.mxu0 %v2613
          %3053 = vmatpush.msra.mxu0 %v2606
          %3054 = vmatpush.msra.mxu0 %v2599
          %3055 = vmatpush.msra.mxu0 %v2592
          %3056 = vmatpush.msra.mxu0 %v2585
          %3057 = vmatpush.msra.mxu0 %v2578
          %3058 = vmatpush.msra.mxu0 %v2571
          %3059 = vmatpush.msra.mxu0 %v2564
          %3060 = vmatpush.msra.mxu0 %v2557
          %3061 = vmatpush.msra.mxu0 %v2550
          %3062 = vmatpush.msra.mxu0 %v2543
          %3063 = vmatmul.f32.gmra.mxu0 %v1931
          %v3064 = vpop.f32.mrf.mxu0
          %v3065 = vadd.f32 %v3045, %v3064
          %3066 = vdwg.mxu0
          %3067 = vmatpush.msra.mxu0 %v2760
          %3068 = vmatpush.msra.mxu0 %v2753
          %3069 = vmatpush.msra.mxu0 %v2746
          %3070 = vmatpush.msra.mxu0 %v2739
          %3071 = vmatpush.msra.mxu0 %v2732
          %3072 = vmatpush.msra.mxu0 %v2725
          %3073 = vmatpush.msra.mxu0 %v2718
          %3074 = vmatpush.msra.mxu0 %v2711
          %3075 = vmatpush.msra.mxu0 %v2704
          %3076 = vmatpush.msra.mxu0 %v2697
          %3077 = vmatpush.msra.mxu0 %v2690
          %3078 = vmatpush.msra.mxu0 %v2683
          %3079 = vmatpush.msra.mxu0 %v2676
          %3080 = vmatpush.msra.mxu0 %v2669
          %3081 = vmatpush.msra.mxu0 %v2662
          %3082 = vmatpush.msra.mxu0 %v2655
          %3083 = vmatmul.f32.gmra.mxu0 %v1932
          %v3084 = vpop.f32.mrf.mxu0
          %v3085 = vadd.f32 %v3065, %v3084
          %3086 = vdwg.mxu0
          %3087 = vmatpush.msra.mxu0 %v2872
          %3088 = vmatpush.msra.mxu0 %v2865
          %3089 = vmatpush.msra.mxu0 %v2858
          %3090 = vmatpush.msra.mxu0 %v2851
          %3091 = vmatpush.msra.mxu0 %v2844
          %3092 = vmatpush.msra.mxu0 %v2837
          %3093 = vmatpush.msra.mxu0 %v2830
          %3094 = vmatpush.msra.mxu0 %v2823
          %3095 = vmatpush.msra.mxu0 %v2816
          %3096 = vmatpush.msra.mxu0 %v2809
          %3097 = vmatpush.msra.mxu0 %v2802
          %3098 = vmatpush.msra.mxu0 %v2795
          %3099 = vmatpush.msra.mxu0 %v2788
          %3100 = vmatpush.msra.mxu0 %v2781
          %3101 = vmatpush.msra.mxu0 %v2774
          %3102 = vmatpush.msra.mxu0 %v2767
          %3103 = vmatmul.f32.gmra.mxu0 %v1933
          %v3104 = vpop.f32.mrf.mxu0
          %v3105 = vadd.f32 %v3085, %v3104
          %3106 = vdwg.mxu0
          %3107 = vmatpush.msra.mxu0 %v2984
          %3108 = vmatpush.msra.mxu0 %v2977
          %3109 = vmatpush.msra.mxu0 %v2970
          %3110 = vmatpush.msra.mxu0 %v2963
          %3111 = vmatpush.msra.mxu0 %v2956
          %3112 = vmatpush.msra.mxu0 %v2949
          %3113 = vmatpush.msra.mxu0 %v2942
          %3114 = vmatpush.msra.mxu0 %v2935
          %3115 = vmatpush.msra.mxu0 %v2928
          %3116 = vmatpush.msra.mxu0 %v2921
          %3117 = vmatpush.msra.mxu0 %v2914
          %3118 = vmatpush.msra.mxu0 %v2907
          %3119 = vmatpush.msra.mxu0 %v2900
          %3120 = vmatpush.msra.mxu0 %v2893
          %3121 = vmatpush.msra.mxu0 %v2886
          %3122 = vmatpush.msra.mxu0 %v2879
          %3123 = vmatmul.f32.gmra.mxu0 %v1934
          %v3124 = vpop.f32.mrf.mxu0
          %v3125 = vadd.f32 %v3105, %v3124
          %3126 = vdwg.mxu0
          %3127 = vmatpush.msra.mxu0 %v2425
          %3128 = vmatpush.msra.mxu0 %v2418
          %3129 = vmatpush.msra.mxu0 %v2411
          %3130 = vmatpush.msra.mxu0 %v2404
          %3131 = vmatpush.msra.mxu0 %v2397
          %3132 = vmatpush.msra.mxu0 %v2390
          %3133 = vmatpush.msra.mxu0 %v2383
          %3134 = vmatpush.msra.mxu0 %v2376
          %3135 = vmatpush.msra.mxu0 %v2369
          %3136 = vmatpush.msra.mxu0 %v2362
          %3137 = vmatpush.msra.mxu0 %v2355
          %3138 = vmatpush.msra.mxu0 %v2348
          %3139 = vmatpush.msra.mxu0 %v2341
          %3140 = vmatpush.msra.mxu0 %v2334
          %3141 = vmatpush.msra.mxu0 %v2327
          %3142 = vmatpush.msra.mxu0 %v2320
          %3143 = vmatmul.f32.gmra.mxu0 %v1929
          %v3144 = vpop.f32.mrf.mxu0
          %v3145 = vadd.f32 %v2994, %v3144
          %3146 = vdwg.mxu0
          %3147 = vmatpush.msra.mxu0 %v2537
          %3148 = vmatpush.msra.mxu0 %v2530
          %3149 = vmatpush.msra.mxu0 %v2523
          %3150 = vmatpush.msra.mxu0 %v2516
          %3151 = vmatpush.msra.mxu0 %v2509
          %3152 = vmatpush.msra.mxu0 %v2502
          %3153 = vmatpush.msra.mxu0 %v2495
          %3154 = vmatpush.msra.mxu0 %v2488
          %3155 = vmatpush.msra.mxu0 %v2481
          %3156 = vmatpush.msra.mxu0 %v2474
          %3157 = vmatpush.msra.mxu0 %v2467
          %3158 = vmatpush.msra.mxu0 %v2460
          %3159 = vmatpush.msra.mxu0 %v2453
          %3160 = vmatpush.msra.mxu0 %v2446
          %3161 = vmatpush.msra.mxu0 %v2439
          %3162 = vmatpush.msra.mxu0 %v2432
          %3163 = vmatmul.f32.gmra.mxu0 %v1930
          %v3164 = vpop.f32.mrf.mxu0
          %v3165 = vadd.f32 %v3145, %v3164
          %3166 = vdwg.mxu0
          %3167 = vmatpush.msra.mxu0 %v2649
          %3168 = vmatpush.msra.mxu0 %v2642
          %3169 = vmatpush.msra.mxu0 %v2635
          %3170 = vmatpush.msra.mxu0 %v2628
          %3171 = vmatpush.msra.mxu0 %v2621
          %3172 = vmatpush.msra.mxu0 %v2614
          %3173 = vmatpush.msra.mxu0 %v2607
          %3174 = vmatpush.msra.mxu0 %v2600
          %3175 = vmatpush.msra.mxu0 %v2593
          %3176 = vmatpush.msra.mxu0 %v2586
          %3177 = vmatpush.msra.mxu0 %v2579
          %3178 = vmatpush.msra.mxu0 %v2572
          %3179 = vmatpush.msra.mxu0 %v2565
          %3180 = vmatpush.msra.mxu0 %v2558
          %3181 = vmatpush.msra.mxu0 %v2551
          %3182 = vmatpush.msra.mxu0 %v2544
          %3183 = vmatmul.f32.gmra.mxu0 %v1931
          %v3184 = vpop.f32.mrf.mxu0
          %v3185 = vadd.f32 %v3165, %v3184
          %3186 = vdwg.mxu0
          %3187 = vmatpush.msra.mxu0 %v2761
          %3188 = vmatpush.msra.mxu0 %v2754
          %3189 = vmatpush.msra.mxu0 %v2747
          %3190 = vmatpush.msra.mxu0 %v2740
          %3191 = vmatpush.msra.mxu0 %v2733
          %3192 = vmatpush.msra.mxu0 %v2726
          %3193 = vmatpush.msra.mxu0 %v2719
          %3194 = vmatpush.msra.mxu0 %v2712
          %3195 = vmatpush.msra.mxu0 %v2705
          %3196 = vmatpush.msra.mxu0 %v2698
          %3197 = vmatpush.msra.mxu0 %v2691
          %3198 = vmatpush.msra.mxu0 %v2684
          %3199 = vmatpush.msra.mxu0 %v2677
          %3200 = vmatpush.msra.mxu0 %v2670
          %3201 = vmatpush.msra.mxu0 %v2663
          %3202 = vmatpush.msra.mxu0 %v2656
          %3203 = vmatmul.f32.gmra.mxu0 %v1932
          %v3204 = vpop.f32.mrf.mxu0
          %v3205 = vadd.f32 %v3185, %v3204
          %3206 = vdwg.mxu0
          %3207 = vmatpush.msra.mxu0 %v2873
          %3208 = vmatpush.msra.mxu0 %v2866
          %3209 = vmatpush.msra.mxu0 %v2859
          %3210 = vmatpush.msra.mxu0 %v2852
          %3211 = vmatpush.msra.mxu0 %v2845
          %3212 = vmatpush.msra.mxu0 %v2838
          %3213 = vmatpush.msra.mxu0 %v2831
          %3214 = vmatpush.msra.mxu0 %v2824
          %3215 = vmatpush.msra.mxu0 %v2817
          %3216 = vmatpush.msra.mxu0 %v2810
          %3217 = vmatpush.msra.mxu0 %v2803
          %3218 = vmatpush.msra.mxu0 %v2796
          %3219 = vmatpush.msra.mxu0 %v2789
          %3220 = vmatpush.msra.mxu0 %v2782
          %3221 = vmatpush.msra.mxu0 %v2775
          %3222 = vmatpush.msra.mxu0 %v2768
          %3223 = vmatmul.f32.gmra.mxu0 %v1933
          %v3224 = vpop.f32.mrf.mxu0
          %v3225 = vadd.f32 %v3205, %v3224
          %3226 = vdwg.mxu0
          %3227 = vmatpush.msra.mxu0 %v2985
          %3228 = vmatpush.msra.mxu0 %v2978
          %3229 = vmatpush.msra.mxu0 %v2971
          %3230 = vmatpush.msra.mxu0 %v2964
          %3231 = vmatpush.msra.mxu0 %v2957
          %3232 = vmatpush.msra.mxu0 %v2950
          %3233 = vmatpush.msra.mxu0 %v2943
          %3234 = vmatpush.msra.mxu0 %v2936
          %3235 = vmatpush.msra.mxu0 %v2929
          %3236 = vmatpush.msra.mxu0 %v2922
          %3237 = vmatpush.msra.mxu0 %v2915
          %3238 = vmatpush.msra.mxu0 %v2908
          %3239 = vmatpush.msra.mxu0 %v2901
          %3240 = vmatpush.msra.mxu0 %v2894
          %3241 = vmatpush.msra.mxu0 %v2887
          %3242 = vmatpush.msra.mxu0 %v2880
          %3243 = vmatmul.f32.gmra.mxu0 %v1934
          %v3244 = vpop.f32.mrf.mxu0
          %v3245 = vadd.f32 %v3225, %v3244
          %3246 = vdwg.mxu0
          %3247 = vmatpush.msra.mxu0 %v2426
          %3248 = vmatpush.msra.mxu0 %v2419
          %3249 = vmatpush.msra.mxu0 %v2412
          %3250 = vmatpush.msra.mxu0 %v2405
          %3251 = vmatpush.msra.mxu0 %v2398
          %3252 = vmatpush.msra.mxu0 %v2391
          %3253 = vmatpush.msra.mxu0 %v2384
          %3254 = vmatpush.msra.mxu0 %v2377
          %3255 = vmatpush.msra.mxu0 %v2370
          %3256 = vmatpush.msra.mxu0 %v2363
          %3257 = vmatpush.msra.mxu0 %v2356
          %3258 = vmatpush.msra.mxu0 %v2349
          %3259 = vmatpush.msra.mxu0 %v2342
          %3260 = vmatpush.msra.mxu0 %v2335
          %3261 = vmatpush.msra.mxu0 %v2328
          %3262 = vmatpush.msra.mxu0 %v2321
          %3263 = vmatmul.f32.gmra.mxu0 %v1929
          %v3264 = vpop.f32.mrf.mxu0
          %v3265 = vadd.f32 %v2995, %v3264
          %3266 = vdwg.mxu0
          %3267 = vmatpush.msra.mxu0 %v2538
          %3268 = vmatpush.msra.mxu0 %v2531
          %3269 = vmatpush.msra.mxu0 %v2524
          %3270 = vmatpush.msra.mxu0 %v2517
          %3271 = vmatpush.msra.mxu0 %v2510
          %3272 = vmatpush.msra.mxu0 %v2503
          %3273 = vmatpush.msra.mxu0 %v2496
          %3274 = vmatpush.msra.mxu0 %v2489
          %3275 = vmatpush.msra.mxu0 %v2482
          %3276 = vmatpush.msra.mxu0 %v2475
          %3277 = vmatpush.msra.mxu0 %v2468
          %3278 = vmatpush.msra.mxu0 %v2461
          %3279 = vmatpush.msra.mxu0 %v2454
          %3280 = vmatpush.msra.mxu0 %v2447
          %3281 = vmatpush.msra.mxu0 %v2440
          %3282 = vmatpush.msra.mxu0 %v2433
          %3283 = vmatmul.f32.gmra.mxu0 %v1930
          %v3284 = vpop.f32.mrf.mxu0
          %v3285 = vadd.f32 %v3265, %v3284
          %3286 = vdwg.mxu0
          %3287 = vmatpush.msra.mxu0 %v2650
          %3288 = vmatpush.msra.mxu0 %v2643
          %3289 = vmatpush.msra.mxu0 %v2636
          %3290 = vmatpush.msra.mxu0 %v2629
          %3291 = vmatpush.msra.mxu0 %v2622
          %3292 = vmatpush.msra.mxu0 %v2615
          %3293 = vmatpush.msra.mxu0 %v2608
          %3294 = vmatpush.msra.mxu0 %v2601
          %3295 = vmatpush.msra.mxu0 %v2594
          %3296 = vmatpush.msra.mxu0 %v2587
          %3297 = vmatpush.msra.mxu0 %v2580
          %3298 = vmatpush.msra.mxu0 %v2573
          %3299 = vmatpush.msra.mxu0 %v2566
          %3300 = vmatpush.msra.mxu0 %v2559
          %3301 = vmatpush.msra.mxu0 %v2552
          %3302 = vmatpush.msra.mxu0 %v2545
          %3303 = vmatmul.f32.gmra.mxu0 %v1931
          %v3304 = vpop.f32.mrf.mxu0
          %v3305 = vadd.f32 %v3285, %v3304
          %3306 = vdwg.mxu0
          %3307 = vmatpush.msra.mxu0 %v2762
          %3308 = vmatpush.msra.mxu0 %v2755
          %3309 = vmatpush.msra.mxu0 %v2748
          %3310 = vmatpush.msra.mxu0 %v2741
          %3311 = vmatpush.msra.mxu0 %v2734
          %3312 = vmatpush.msra.mxu0 %v2727
          %3313 = vmatpush.msra.mxu0 %v2720
          %3314 = vmatpush.msra.mxu0 %v2713
          %3315 = vmatpush.msra.mxu0 %v2706
          %3316 = vmatpush.msra.mxu0 %v2699
          %3317 = vmatpush.msra.mxu0 %v2692
          %3318 = vmatpush.msra.mxu0 %v2685
          %3319 = vmatpush.msra.mxu0 %v2678
          %3320 = vmatpush.msra.mxu0 %v2671
          %3321 = vmatpush.msra.mxu0 %v2664
          %3322 = vmatpush.msra.mxu0 %v2657
          %3323 = vmatmul.f32.gmra.mxu0 %v1932
          %v3324 = vpop.f32.mrf.mxu0
          %v3325 = vadd.f32 %v3305, %v3324
          %3326 = vdwg.mxu0
          %3327 = vmatpush.msra.mxu0 %v2874
          %3328 = vmatpush.msra.mxu0 %v2867
          %3329 = vmatpush.msra.mxu0 %v2860
          %3330 = vmatpush.msra.mxu0 %v2853
          %3331 = vmatpush.msra.mxu0 %v2846
          %3332 = vmatpush.msra.mxu0 %v2839
          %3333 = vmatpush.msra.mxu0 %v2832
          %3334 = vmatpush.msra.mxu0 %v2825
          %3335 = vmatpush.msra.mxu0 %v2818
          %3336 = vmatpush.msra.mxu0 %v2811
          %3337 = vmatpush.msra.mxu0 %v2804
          %3338 = vmatpush.msra.mxu0 %v2797
          %3339 = vmatpush.msra.mxu0 %v2790
          %3340 = vmatpush.msra.mxu0 %v2783
          %3341 = vmatpush.msra.mxu0 %v2776
          %3342 = vmatpush.msra.mxu0 %v2769
          %3343 = vmatmul.f32.gmra.mxu0 %v1933
          %v3344 = vpop.f32.mrf.mxu0
          %v3345 = vadd.f32 %v3325, %v3344
          %3346 = vdwg.mxu0
          %3347 = vmatpush.msra.mxu0 %v2986
          %3348 = vmatpush.msra.mxu0 %v2979
          %3349 = vmatpush.msra.mxu0 %v2972
          %3350 = vmatpush.msra.mxu0 %v2965
          %3351 = vmatpush.msra.mxu0 %v2958
          %3352 = vmatpush.msra.mxu0 %v2951
          %3353 = vmatpush.msra.mxu0 %v2944
          %3354 = vmatpush.msra.mxu0 %v2937
          %3355 = vmatpush.msra.mxu0 %v2930
          %3356 = vmatpush.msra.mxu0 %v2923
          %3357 = vmatpush.msra.mxu0 %v2916
          %3358 = vmatpush.msra.mxu0 %v2909
          %3359 = vmatpush.msra.mxu0 %v2902
          %3360 = vmatpush.msra.mxu0 %v2895
          %3361 = vmatpush.msra.mxu0 %v2888
          %3362 = vmatpush.msra.mxu0 %v2881
          %3363 = vmatmul.f32.gmra.mxu0 %v1934
          %v3364 = vpop.f32.mrf.mxu0
          %v3365 = vadd.f32 %v3345, %v3364
          %3366 = vdwg.mxu0
          %3367 = vmatpush.msra.mxu0 %v2427
          %3368 = vmatpush.msra.mxu0 %v2420
          %3369 = vmatpush.msra.mxu0 %v2413
          %3370 = vmatpush.msra.mxu0 %v2406
          %3371 = vmatpush.msra.mxu0 %v2399
          %3372 = vmatpush.msra.mxu0 %v2392
          %3373 = vmatpush.msra.mxu0 %v2385
          %3374 = vmatpush.msra.mxu0 %v2378
          %3375 = vmatpush.msra.mxu0 %v2371
          %3376 = vmatpush.msra.mxu0 %v2364
          %3377 = vmatpush.msra.mxu0 %v2357
          %3378 = vmatpush.msra.mxu0 %v2350
          %3379 = vmatpush.msra.mxu0 %v2343
          %3380 = vmatpush.msra.mxu0 %v2336
          %3381 = vmatpush.msra.mxu0 %v2329
          %3382 = vmatpush.msra.mxu0 %v2322
          %3383 = vmatmul.f32.gmra.mxu0 %v1929
          %v3384 = vpop.f32.mrf.mxu0
          %v3385 = vadd.f32 %v2996, %v3384
          %3386 = vdwg.mxu0
          %3387 = vmatpush.msra.mxu0 %v2539
          %3388 = vmatpush.msra.mxu0 %v2532
          %3389 = vmatpush.msra.mxu0 %v2525
          %3390 = vmatpush.msra.mxu0 %v2518
          %3391 = vmatpush.msra.mxu0 %v2511
          %3392 = vmatpush.msra.mxu0 %v2504
          %3393 = vmatpush.msra.mxu0 %v2497
          %3394 = vmatpush.msra.mxu0 %v2490
          %3395 = vmatpush.msra.mxu0 %v2483
          %3396 = vmatpush.msra.mxu0 %v2476
          %3397 = vmatpush.msra.mxu0 %v2469
          %3398 = vmatpush.msra.mxu0 %v2462
          %3399 = vmatpush.msra.mxu0 %v2455
          %3400 = vmatpush.msra.mxu0 %v2448
          %3401 = vmatpush.msra.mxu0 %v2441
          %3402 = vmatpush.msra.mxu0 %v2434
          %3403 = vmatmul.f32.gmra.mxu0 %v1930
          %v3404 = vpop.f32.mrf.mxu0
          %v3405 = vadd.f32 %v3385, %v3404
          %3406 = vdwg.mxu0
          %3407 = vmatpush.msra.mxu0 %v2651
          %3408 = vmatpush.msra.mxu0 %v2644
          %3409 = vmatpush.msra.mxu0 %v2637
          %3410 = vmatpush.msra.mxu0 %v2630
          %3411 = vmatpush.msra.mxu0 %v2623
          %3412 = vmatpush.msra.mxu0 %v2616
          %3413 = vmatpush.msra.mxu0 %v2609
          %3414 = vmatpush.msra.mxu0 %v2602
          %3415 = vmatpush.msra.mxu0 %v2595
          %3416 = vmatpush.msra.mxu0 %v2588
          %3417 = vmatpush.msra.mxu0 %v2581
          %3418 = vmatpush.msra.mxu0 %v2574
          %3419 = vmatpush.msra.mxu0 %v2567
          %3420 = vmatpush.msra.mxu0 %v2560
          %3421 = vmatpush.msra.mxu0 %v2553
          %3422 = vmatpush.msra.mxu0 %v2546
          %3423 = vmatmul.f32.gmra.mxu0 %v1931
          %v3424 = vpop.f32.mrf.mxu0
          %v3425 = vadd.f32 %v3405, %v3424
          %3426 = vdwg.mxu0
          %3427 = vmatpush.msra.mxu0 %v2763
          %3428 = vmatpush.msra.mxu0 %v2756
          %3429 = vmatpush.msra.mxu0 %v2749
          %3430 = vmatpush.msra.mxu0 %v2742
          %3431 = vmatpush.msra.mxu0 %v2735
          %3432 = vmatpush.msra.mxu0 %v2728
          %3433 = vmatpush.msra.mxu0 %v2721
          %3434 = vmatpush.msra.mxu0 %v2714
          %3435 = vmatpush.msra.mxu0 %v2707
          %3436 = vmatpush.msra.mxu0 %v2700
          %3437 = vmatpush.msra.mxu0 %v2693
          %3438 = vmatpush.msra.mxu0 %v2686
          %3439 = vmatpush.msra.mxu0 %v2679
          %3440 = vmatpush.msra.mxu0 %v2672
          %3441 = vmatpush.msra.mxu0 %v2665
          %3442 = vmatpush.msra.mxu0 %v2658
          %3443 = vmatmul.f32.gmra.mxu0 %v1932
          %v3444 = vpop.f32.mrf.mxu0
          %v3445 = vadd.f32 %v3425, %v3444
          %3446 = vdwg.mxu0
          %3447 = vmatpush.msra.mxu0 %v2875
          %3448 = vmatpush.msra.mxu0 %v2868
          %3449 = vmatpush.msra.mxu0 %v2861
          %3450 = vmatpush.msra.mxu0 %v2854
          %3451 = vmatpush.msra.mxu0 %v2847
          %3452 = vmatpush.msra.mxu0 %v2840
          %3453 = vmatpush.msra.mxu0 %v2833
          %3454 = vmatpush.msra.mxu0 %v2826
          %3455 = vmatpush.msra.mxu0 %v2819
          %3456 = vmatpush.msra.mxu0 %v2812
          %3457 = vmatpush.msra.mxu0 %v2805
          %3458 = vmatpush.msra.mxu0 %v2798
          %3459 = vmatpush.msra.mxu0 %v2791
          %3460 = vmatpush.msra.mxu0 %v2784
          %3461 = vmatpush.msra.mxu0 %v2777
          %3462 = vmatpush.msra.mxu0 %v2770
          %3463 = vmatmul.f32.gmra.mxu0 %v1933
          %v3464 = vpop.f32.mrf.mxu0
          %v3465 = vadd.f32 %v3445, %v3464
          %3466 = vdwg.mxu0
          %3467 = vmatpush.msra.mxu0 %v2987
          %3468 = vmatpush.msra.mxu0 %v2980
          %3469 = vmatpush.msra.mxu0 %v2973
          %3470 = vmatpush.msra.mxu0 %v2966
          %3471 = vmatpush.msra.mxu0 %v2959
          %3472 = vmatpush.msra.mxu0 %v2952
          %3473 = vmatpush.msra.mxu0 %v2945
          %3474 = vmatpush.msra.mxu0 %v2938
          %3475 = vmatpush.msra.mxu0 %v2931
          %3476 = vmatpush.msra.mxu0 %v2924
          %3477 = vmatpush.msra.mxu0 %v2917
          %3478 = vmatpush.msra.mxu0 %v2910
          %3479 = vmatpush.msra.mxu0 %v2903
          %3480 = vmatpush.msra.mxu0 %v2896
          %3481 = vmatpush.msra.mxu0 %v2889
          %3482 = vmatpush.msra.mxu0 %v2882
          %3483 = vmatmul.f32.gmra.mxu0 %v1934
          %v3484 = vpop.f32.mrf.mxu0
          %v3485 = vadd.f32 %v3465, %v3484
          %3486 = vdwg.mxu0
          %3487 = vmatpush.msra.mxu0 %v2428
          %3488 = vmatpush.msra.mxu0 %v2421
          %3489 = vmatpush.msra.mxu0 %v2414
          %3490 = vmatpush.msra.mxu0 %v2407
          %3491 = vmatpush.msra.mxu0 %v2400
          %3492 = vmatpush.msra.mxu0 %v2393
          %3493 = vmatpush.msra.mxu0 %v2386
          %3494 = vmatpush.msra.mxu0 %v2379
          %3495 = vmatpush.msra.mxu0 %v2372
          %3496 = vmatpush.msra.mxu0 %v2365
          %3497 = vmatpush.msra.mxu0 %v2358
          %3498 = vmatpush.msra.mxu0 %v2351
          %3499 = vmatpush.msra.mxu0 %v2344
          %3500 = vmatpush.msra.mxu0 %v2337
          %3501 = vmatpush.msra.mxu0 %v2330
          %3502 = vmatpush.msra.mxu0 %v2323
          %3503 = vmatmul.f32.gmra.mxu0 %v1929
          %v3504 = vpop.f32.mrf.mxu0
          %v3505 = vadd.f32 %v2997, %v3504
          %3506 = vdwg.mxu0
          %3507 = vmatpush.msra.mxu0 %v2540
          %3508 = vmatpush.msra.mxu0 %v2533
          %3509 = vmatpush.msra.mxu0 %v2526
          %3510 = vmatpush.msra.mxu0 %v2519
          %3511 = vmatpush.msra.mxu0 %v2512
          %3512 = vmatpush.msra.mxu0 %v2505
          %3513 = vmatpush.msra.mxu0 %v2498
          %3514 = vmatpush.msra.mxu0 %v2491
          %3515 = vmatpush.msra.mxu0 %v2484
          %3516 = vmatpush.msra.mxu0 %v2477
          %3517 = vmatpush.msra.mxu0 %v2470
          %3518 = vmatpush.msra.mxu0 %v2463
          %3519 = vmatpush.msra.mxu0 %v2456
          %3520 = vmatpush.msra.mxu0 %v2449
          %3521 = vmatpush.msra.mxu0 %v2442
          %3522 = vmatpush.msra.mxu0 %v2435
          %3523 = vmatmul.f32.gmra.mxu0 %v1930
          %v3524 = vpop.f32.mrf.mxu0
          %v3525 = vadd.f32 %v3505, %v3524
          %3526 = vdwg.mxu0
          %3527 = vmatpush.msra.mxu0 %v2652
          %3528 = vmatpush.msra.mxu0 %v2645
          %3529 = vmatpush.msra.mxu0 %v2638
          %3530 = vmatpush.msra.mxu0 %v2631
          %3531 = vmatpush.msra.mxu0 %v2624
          %3532 = vmatpush.msra.mxu0 %v2617
          %3533 = vmatpush.msra.mxu0 %v2610
          %3534 = vmatpush.msra.mxu0 %v2603
          %3535 = vmatpush.msra.mxu0 %v2596
          %3536 = vmatpush.msra.mxu0 %v2589
          %3537 = vmatpush.msra.mxu0 %v2582
          %3538 = vmatpush.msra.mxu0 %v2575
          %3539 = vmatpush.msra.mxu0 %v2568
          %3540 = vmatpush.msra.mxu0 %v2561
          %3541 = vmatpush.msra.mxu0 %v2554
          %3542 = vmatpush.msra.mxu0 %v2547
          %3543 = vmatmul.f32.gmra.mxu0 %v1931
          %v3544 = vpop.f32.mrf.mxu0
          %v3545 = vadd.f32 %v3525, %v3544
          %3546 = vdwg.mxu0
          %3547 = vmatpush.msra.mxu0 %v2764
          %3548 = vmatpush.msra.mxu0 %v2757
          %3549 = vmatpush.msra.mxu0 %v2750
          %3550 = vmatpush.msra.mxu0 %v2743
          %3551 = vmatpush.msra.mxu0 %v2736
          %3552 = vmatpush.msra.mxu0 %v2729
          %3553 = vmatpush.msra.mxu0 %v2722
          %3554 = vmatpush.msra.mxu0 %v2715
          %3555 = vmatpush.msra.mxu0 %v2708
          %3556 = vmatpush.msra.mxu0 %v2701
          %3557 = vmatpush.msra.mxu0 %v2694
          %3558 = vmatpush.msra.mxu0 %v2687
          %3559 = vmatpush.msra.mxu0 %v2680
          %3560 = vmatpush.msra.mxu0 %v2673
          %3561 = vmatpush.msra.mxu0 %v2666
          %3562 = vmatpush.msra.mxu0 %v2659
          %3563 = vmatmul.f32.gmra.mxu0 %v1932
          %v3564 = vpop.f32.mrf.mxu0
          %v3565 = vadd.f32 %v3545, %v3564
          %3566 = vdwg.mxu0
          %3567 = vmatpush.msra.mxu0 %v2876
          %3568 = vmatpush.msra.mxu0 %v2869
          %3569 = vmatpush.msra.mxu0 %v2862
          %3570 = vmatpush.msra.mxu0 %v2855
          %3571 = vmatpush.msra.mxu0 %v2848
          %3572 = vmatpush.msra.mxu0 %v2841
          %3573 = vmatpush.msra.mxu0 %v2834
          %3574 = vmatpush.msra.mxu0 %v2827
          %3575 = vmatpush.msra.mxu0 %v2820
          %3576 = vmatpush.msra.mxu0 %v2813
          %3577 = vmatpush.msra.mxu0 %v2806
          %3578 = vmatpush.msra.mxu0 %v2799
          %3579 = vmatpush.msra.mxu0 %v2792
          %3580 = vmatpush.msra.mxu0 %v2785
          %3581 = vmatpush.msra.mxu0 %v2778
          %3582 = vmatpush.msra.mxu0 %v2771
          %3583 = vmatmul.f32.gmra.mxu0 %v1933
          %v3584 = vpop.f32.mrf.mxu0
          %v3585 = vadd.f32 %v3565, %v3584
          %3586 = vdwg.mxu0
          %3587 = vmatpush.msra.mxu0 %v2988
          %3588 = vmatpush.msra.mxu0 %v2981
          %3589 = vmatpush.msra.mxu0 %v2974
          %3590 = vmatpush.msra.mxu0 %v2967
          %3591 = vmatpush.msra.mxu0 %v2960
          %3592 = vmatpush.msra.mxu0 %v2953
          %3593 = vmatpush.msra.mxu0 %v2946
          %3594 = vmatpush.msra.mxu0 %v2939
          %3595 = vmatpush.msra.mxu0 %v2932
          %3596 = vmatpush.msra.mxu0 %v2925
          %3597 = vmatpush.msra.mxu0 %v2918
          %3598 = vmatpush.msra.mxu0 %v2911
          %3599 = vmatpush.msra.mxu0 %v2904
          %3600 = vmatpush.msra.mxu0 %v2897
          %3601 = vmatpush.msra.mxu0 %v2890
          %3602 = vmatpush.msra.mxu0 %v2883
          %3603 = vmatmul.f32.gmra.mxu0 %v1934
          %v3604 = vpop.f32.mrf.mxu0
          %v3605 = vadd.f32 %v3585, %v3604
          %3606 = vdwg.mxu0
          %3607 = vmatpush.msra.mxu0 %v2429
          %3608 = vmatpush.msra.mxu0 %v2422
          %3609 = vmatpush.msra.mxu0 %v2415
          %3610 = vmatpush.msra.mxu0 %v2408
          %3611 = vmatpush.msra.mxu0 %v2401
          %3612 = vmatpush.msra.mxu0 %v2394
          %3613 = vmatpush.msra.mxu0 %v2387
          %3614 = vmatpush.msra.mxu0 %v2380
          %3615 = vmatpush.msra.mxu0 %v2373
          %3616 = vmatpush.msra.mxu0 %v2366
          %3617 = vmatpush.msra.mxu0 %v2359
          %3618 = vmatpush.msra.mxu0 %v2352
          %3619 = vmatpush.msra.mxu0 %v2345
          %3620 = vmatpush.msra.mxu0 %v2338
          %3621 = vmatpush.msra.mxu0 %v2331
          %3622 = vmatpush.msra.mxu0 %v2324
          %3623 = vmatmul.f32.gmra.mxu0 %v1929
          %v3624 = vpop.f32.mrf.mxu0
          %v3625 = vadd.f32 %v2998, %v3624
          %3626 = vdwg.mxu0
          %3627 = vmatpush.msra.mxu0 %v2541
          %3628 = vmatpush.msra.mxu0 %v2534
          %3629 = vmatpush.msra.mxu0 %v2527
          %3630 = vmatpush.msra.mxu0 %v2520
          %3631 = vmatpush.msra.mxu0 %v2513
          %3632 = vmatpush.msra.mxu0 %v2506
          %3633 = vmatpush.msra.mxu0 %v2499
          %3634 = vmatpush.msra.mxu0 %v2492
          %3635 = vmatpush.msra.mxu0 %v2485
          %3636 = vmatpush.msra.mxu0 %v2478
          %3637 = vmatpush.msra.mxu0 %v2471
          %3638 = vmatpush.msra.mxu0 %v2464
          %3639 = vmatpush.msra.mxu0 %v2457
          %3640 = vmatpush.msra.mxu0 %v2450
          %3641 = vmatpush.msra.mxu0 %v2443
          %3642 = vmatpush.msra.mxu0 %v2436
          %3643 = vmatmul.f32.gmra.mxu0 %v1930
          %v3644 = vpop.f32.mrf.mxu0
          %v3645 = vadd.f32 %v3625, %v3644
          %3646 = vdwg.mxu0
          %3647 = vmatpush.msra.mxu0 %v2653
          %3648 = vmatpush.msra.mxu0 %v2646
          %3649 = vmatpush.msra.mxu0 %v2639
          %3650 = vmatpush.msra.mxu0 %v2632
          %3651 = vmatpush.msra.mxu0 %v2625
          %3652 = vmatpush.msra.mxu0 %v2618
          %3653 = vmatpush.msra.mxu0 %v2611
          %3654 = vmatpush.msra.mxu0 %v2604
          %3655 = vmatpush.msra.mxu0 %v2597
          %3656 = vmatpush.msra.mxu0 %v2590
          %3657 = vmatpush.msra.mxu0 %v2583
          %3658 = vmatpush.msra.mxu0 %v2576
          %3659 = vmatpush.msra.mxu0 %v2569
          %3660 = vmatpush.msra.mxu0 %v2562
          %3661 = vmatpush.msra.mxu0 %v2555
          %3662 = vmatpush.msra.mxu0 %v2548
          %3663 = vmatmul.f32.gmra.mxu0 %v1931
          %v3664 = vpop.f32.mrf.mxu0
          %v3665 = vadd.f32 %v3645, %v3664
          %3666 = vdwg.mxu0
          %3667 = vmatpush.msra.mxu0 %v2765
          %3668 = vmatpush.msra.mxu0 %v2758
          %3669 = vmatpush.msra.mxu0 %v2751
          %3670 = vmatpush.msra.mxu0 %v2744
          %3671 = vmatpush.msra.mxu0 %v2737
          %3672 = vmatpush.msra.mxu0 %v2730
          %3673 = vmatpush.msra.mxu0 %v2723
          %3674 = vmatpush.msra.mxu0 %v2716
          %3675 = vmatpush.msra.mxu0 %v2709
          %3676 = vmatpush.msra.mxu0 %v2702
          %3677 = vmatpush.msra.mxu0 %v2695
          %3678 = vmatpush.msra.mxu0 %v2688
          %3679 = vmatpush.msra.mxu0 %v2681
          %3680 = vmatpush.msra.mxu0 %v2674
          %3681 = vmatpush.msra.mxu0 %v2667
          %3682 = vmatpush.msra.mxu0 %v2660
          %3683 = vmatmul.f32.gmra.mxu0 %v1932
          %v3684 = vpop.f32.mrf.mxu0
          %v3685 = vadd.f32 %v3665, %v3684
          %3686 = vdwg.mxu0
          %3687 = vmatpush.msra.mxu0 %v2877
          %3688 = vmatpush.msra.mxu0 %v2870
          %3689 = vmatpush.msra.mxu0 %v2863
          %3690 = vmatpush.msra.mxu0 %v2856
          %3691 = vmatpush.msra.mxu0 %v2849
          %3692 = vmatpush.msra.mxu0 %v2842
          %3693 = vmatpush.msra.mxu0 %v2835
          %3694 = vmatpush.msra.mxu0 %v2828
          %3695 = vmatpush.msra.mxu0 %v2821
          %3696 = vmatpush.msra.mxu0 %v2814
          %3697 = vmatpush.msra.mxu0 %v2807
          %3698 = vmatpush.msra.mxu0 %v2800
          %3699 = vmatpush.msra.mxu0 %v2793
          %3700 = vmatpush.msra.mxu0 %v2786
          %3701 = vmatpush.msra.mxu0 %v2779
          %3702 = vmatpush.msra.mxu0 %v2772
          %3703 = vmatmul.f32.gmra.mxu0 %v1933
          %v3704 = vpop.f32.mrf.mxu0
          %v3705 = vadd.f32 %v3685, %v3704
          %3706 = vdwg.mxu0
          %3707 = vmatpush.msra.mxu0 %v2989
          %3708 = vmatpush.msra.mxu0 %v2982
          %3709 = vmatpush.msra.mxu0 %v2975
          %3710 = vmatpush.msra.mxu0 %v2968
          %3711 = vmatpush.msra.mxu0 %v2961
          %3712 = vmatpush.msra.mxu0 %v2954
          %3713 = vmatpush.msra.mxu0 %v2947
          %3714 = vmatpush.msra.mxu0 %v2940
          %3715 = vmatpush.msra.mxu0 %v2933
          %3716 = vmatpush.msra.mxu0 %v2926
          %3717 = vmatpush.msra.mxu0 %v2919
          %3718 = vmatpush.msra.mxu0 %v2912
          %3719 = vmatpush.msra.mxu0 %v2905
          %3720 = vmatpush.msra.mxu0 %v2898
          %3721 = vmatpush.msra.mxu0 %v2891
          %3722 = vmatpush.msra.mxu0 %v2884
          %3723 = vmatmul.f32.gmra.mxu0 %v1934
          %v3724 = vpop.f32.mrf.mxu0
          %v3725 = vadd.f32 %v3705, %v3724
          %3726 = vdwg.mxu0
          %3727 = vmatpush.msra.mxu0 %v2430
          %3728 = vmatpush.msra.mxu0 %v2423
          %3729 = vmatpush.msra.mxu0 %v2416
          %3730 = vmatpush.msra.mxu0 %v2409
          %3731 = vmatpush.msra.mxu0 %v2402
          %3732 = vmatpush.msra.mxu0 %v2395
          %3733 = vmatpush.msra.mxu0 %v2388
          %3734 = vmatpush.msra.mxu0 %v2381
          %3735 = vmatpush.msra.mxu0 %v2374
          %3736 = vmatpush.msra.mxu0 %v2367
          %3737 = vmatpush.msra.mxu0 %v2360
          %3738 = vmatpush.msra.mxu0 %v2353
          %3739 = vmatpush.msra.mxu0 %v2346
          %3740 = vmatpush.msra.mxu0 %v2339
          %3741 = vmatpush.msra.mxu0 %v2332
          %3742 = vmatpush.msra.mxu0 %v2325
          %3743 = vmatmul.f32.gmra.mxu0 %v1929
          %v3744 = vpop.f32.mrf.mxu0
          %v3745 = vadd.f32 %v2999, %v3744
          %3746 = vdwg.mxu0
          %3747 = vmatpush.msra.mxu0 %v2542
          %3748 = vmatpush.msra.mxu0 %v2535
          %3749 = vmatpush.msra.mxu0 %v2528
          %3750 = vmatpush.msra.mxu0 %v2521
          %3751 = vmatpush.msra.mxu0 %v2514
          %3752 = vmatpush.msra.mxu0 %v2507
          %3753 = vmatpush.msra.mxu0 %v2500
          %3754 = vmatpush.msra.mxu0 %v2493
          %3755 = vmatpush.msra.mxu0 %v2486
          %3756 = vmatpush.msra.mxu0 %v2479
          %3757 = vmatpush.msra.mxu0 %v2472
          %3758 = vmatpush.msra.mxu0 %v2465
          %3759 = vmatpush.msra.mxu0 %v2458
          %3760 = vmatpush.msra.mxu0 %v2451
          %3761 = vmatpush.msra.mxu0 %v2444
          %3762 = vmatpush.msra.mxu0 %v2437
          %3763 = vmatmul.f32.gmra.mxu0 %v1930
          %v3764 = vpop.f32.mrf.mxu0
          %v3765 = vadd.f32 %v3745, %v3764
          %3766 = vdwg.mxu0
          %3767 = vmatpush.msra.mxu0 %v2654
          %3768 = vmatpush.msra.mxu0 %v2647
          %3769 = vmatpush.msra.mxu0 %v2640
          %3770 = vmatpush.msra.mxu0 %v2633
          %3771 = vmatpush.msra.mxu0 %v2626
          %3772 = vmatpush.msra.mxu0 %v2619
          %3773 = vmatpush.msra.mxu0 %v2612
          %3774 = vmatpush.msra.mxu0 %v2605
          %3775 = vmatpush.msra.mxu0 %v2598
          %3776 = vmatpush.msra.mxu0 %v2591
          %3777 = vmatpush.msra.mxu0 %v2584
          %3778 = vmatpush.msra.mxu0 %v2577
          %3779 = vmatpush.msra.mxu0 %v2570
          %3780 = vmatpush.msra.mxu0 %v2563
          %3781 = vmatpush.msra.mxu0 %v2556
          %3782 = vmatpush.msra.mxu0 %v2549
          %3783 = vmatmul.f32.gmra.mxu0 %v1931
          %v3784 = vpop.f32.mrf.mxu0
          %v3785 = vadd.f32 %v3765, %v3784
          %3786 = vdwg.mxu0
          %3787 = vmatpush.msra.mxu0 %v2766
          %3788 = vmatpush.msra.mxu0 %v2759
          %3789 = vmatpush.msra.mxu0 %v2752
          %3790 = vmatpush.msra.mxu0 %v2745
          %3791 = vmatpush.msra.mxu0 %v2738
          %3792 = vmatpush.msra.mxu0 %v2731
          %3793 = vmatpush.msra.mxu0 %v2724
          %3794 = vmatpush.msra.mxu0 %v2717
          %3795 = vmatpush.msra.mxu0 %v2710
          %3796 = vmatpush.msra.mxu0 %v2703
          %3797 = vmatpush.msra.mxu0 %v2696
          %3798 = vmatpush.msra.mxu0 %v2689
          %3799 = vmatpush.msra.mxu0 %v2682
          %3800 = vmatpush.msra.mxu0 %v2675
          %3801 = vmatpush.msra.mxu0 %v2668
          %3802 = vmatpush.msra.mxu0 %v2661
          %3803 = vmatmul.f32.gmra.mxu0 %v1932
          %v3804 = vpop.f32.mrf.mxu0
          %v3805 = vadd.f32 %v3785, %v3804
          %3806 = vdwg.mxu0
          %3807 = vmatpush.msra.mxu0 %v2878
          %3808 = vmatpush.msra.mxu0 %v2871
          %3809 = vmatpush.msra.mxu0 %v2864
          %3810 = vmatpush.msra.mxu0 %v2857
          %3811 = vmatpush.msra.mxu0 %v2850
          %3812 = vmatpush.msra.mxu0 %v2843
          %3813 = vmatpush.msra.mxu0 %v2836
          %3814 = vmatpush.msra.mxu0 %v2829
          %3815 = vmatpush.msra.mxu0 %v2822
          %3816 = vmatpush.msra.mxu0 %v2815
          %3817 = vmatpush.msra.mxu0 %v2808
          %3818 = vmatpush.msra.mxu0 %v2801
          %3819 = vmatpush.msra.mxu0 %v2794
          %3820 = vmatpush.msra.mxu0 %v2787
          %3821 = vmatpush.msra.mxu0 %v2780
          %3822 = vmatpush.msra.mxu0 %v2773
          %3823 = vmatmul.f32.gmra.mxu0 %v1933
          %v3824 = vpop.f32.mrf.mxu0
          %v3825 = vadd.f32 %v3805, %v3824
          %3826 = vdwg.mxu0
          %3827 = vmatpush.msra.mxu0 %v2990
          %3828 = vmatpush.msra.mxu0 %v2983
          %3829 = vmatpush.msra.mxu0 %v2976
          %3830 = vmatpush.msra.mxu0 %v2969
          %3831 = vmatpush.msra.mxu0 %v2962
          %3832 = vmatpush.msra.mxu0 %v2955
          %3833 = vmatpush.msra.mxu0 %v2948
          %3834 = vmatpush.msra.mxu0 %v2941
          %3835 = vmatpush.msra.mxu0 %v2934
          %3836 = vmatpush.msra.mxu0 %v2927
          %3837 = vmatpush.msra.mxu0 %v2920
          %3838 = vmatpush.msra.mxu0 %v2913
          %3839 = vmatpush.msra.mxu0 %v2906
          %3840 = vmatpush.msra.mxu0 %v2899
          %3841 = vmatpush.msra.mxu0 %v2892
          %3842 = vmatpush.msra.mxu0 %v2885
          %3843 = vmatmul.f32.gmra.mxu0 %v1934
          %v3844 = vpop.f32.mrf.mxu0
          %v3845 = vadd.f32 %v3825, %v3844
          %3846 = vdwg.mxu0
          %3847 = vst [vmem:[#allocation14] sm:$0xff] %v3125
          %v3848 = vmax.f32 %v3245, 0.0
          %v3849 = vmax.f32 %v3365, 0.0
          %v3850 = vmax.f32 %v3485, 0.0
          %v3851 = vmax.f32 %v3605, 0.0
          %v3852 = vmax.f32 %v3725, 0.0
          %v3853 = vmax.f32 %v3845, 0.0
          %v3854 = vld [vmem:[#allocation11] sm:$0xf]
          %v3855 = vld [vmem:[#allocation11 + $0x4] sm:$0xf]
          %v3856 = vld [vmem:[#allocation11 + $0x8] sm:$0xf]
          %v3857 = vld [vmem:[#allocation11 + $0xc] sm:$0xf]
          %v3858 = vld [vmem:[#allocation11 + $0x10] sm:$0xf]
          %v3859 = vld [vmem:[#allocation11 + $0x14] sm:$0xf]
          %v3860 = vld [vmem:[#allocation11 + $0x18] sm:$0xf]
          %v3861 = vld [vmem:[#allocation11 + $0x1c] sm:$0xf]
          %v3862 = vld [vmem:[#allocation11 + $0x20] sm:$0xf]
          %v3863 = vld [vmem:[#allocation11 + $0x24] sm:$0xf]
          %v3864 = vld [vmem:[#allocation11 + $0x28] sm:$0xf]
          %v3865 = vld [vmem:[#allocation11 + $0x2c] sm:$0xf]
          %v3866 = vld [vmem:[#allocation11 + $0x30] sm:$0xf]
          %v3867 = vld [vmem:[#allocation11 + $0x34] sm:$0xf]
          %v3868 = vld [vmem:[#allocation11 + $0x38] sm:$0xf]
          %v3869 = vld [vmem:[#allocation11 + $0x3c] sm:$0xf]
          %v3870 = vld [vmem:[#allocation11 + $0x40] sm:$0xf]
          %v3871 = vld [vmem:[#allocation11 + $0x44] sm:$0xf]
          %v3872 = vld [vmem:[#allocation11 + $0x48] sm:$0xf]
          %v3873 = vld [vmem:[#allocation11 + $0x4c] sm:$0xf]
          %v3874 = vld [vmem:[#allocation11 + $0x50] sm:$0xf]
          %v3875 = vld [vmem:[#allocation11 + $0x54] sm:$0xf]
          %v3876 = vld [vmem:[#allocation11 + $0x58] sm:$0xf]
          %v3877 = vld [vmem:[#allocation11 + $0x5c] sm:$0xf]
          %v3878 = vld [vmem:[#allocation11 + $0x60] sm:$0xf]
          %v3879 = vld [vmem:[#allocation11 + $0x64] sm:$0xf]
          %v3880 = vld [vmem:[#allocation11 + $0x68] sm:$0xf]
          %v3881 = vld [vmem:[#allocation11 + $0x6c] sm:$0xf]
          %v3882 = vld [vmem:[#allocation11 + $0x70] sm:$0xf]
          %v3883 = vld [vmem:[#allocation11 + $0x74] sm:$0xf]
          %v3884 = vld [vmem:[#allocation11 + $0x78] sm:$0xf]
          %v3885 = vld [vmem:[#allocation11 + $0x7c] sm:$0xf]
          %v3886 = vld [vmem:[#allocation11 + $0x80] sm:$0xf]
          %v3887 = vld [vmem:[#allocation11 + $0x84] sm:$0xf]
          %v3888 = vld [vmem:[#allocation11 + $0x88] sm:$0xf]
          %v3889 = vld [vmem:[#allocation11 + $0x8c] sm:$0xf]
          %v3890 = vld [vmem:[#allocation11 + $0x90] sm:$0xf]
          %v3891 = vld [vmem:[#allocation11 + $0x94] sm:$0xf]
          %v3892 = vld [vmem:[#allocation11 + $0x98] sm:$0xf]
          %v3893 = vld [vmem:[#allocation11 + $0x9c] sm:$0xf]
          %v3894 = vld [vmem:[#allocation11 + $0xa0] sm:$0xf]
          %v3895 = vld [vmem:[#allocation11 + $0xa4] sm:$0xf]
          %v3896 = vld [vmem:[#allocation11 + $0xa8] sm:$0xf]
          %v3897 = vld [vmem:[#allocation11 + $0xac] sm:$0xf]
          %v3898 = vld [vmem:[#allocation11 + $0xb0] sm:$0xf]
          %v3899 = vld [vmem:[#allocation11 + $0xb4] sm:$0xf]
          %v3900 = vld [vmem:[#allocation11 + $0xb8] sm:$0xf]
          %v3901 = vld [vmem:[#allocation11 + $0xbc] sm:$0xf]
          %v3902 = vld [vmem:[#allocation11 + $0xc0] sm:$0xf]
          %v3903 = vld [vmem:[#allocation11 + $0xc4] sm:$0xf]
          %v3904 = vld [vmem:[#allocation11 + $0xc8] sm:$0xf]
          %v3905 = vld [vmem:[#allocation11 + $0xcc] sm:$0xf]
          %v3906 = vld [vmem:[#allocation11 + $0xd0] sm:$0xf]
          %v3907 = vld [vmem:[#allocation11 + $0xd4] sm:$0xf]
          %v3908 = vld [vmem:[#allocation11 + $0xd8] sm:$0xf]
          %v3909 = vld [vmem:[#allocation11 + $0xdc] sm:$0xf]
          %v3910 = vld [vmem:[#allocation11 + $0xe0] sm:$0xf]
          %v3911 = vld [vmem:[#allocation11 + $0xe4] sm:$0xf]
          %v3912 = vld [vmem:[#allocation11 + $0xe8] sm:$0xf]
          %v3913 = vld [vmem:[#allocation11 + $0xec] sm:$0xf]
          %v3914 = vld [vmem:[#allocation11 + $0xf0] sm:$0xf]
          %v3915 = vld [vmem:[#allocation11 + $0xf4] sm:$0xf]
          %v3916 = vld [vmem:[#allocation11 + $0xf8] sm:$0xf]
          %v3917 = vld [vmem:[#allocation11 + $0xfc] sm:$0xf]
          %v3918 = vld [vmem:[#allocation11 + $0x100] sm:$0xf]
          %v3919 = vld [vmem:[#allocation11 + $0x104] sm:$0xf]
          %v3920 = vld [vmem:[#allocation11 + $0x108] sm:$0xf]
          %v3921 = vld [vmem:[#allocation11 + $0x10c] sm:$0xf]
          %v3922 = vld [vmem:[#allocation11 + $0x110] sm:$0xf]
          %v3923 = vld [vmem:[#allocation11 + $0x114] sm:$0xf]
          %v3924 = vld [vmem:[#allocation11 + $0x118] sm:$0xf]
          %v3925 = vld [vmem:[#allocation11 + $0x11c] sm:$0xf]
          %v3926 = vld [vmem:[#allocation11 + $0x120] sm:$0xf]
          %v3927 = vld [vmem:[#allocation11 + $0x124] sm:$0xf]
          %v3928 = vld [vmem:[#allocation11 + $0x128] sm:$0xf]
          %v3929 = vld [vmem:[#allocation11 + $0x12c] sm:$0xf]
          %v3930 = vld [vmem:[#allocation11 + $0x130] sm:$0xf]
          %v3931 = vld [vmem:[#allocation11 + $0x134] sm:$0xf]
          %v3932 = vld [vmem:[#allocation11 + $0x138] sm:$0xf]
          %v3933 = vld [vmem:[#allocation11 + $0x13c] sm:$0xf]
          %v3934 = vld [vmem:[#allocation11 + $0x140] sm:$0xf]
          %v3935 = vld [vmem:[#allocation11 + $0x144] sm:$0xf]
          %v3936 = vld [vmem:[#allocation11 + $0x148] sm:$0xf]
          %v3937 = vld [vmem:[#allocation11 + $0x14c] sm:$0xf]
          %v3938 = vld [vmem:[#allocation11 + $0x150] sm:$0xf]
          %v3939 = vld [vmem:[#allocation11 + $0x154] sm:$0xf]
          %v3940 = vld [vmem:[#allocation11 + $0x158] sm:$0xf]
          %v3941 = vld [vmem:[#allocation11 + $0x15c] sm:$0xf]
          %v3942 = vld [vmem:[#allocation11 + $0x160] sm:$0xf]
          %v3943 = vld [vmem:[#allocation11 + $0x164] sm:$0xf]
          %v3944 = vld [vmem:[#allocation11 + $0x168] sm:$0xf]
          %v3945 = vld [vmem:[#allocation11 + $0x16c] sm:$0xf]
          %v3946 = vld [vmem:[#allocation11 + $0x170] sm:$0xf]
          %v3947 = vld [vmem:[#allocation11 + $0x174] sm:$0xf]
          %v3948 = vld [vmem:[#allocation11 + $0x178] sm:$0xf]
          %v3949 = vld [vmem:[#allocation11 + $0x17c] sm:$0xf]
          %v3950 = vunpack.c.l.bf16 %v3854
          %v3951 = vunpack.c.l.bf16 %v3855
          %v3952 = vunpack.c.l.bf16 %v3856
          %v3953 = vunpack.c.l.bf16 %v3857
          %v3954 = vunpack.c.l.bf16 %v3858
          %v3955 = vunpack.c.l.bf16 %v3859
          %v3956 = vunpack.c.l.bf16 %v3860
          %v3957 = vunpack.c.l.bf16 %v3861
          %v3958 = vunpack.c.l.bf16 %v3862
          %v3959 = vunpack.c.l.bf16 %v3863
          %v3960 = vunpack.c.l.bf16 %v3864
          %v3961 = vunpack.c.l.bf16 %v3865
          %v3962 = vunpack.c.l.bf16 %v3866
          %v3963 = vunpack.c.l.bf16 %v3867
          %v3964 = vunpack.c.l.bf16 %v3868
          %v3965 = vunpack.c.l.bf16 %v3869
          %v3966 = vunpack.c.l.bf16 %v3870
          %v3967 = vunpack.c.l.bf16 %v3871
          %v3968 = vunpack.c.l.bf16 %v3872
          %v3969 = vunpack.c.l.bf16 %v3873
          %v3970 = vunpack.c.l.bf16 %v3874
          %v3971 = vunpack.c.l.bf16 %v3875
          %v3972 = vunpack.c.l.bf16 %v3876
          %v3973 = vunpack.c.l.bf16 %v3877
          %v3974 = vunpack.c.l.bf16 %v3878
          %v3975 = vunpack.c.l.bf16 %v3879
          %v3976 = vunpack.c.l.bf16 %v3880
          %v3977 = vunpack.c.l.bf16 %v3881
          %v3978 = vunpack.c.l.bf16 %v3882
          %v3979 = vunpack.c.l.bf16 %v3883
          %v3980 = vunpack.c.l.bf16 %v3884
          %v3981 = vunpack.c.l.bf16 %v3885
          %v3982 = vunpack.c.l.bf16 %v3886
          %v3983 = vunpack.c.l.bf16 %v3887
          %v3984 = vunpack.c.l.bf16 %v3888
          %v3985 = vunpack.c.l.bf16 %v3889
          %v3986 = vunpack.c.l.bf16 %v3890
          %v3987 = vunpack.c.l.bf16 %v3891
          %v3988 = vunpack.c.l.bf16 %v3892
          %v3989 = vunpack.c.l.bf16 %v3893
          %v3990 = vunpack.c.l.bf16 %v3894
          %v3991 = vunpack.c.l.bf16 %v3895
          %v3992 = vunpack.c.l.bf16 %v3896
          %v3993 = vunpack.c.l.bf16 %v3897
          %v3994 = vunpack.c.l.bf16 %v3898
          %v3995 = vunpack.c.l.bf16 %v3899
          %v3996 = vunpack.c.l.bf16 %v3900
          %v3997 = vunpack.c.l.bf16 %v3901
          %v3998 = vunpack.c.l.bf16 %v3902
          %v3999 = vunpack.c.l.bf16 %v3903
          %v4000 = vunpack.c.l.bf16 %v3904
          %v4001 = vunpack.c.l.bf16 %v3905
          %v4002 = vunpack.c.l.bf16 %v3906
          %v4003 = vunpack.c.l.bf16 %v3907
          %v4004 = vunpack.c.l.bf16 %v3908
          %v4005 = vunpack.c.l.bf16 %v3909
          %v4006 = vunpack.c.l.bf16 %v3910
          %v4007 = vunpack.c.l.bf16 %v3911
          %v4008 = vunpack.c.l.bf16 %v3912
          %v4009 = vunpack.c.l.bf16 %v3913
          %v4010 = vunpack.c.l.bf16 %v3914
          %v4011 = vunpack.c.l.bf16 %v3915
          %v4012 = vunpack.c.l.bf16 %v3916
          %v4013 = vunpack.c.l.bf16 %v3917
          %v4014 = vunpack.c.l.bf16 %v3918
          %v4015 = vunpack.c.l.bf16 %v3919
          %v4016 = vunpack.c.l.bf16 %v3920
          %v4017 = vunpack.c.l.bf16 %v3921
          %v4018 = vunpack.c.l.bf16 %v3922
          %v4019 = vunpack.c.l.bf16 %v3923
          %v4020 = vunpack.c.l.bf16 %v3924
          %v4021 = vunpack.c.l.bf16 %v3925
          %v4022 = vunpack.c.l.bf16 %v3926
          %v4023 = vunpack.c.l.bf16 %v3927
          %v4024 = vunpack.c.l.bf16 %v3928
          %v4025 = vunpack.c.l.bf16 %v3929
          %v4026 = vunpack.c.l.bf16 %v3930
          %v4027 = vunpack.c.l.bf16 %v3931
          %v4028 = vunpack.c.l.bf16 %v3932
          %v4029 = vunpack.c.l.bf16 %v3933
          %v4030 = vunpack.c.l.bf16 %v3934
          %v4031 = vunpack.c.l.bf16 %v3935
          %v4032 = vunpack.c.l.bf16 %v3936
          %v4033 = vunpack.c.l.bf16 %v3937
          %v4034 = vunpack.c.l.bf16 %v3938
          %v4035 = vunpack.c.l.bf16 %v3939
          %v4036 = vunpack.c.l.bf16 %v3940
          %v4037 = vunpack.c.l.bf16 %v3941
          %v4038 = vunpack.c.l.bf16 %v3942
          %v4039 = vunpack.c.l.bf16 %v3943
          %v4040 = vunpack.c.l.bf16 %v3944
          %v4041 = vunpack.c.l.bf16 %v3945
          %v4042 = vunpack.c.l.bf16 %v3946
          %v4043 = vunpack.c.l.bf16 %v3947
          %v4044 = vunpack.c.l.bf16 %v3948
          %v4045 = vunpack.c.l.bf16 %v3949
          %v4046 = vld [vmem:[#allocation12] sm:$0x1]
          %v4048 = vperm.slane %v4046, 0
          %4050 = vmatpush.msra.mxu0 %v3965
          %4051 = vmatpush.msra.mxu0 %v3964
          %4052 = vmatpush.msra.mxu0 %v3963
          %4053 = vmatpush.msra.mxu0 %v3962
          %4054 = vmatpush.msra.mxu0 %v3961
          %4055 = vmatpush.msra.mxu0 %v3960
          %4056 = vmatpush.msra.mxu0 %v3959
          %4057 = vmatpush.msra.mxu0 %v3958
          %4058 = vmatpush.msra.mxu0 %v3957
          %4059 = vmatpush.msra.mxu0 %v3956
          %4060 = vmatpush.msra.mxu0 %v3955
          %4061 = vmatpush.msra.mxu0 %v3954
          %4062 = vmatpush.msra.mxu0 %v3953
          %4063 = vmatpush.msra.mxu0 %v3952
          %4064 = vmatpush.msra.mxu0 %v3951
          %4065 = vmatpush.msra.mxu0 %v3950
          %4066 = vmatmul.f32.gmra.mxu0 %v3848
          %v4067 = vpop.f32.mrf.mxu0
          %v4068 = vadd.f32 %v4048, %v4067
          %4069 = vdwg.mxu0
          %4070 = vmatpush.msra.mxu0 %v3981
          %4071 = vmatpush.msra.mxu0 %v3980
          %4072 = vmatpush.msra.mxu0 %v3979
          %4073 = vmatpush.msra.mxu0 %v3978
          %4074 = vmatpush.msra.mxu0 %v3977
          %4075 = vmatpush.msra.mxu0 %v3976
          %4076 = vmatpush.msra.mxu0 %v3975
          %4077 = vmatpush.msra.mxu0 %v3974
          %4078 = vmatpush.msra.mxu0 %v3973
          %4079 = vmatpush.msra.mxu0 %v3972
          %4080 = vmatpush.msra.mxu0 %v3971
          %4081 = vmatpush.msra.mxu0 %v3970
          %4082 = vmatpush.msra.mxu0 %v3969
          %4083 = vmatpush.msra.mxu0 %v3968
          %4084 = vmatpush.msra.mxu0 %v3967
          %4085 = vmatpush.msra.mxu0 %v3966
          %4086 = vmatmul.f32.gmra.mxu0 %v3849
          %v4087 = vpop.f32.mrf.mxu0
          %v4088 = vadd.f32 %v4068, %v4087
          %4089 = vdwg.mxu0
          %4090 = vmatpush.msra.mxu0 %v3997
          %4091 = vmatpush.msra.mxu0 %v3996
          %4092 = vmatpush.msra.mxu0 %v3995
          %4093 = vmatpush.msra.mxu0 %v3994
          %4094 = vmatpush.msra.mxu0 %v3993
          %4095 = vmatpush.msra.mxu0 %v3992
          %4096 = vmatpush.msra.mxu0 %v3991
          %4097 = vmatpush.msra.mxu0 %v3990
          %4098 = vmatpush.msra.mxu0 %v3989
          %4099 = vmatpush.msra.mxu0 %v3988
          %4100 = vmatpush.msra.mxu0 %v3987
          %4101 = vmatpush.msra.mxu0 %v3986
          %4102 = vmatpush.msra.mxu0 %v3985
          %4103 = vmatpush.msra.mxu0 %v3984
          %4104 = vmatpush.msra.mxu0 %v3983
          %4105 = vmatpush.msra.mxu0 %v3982
          %4106 = vmatmul.f32.gmra.mxu0 %v3850
          %v4107 = vpop.f32.mrf.mxu0
          %v4108 = vadd.f32 %v4088, %v4107
          %4109 = vdwg.mxu0
          %4110 = vmatpush.msra.mxu0 %v4013
          %4111 = vmatpush.msra.mxu0 %v4012
          %4112 = vmatpush.msra.mxu0 %v4011
          %4113 = vmatpush.msra.mxu0 %v4010
          %4114 = vmatpush.msra.mxu0 %v4009
          %4115 = vmatpush.msra.mxu0 %v4008
          %4116 = vmatpush.msra.mxu0 %v4007
          %4117 = vmatpush.msra.mxu0 %v4006
          %4118 = vmatpush.msra.mxu0 %v4005
          %4119 = vmatpush.msra.mxu0 %v4004
          %4120 = vmatpush.msra.mxu0 %v4003
          %4121 = vmatpush.msra.mxu0 %v4002
          %4122 = vmatpush.msra.mxu0 %v4001
          %4123 = vmatpush.msra.mxu0 %v4000
          %4124 = vmatpush.msra.mxu0 %v3999
          %4125 = vmatpush.msra.mxu0 %v3998
          %4126 = vmatmul.f32.gmra.mxu0 %v3851
          %v4127 = vpop.f32.mrf.mxu0
          %v4128 = vadd.f32 %v4108, %v4127
          %4129 = vdwg.mxu0
          %4130 = vmatpush.msra.mxu0 %v4029
          %4131 = vmatpush.msra.mxu0 %v4028
          %4132 = vmatpush.msra.mxu0 %v4027
          %4133 = vmatpush.msra.mxu0 %v4026
          %4134 = vmatpush.msra.mxu0 %v4025
          %4135 = vmatpush.msra.mxu0 %v4024
          %4136 = vmatpush.msra.mxu0 %v4023
          %4137 = vmatpush.msra.mxu0 %v4022
          %4138 = vmatpush.msra.mxu0 %v4021
          %4139 = vmatpush.msra.mxu0 %v4020
          %4140 = vmatpush.msra.mxu0 %v4019
          %4141 = vmatpush.msra.mxu0 %v4018
          %4142 = vmatpush.msra.mxu0 %v4017
          %4143 = vmatpush.msra.mxu0 %v4016
          %4144 = vmatpush.msra.mxu0 %v4015
          %4145 = vmatpush.msra.mxu0 %v4014
          %4146 = vmatmul.f32.gmra.mxu0 %v3852
          %v4147 = vpop.f32.mrf.mxu0
          %v4148 = vadd.f32 %v4128, %v4147
          %4149 = vdwg.mxu0
          %4150 = vmatpush.msra.mxu0 %v4045
          %4151 = vmatpush.msra.mxu0 %v4044
          %4152 = vmatpush.msra.mxu0 %v4043
          %4153 = vmatpush.msra.mxu0 %v4042
          %4154 = vmatpush.msra.mxu0 %v4041
          %4155 = vmatpush.msra.mxu0 %v4040
          %4156 = vmatpush.msra.mxu0 %v4039
          %4157 = vmatpush.msra.mxu0 %v4038
          %4158 = vmatpush.msra.mxu0 %v4037
          %4159 = vmatpush.msra.mxu0 %v4036
          %4160 = vmatpush.msra.mxu0 %v4035
          %4161 = vmatpush.msra.mxu0 %v4034
          %4162 = vmatpush.msra.mxu0 %v4033
          %4163 = vmatpush.msra.mxu0 %v4032
          %4164 = vmatpush.msra.mxu0 %v4031
          %4165 = vmatpush.msra.mxu0 %v4030
          %4166 = vmatmul.f32.gmra.mxu0 %v3853
          %v4167 = vpop.f32.mrf.mxu0
          %v4168 = vadd.f32 %v4148, %v4167
          %4169 = vdwg.mxu0
          %v4170 = vmul.f32 %v4168, %v4168
          %4171 = vadd.xlane.f32.xlu0 %v4170
          %v4172 = vpop.xlane.xlu0 %4171
          %v4173 = vmax.f32 %v4172, 1e-24
          %v4174 = vrsqrt.pop %v4173
          %v4175 = vmul.f32 %v4174, %v4173
          %v4176 = vmul.f32 %v4175, %v4174
          %v4177 = vmul.f32 0.5, %v4176
          %v4178 = vsub.f32 1.5, %v4177
          %v4179 = vmul.f32 %v4174, %v4178
          %vm4180 = vweird.f32 %v4173
          %vm4181 = vweird.f32 %v4174
          %vm4182 = vmor %vm4180, %vm4181
          %v4183 = vsel %vm4182, %v4174, %v4179
          %v4184 = vmul.f32 %v4168, %v4183
          %4185 = vst [vmem:[#allocation15] sm:$0xff] %v4184
        $region76: #{tpu_custom_call.1} parent=43 // pred_fallthru
          _
        // Predicated region
        $region77: #{tpu_custom_call.1} parent=43 // pred_check
          %p4186 = pneg %p197
        $region78: #{tpu_custom_call.1} parent=43 // pred_check_branch
          %4188 = sbr.rel (%p4186) target = $region80
        $region79: #{tpu_custom_call.1} parent=43 // pred_region
          %4190 = vsyncadd [#allocation5], 0
          %s4191 = smul.addr %s33, 8
          %s4192 = scalar_lea.hbm %s6, %s4191
          %s4194 = sshll.u32 [#allocation14], 4
          %s4195 = int_to_ptr.vmem [resolvable:$true] %s4194
          %s4196 = sshll.u32 %s4192, 4
          %s4197 = int_to_ptr.hbm [resolvable:$true] %s4196
          %4199 = dma.vmem_to_hbm [thread:$0]  %s4195, 128, %s4197, [#allocation5]
        $region80: #{tpu_custom_call.1} parent=43 // pred_fallthru
          _
        // Predicated region
        $region81: #{tpu_custom_call.1} parent=43 // pred_check
          %p4200 = pneg %p223
        $region82: #{tpu_custom_call.1} parent=43 // pred_check_branch
          %4202 = sbr.rel (%p4200) target = $region84
        $region83: #{tpu_custom_call.1} parent=43 // pred_region
          %4204 = vsyncadd [#allocation16], 0
          %s4205 = smul.addr %s33, 8
          %s4206 = scalar_lea.hbm %s7, %s4205
          %s4208 = sshll.u32 [#allocation15], 4
          %s4209 = int_to_ptr.vmem [resolvable:$true] %s4208
          %s4210 = sshll.u32 %s4206, 4
          %s4211 = int_to_ptr.hbm [resolvable:$true] %s4210
          %4213 = dma.vmem_to_hbm [thread:$0]  %s4209, 128, %s4211, [#allocation16]
        $region84: #{tpu_custom_call.1} parent=43 // pred_fallthru
          _
        // Predicated region
        $region85: #{tpu_custom_call.1} parent=43 // pred_check
          %p4214 = pneg %p197
        $region86: #{tpu_custom_call.1} parent=43 // pred_check_branch
          %4216 = sbr.rel (%p4214) target = $region88
        $region87: #{tpu_custom_call.1} parent=43 // pred_region
          %4218 = dma.done [#allocation5], 128
        $region88: #{tpu_custom_call.1} parent=43 // pred_fallthru
          _
        // Predicated region
        $region89: #{tpu_custom_call.1} parent=43 // pred_check
          %p4219 = pneg %p223
        $region90: #{tpu_custom_call.1} parent=43 // pred_check_branch
          %4221 = sbr.rel (%p4219) target = $region92
        $region91: #{tpu_custom_call.1} parent=43 // pred_region
          %4223 = dma.done [#allocation16], 128
        $region92: #{tpu_custom_call.1} parent=43 // pred_fallthru
          _
      $region44: #{tpu_custom_call.1} parent=5 // pred_fallthru
        _
      %p4224 = scmp.le.s32.totalorder 2, %s24
      // Predicated region
      $region93: #{tpu_custom_call.1} parent=5 // pred_check
        %p4225 = pneg %p4224
      $region94: #{tpu_custom_call.1} parent=5 // pred_check_branch
        %4227 = sbr.rel (%p4225) target = $region96
      $region95: #{tpu_custom_call.1} parent=5 // pred_region
        %s4228 = ssub.s32 %s24, 2
      $region96: #{tpu_custom_call.1} parent=5 // pred_fallthru
        _
    $region6: #{tpu_custom_call.1} parent=1 // loop_footer
      %s28 = sadd.s32 1, %s24
    $region7: #{tpu_custom_call.1} parent=1 // loop_footer_branch
      %23 = sbr.rel target = $region3
    $region8: #{tpu_custom_call.1} parent=1 // loop_exit
      _
    %4229 = vsyncpa [#allocation4], 1
    %s4230 = scalar_lea.sflag [#allocation4], 1
    %4231 = vsyncpa %s4230, 1
    %4232 = vsyncpa [#allocation7], 1
    %s4233 = scalar_lea.sflag [#allocation7], 1
    %4234 = vsyncpa %s4233, 1
    %4235 = vsyncpa [#allocation10], 1
    %4236 = vsyncpa [#allocation13], 1
    %4237 = vsyncpa [#allocation5], 1
    %s4238 = scalar_lea.sflag [#allocation5], 1
    %4239 = vsyncpa %s4238, 1
    %4240 = vsyncpa [#allocation16], 1

</llo_original>
